<compile_context>
chip_gen: v7x
topology: tpu7x:2x2x1
jax: 0.10.0
libtpu: 0.0.40
codegen_flags: <defaults>
</compile_context>

<pallas_src>
import functools

import numpy as np
import jax
import jax.numpy as jnp
from jax.experimental import pallas as pl
from jax.experimental.pallas import tpu as pltpu

SIGMA = 0.1
NUM_BINS = 256
EPS = 1e-10
NORMALIZE = True

# Padding sentinel: after *255 it sits ~2.6e6 away from every bin, so the
# Gaussian kernel argument is ~-3e14 and exp underflows to exactly 0 (in both
# f32 and bf16): padded pixels contribute nothing to any histogram.
PAD_VALUE = -1.0e4


def _round_up(x, m):
    return (x + m - 1) // m * m


def _tune_for_device():
    """Returns (tn_max, vmem_limit_bytes, exp_in_bf16) per TPU generation."""
    try:
        kind = jax.devices()[0].device_kind.lower()
    except Exception:  # pragma: no cover - no device info available
        kind = ""
    if "v7" in kind:
        # Only 64 MiB physical VMEM per TC: moderate chunk, bf16 kv path.
        return 4096, 48 * 1024 * 1024, True
    if "v6" in kind:
        # 128 MiB VMEM, native bf16 EUP/VPU.
        return 8192, 64 * 1024 * 1024, True
    if "v5" in kind:
        # 128 MiB VMEM, but no bf16 elementwise units: keep exp in f32.
        return 8192, 64 * 1024 * 1024, False
    # Unknown generation: conservative, known-good configuration.
    return 2048, 32 * 1024 * 1024, False


def _mi_kernel(x1_ref, x2_ref, bins_col_ref, ones_ref, out_ref,
               m1_acc, m2_acc, joint_acc, *, n_pixels, exp_in_bf16):
    """Grid = (batch, pixel_chunk).

    x1_ref:       (1, 1, 1, TN)   lane-dense pixel row of image 1
    x2_ref:       (1, 1, 1, TN)   lane-dense pixel row of image 2
    bins_col_ref: (NUM_BINS, 1)   bin centers on the sublane axis
    ones_ref:     (TN, 128) bf16  ones matrix for MXU marginal sums
    out_ref:      (1, 1, 1)       per-batch MI (written on the last chunk only)
    m1_acc:       (NUM_BINS, 128) f32 scratch, sum of kv1 over pixels (col 0)
    m2_acc:       (NUM_BINS, 128) f32 scratch, sum of kv2 over pixels (col 0)
    joint_acc:    (NUM_BINS, NUM_BINS) f32 scratch, joint histogram accumulator
    """
    c = pl.program_id(1)
    n_chunks = pl.num_programs(1)

    @pl.when(c == 0)
    def _():
        m1_acc[...] = jnp.zeros_like(m1_acc)
        m2_acc[...] = jnp.zeros_like(m2_acc)
        joint_acc[...] = jnp.zeros_like(joint_acc)

    coef = -0.5 / (SIGMA * SIGMA)          # folded Gaussian constant
    bins_col = bins_col_ref[...]           # (NUM_BINS, 1)
    ones_b = ones_ref[...]                 # (TN, 128) bf16

    def soft_hist(x_row):
        # x_row: (1, TN) lane-dense pixels in [0, 1] (or PAD_VALUE).
        v = x_row * 255.0                  # (1, TN) f32
        d = v - bins_col                   # (NUM_BINS, TN) f32
        arg = d * d * coef                 # f32 distance math (pad-safe)
        if exp_in_bf16:
            # bf16 EUP path (v6e / v7x): halves exp cost, removes post-cast.
            return jnp.exp(arg.astype(jnp.bfloat16))
        return jnp.exp(arg).astype(jnp.bfloat16)

    kv1_b = soft_hist(x1_ref[0, 0])        # (NUM_BINS, TN) bf16
    kv2_b = soft_hist(x2_ref[0, 0])        # (NUM_BINS, TN) bf16

    # Marginal sums over pixels on the MXU (contract TN against ones), f32 acc.
    m1_acc[...] += jnp.dot(kv1_b, ones_b, preferred_element_type=jnp.float32)
    m2_acc[...] += jnp.dot(kv2_b, ones_b, preferred_element_type=jnp.float32)

    # Joint histogram: contract the pixel axis of both (bins x pixels) tiles
    # ("NT" matmul on the MXU), bf16 in / f32 accumulate.
    joint_acc[...] += jax.lax.dot_general(
        kv1_b, kv2_b,
        dimension_numbers=(((1,), (1,)), ((), ())),
        preferred_element_type=jnp.float32)

    @pl.when(c == n_chunks - 1)
    def _():
        inv_n = 1.0 / n_pixels                               # real pixel count
        p1 = m1_acc[:, 0:1] * inv_n                          # mean over pixels
        p1 = p1 * (1.0 / (jnp.sum(p1) + EPS))
        p2 = m2_acc[:, 0:1] * inv_n
        p2 = p2 * (1.0 / (jnp.sum(p2) + EPS))
        pj = joint_acc[...]
        pj = pj * (1.0 / (jnp.sum(pj) + EPS))                # scalar-inverse mul

        h1 = -jnp.sum(p1 * jnp.log2(p1 + EPS))
        h2 = -jnp.sum(p2 * jnp.log2(p2 + EPS))
        h12 = -jnp.sum(pj * jnp.log2(pj + EPS))

        mi = h1 + h2 - h12
        if NORMALIZE:
            mi = 2.0 * mi / (h1 + h2)
        out_ref[...] = jnp.broadcast_to(mi, (1, 1, 1)).astype(jnp.float32)


def mutual_information(input1, input2, bins):
    """input1, input2: (B, C, H, W) float arrays in [0, 1]. Returns (B,) MI."""
    B, C, H, W = input1.shape
    assert input1.shape == input2.shape
    # torch does .view(B, H*W, C); broadcast against the bins requires C == 1.
    assert C == 1, "MutualInformation broadcast semantics require C == 1"
    bins_f = jnp.asarray(bins, dtype=jnp.float32)
    assert bins_f.shape == (NUM_BINS,), "bins must have NUM_BINS entries"
    N = H * W * C

    tn_max, vmem_limit, exp_in_bf16 = _tune_for_device()
    if N <= tn_max:
        TN = max(128, _round_up(N, 128))
        n_chunks = 1
    else:
        TN = tn_max
        n_chunks = -(-N // TN)
    N_pad = TN * n_chunks

    x1 = jnp.reshape(input1, (B, N)).astype(jnp.float32)
    x2 = jnp.reshape(input2, (B, N)).astype(jnp.float32)
    if N_pad > N:
        pad = jnp.full((B, N_pad - N), PAD_VALUE, dtype=jnp.float32)
        x1 = jnp.concatenate([x1, pad], axis=1)
        x2 = jnp.concatenate([x2, pad], axis=1)

    # Both images fed lane-dense (contiguous DMA bursts, no lane padding).
    x1_rows = x1.reshape(B, n_chunks, 1, TN)
    x2_rows = x2.reshape(B, n_chunks, 1, TN)
    bins_col = bins_f.reshape(NUM_BINS, 1)
    ones_mat = jnp.ones((TN, 128), dtype=jnp.bfloat16)

    kernel = functools.partial(_mi_kernel, n_pixels=N, exp_in_bf16=exp_in_bf16)

    # NOTE: on v7x with B >= 2 the "parallel" batch axis shards across both
    # TensorCores; the chunk (reduction) axis stays per-core, so the resident
    # accumulators are race-free.
    out = pl.pallas_call(
        kernel,
        out_shape=jax.ShapeDtypeStruct((B, 1, 1), jnp.float32),
        grid_spec=pltpu.PrefetchScalarGridSpec(
            num_scalar_prefetch=0,
            grid=(B, n_chunks),
            in_specs=[
                pl.BlockSpec((1, 1, 1, TN), lambda b, c: (b, c, 0, 0)),
                pl.BlockSpec((1, 1, 1, TN), lambda b, c: (b, c, 0, 0)),
                pl.BlockSpec((NUM_BINS, 1), lambda b, c: (0, 0)),
                pl.BlockSpec((TN, 128), lambda b, c: (0, 0)),
            ],
            out_specs=pl.BlockSpec((1, 1, 1), lambda b, c: (b, 0, 0)),
            scratch_shapes=[
                pltpu.VMEM((NUM_BINS, 128), jnp.float32),
                pltpu.VMEM((NUM_BINS, 128), jnp.float32),
                pltpu.VMEM((NUM_BINS, NUM_BINS), jnp.float32),
            ],
        ),
        compiler_params=pltpu.CompilerParams(
            dimension_semantics=("parallel", "arbitrary"),
            vmem_limit_bytes=vmem_limit,
        ),
    )(x1_rows, x2_rows, bins_col, ones_mat)
    return out[:, 0, 0]


def mutual_information_ref(input1, input2, bins):
    """NumPy float64 reference mirroring the torch module line-by-line."""
    inp1 = np.asarray(input1, dtype=np.float64) * 255.0
    inp2 = np.asarray(input2, dtype=np.float64) * 255.0
    B, C, H, W = inp1.shape
    x1 = inp1.reshape(B, H * W, C)
    x2 = inp2.reshape(B, H * W, C)
    binsv = np.asarray(bins, dtype=np.float64)

    def marginal(v):
        r = v - binsv[None, None, :]
        kv = np.exp(-0.5 * (r / SIGMA) ** 2)
        pdf = kv.mean(axis=1)
        pdf = pdf / (pdf.sum(axis=1, keepdims=True) + EPS)
        return pdf, kv

    p1, kv1 = marginal(x1)
    p2, kv2 = marginal(x2)
    joint = np.matmul(np.transpose(kv1, (0, 2, 1)), kv2)
    joint = joint / (joint.sum(axis=(1, 2), keepdims=True) + EPS)
    h1 = -np.sum(p1 * np.log2(p1 + EPS), axis=1)
    h2 = -np.sum(p2 * np.log2(p2 + EPS), axis=1)
    h12 = -np.sum(joint * np.log2(joint + EPS), axis=(1, 2))
    mi = h1 + h2 - h12
    if NORMALIZE:
        mi = 2.0 * mi / (h1 + h2)
    return mi


if __name__ == "__main__":
    B, C, H, W = 2, 1, 16, 16

    key = jax.random.PRNGKey(0)
    k1, k2 = jax.random.split(key)
    x1 = jax.random.uniform(k1, (B, C, H, W), dtype=jnp.float32)
    x2 = jax.random.uniform(k2, (B, C, H, W), dtype=jnp.float32)

    # nn.Parameter(torch.linspace(0, 255, num_bins)), deterministic.
    bins = jnp.linspace(0.0, 255.0, NUM_BINS, dtype=jnp.float32)

    out = mutual_information(x1, x2, bins)
    out = jax.block_until_ready(out)

    ref = mutual_information_ref(np.asarray(x1), np.asarray(x2), np.asarray(bins))
    if not np.allclose(np.asarray(out), ref, rtol=1e-2, atol=1e-2):
        raise AssertionError(f"mismatch: pallas={np.asarray(out)} ref={ref}")

    print("KERNEL_OK")
</pallas_src>

<mosaic_0001>
module attributes {stable_mosaic.version = 11 : i64} {
  func.func @_mi_kernel(%arg0: i32, %arg1: i32, %arg2: memref<1x1x1x256xf32, #tpu.memory_space<vmem>>, %arg3: memref<1x1x1x256xf32, #tpu.memory_space<vmem>>, %arg4: memref<256x1xf32, #tpu.memory_space<vmem>>, %arg5: memref<256x128xbf16, #tpu.memory_space<vmem>>, %arg6: memref<1x1x1xf32, #tpu.memory_space<vmem>>, %arg7: memref<256x128xf32, #tpu.memory_space<vmem>>, %arg8: memref<256x128xf32, #tpu.memory_space<vmem>>, %arg9: memref<256x256xf32, #tpu.memory_space<vmem>>) attributes {dimension_semantics = [#tpu.dimension_semantics<parallel>, #tpu.dimension_semantics<arbitrary>], iteration_bounds = array<i64: 2, 1>, scalar_prefetch = 0 : i64, scratch_operands = 3 : i64, tpu.core_type = #tpu.core_type<tc>, window_params = [{transform_indices = @transform_0, window_bounds = array<i64: 1, 1, 1, 256>}, {transform_indices = @transform_1, window_bounds = array<i64: 1, 1, 1, 256>}, {pipeline_mode = #tpu.pipeline_mode<synchronous>, transform_indices = @transform_2, window_bounds = array<i64: 256, 1>}, {pipeline_mode = #tpu.pipeline_mode<synchronous>, transform_indices = @transform_3, window_bounds = array<i64: 256, 128>}, {transform_indices = @transform_4, window_bounds = array<i64: 1, 1, 1>}]} {
    %c0_i32 = arith.constant 0 : i32
    %0 = arith.cmpi eq, %arg1, %c0_i32 : i32
    %1 = arith.extui %0 : i1 to i32
    %c0_i32_0 = arith.constant 0 : i32
    %2 = arith.cmpi ne, %1, %c0_i32_0 : i32
    scf.if %2 {
      %cst_32 = arith.constant 0.000000e+00 : f32
      %44 = vector.broadcast %cst_32 : f32 to vector<256x128xf32>
      %c0_33 = arith.constant 0 : index
      %c0_34 = arith.constant 0 : index
      %45 = vector.load %arg7[%c0_33, %c0_34] : memref<256x128xf32, #tpu.memory_space<vmem>>, vector<256x128xf32>
      tpu.vector_store %arg7[%c0_33, %c0_34], %44 {strides = array<i32>} : memref<256x128xf32, #tpu.memory_space<vmem>>, vector<256x128xf32>,
      %cst_35 = arith.constant 0.000000e+00 : f32
      %46 = vector.broadcast %cst_35 : f32 to vector<256x128xf32>
      %c0_36 = arith.constant 0 : index
      %c0_37 = arith.constant 0 : index
      %47 = vector.load %arg8[%c0_36, %c0_37] : memref<256x128xf32, #tpu.memory_space<vmem>>, vector<256x128xf32>
      tpu.vector_store %arg8[%c0_36, %c0_37], %46 {strides = array<i32>} : memref<256x128xf32, #tpu.memory_space<vmem>>, vector<256x128xf32>,
      %cst_38 = arith.constant 0.000000e+00 : f32
      %48 = vector.broadcast %cst_38 : f32 to vector<256x256xf32>
      %c0_39 = arith.constant 0 : index
      %c0_40 = arith.constant 0 : index
      %49 = vector.load %arg9[%c0_39, %c0_40] : memref<256x256xf32, #tpu.memory_space<vmem>>, vector<256x256xf32>
      tpu.vector_store %arg9[%c0_39, %c0_40], %48 {strides = array<i32>} : memref<256x256xf32, #tpu.memory_space<vmem>>, vector<256x256xf32>,
    } else {
    }
    %c0 = arith.constant 0 : index
    %c0_1 = arith.constant 0 : index
    %3 = vector.load %arg4[%c0, %c0_1] : memref<256x1xf32, #tpu.memory_space<vmem>>, vector<256x1xf32>
    %c0_2 = arith.constant 0 : index
    %c0_3 = arith.constant 0 : index
    %4 = vector.load %arg5[%c0_2, %c0_3] : memref<256x128xbf16, #tpu.memory_space<vmem>>, vector<256x128xbf16>
    %c0_4 = arith.constant 0 : index
    %c0_5 = arith.constant 0 : index
    %c0_6 = arith.constant 0 : index
    %c0_7 = arith.constant 0 : index
    %5 = vector.load %arg2[%c0_4, %c0_5, %c0_6, %c0_7] : memref<1x1x1x256xf32, #tpu.memory_space<vmem>>, vector<1x1x1x256xf32>
    %6 = vector.shape_cast %5 : vector<1x1x1x256xf32> to vector<1x256xf32>
    %cst = arith.constant 2.550000e+02 : f32
    %7 = vector.broadcast %cst : f32 to vector<1x256xf32>
    %8 = arith.mulf %6, %7 : vector<1x256xf32>
    %9 = vector.broadcast %8 : vector<1x256xf32> to vector<256x256xf32>
    %10 = vector.broadcast %3 : vector<256x1xf32> to vector<256x256xf32>
    %11 = arith.subf %9, %10 : vector<256x256xf32>
    %12 = arith.mulf %11, %11 : vector<256x256xf32>
    %cst_8 = arith.constant -5.000000e+01 : f32
    %13 = vector.broadcast %cst_8 : f32 to vector<256x256xf32>
    %14 = arith.mulf %12, %13 : vector<256x256xf32>
    %15 = math.exp %14 : vector<256x256xf32>
    %16 = arith.truncf %15 : vector<256x256xf32> to vector<256x256xbf16>
    %c0_9 = arith.constant 0 : index
    %c0_10 = arith.constant 0 : index
    %c0_11 = arith.constant 0 : index
    %c0_12 = arith.constant 0 : index
    %17 = vector.load %arg3[%c0_9, %c0_10, %c0_11, %c0_12] : memref<1x1x1x256xf32, #tpu.memory_space<vmem>>, vector<1x1x1x256xf32>
    %18 = vector.shape_cast %17 : vector<1x1x1x256xf32> to vector<1x256xf32>
    %cst_13 = arith.constant 2.550000e+02 : f32
    %19 = vector.broadcast %cst_13 : f32 to vector<1x256xf32>
    %20 = arith.mulf %18, %19 : vector<1x256xf32>
    %21 = vector.broadcast %20 : vector<1x256xf32> to vector<256x256xf32>
    %22 = vector.broadcast %3 : vector<256x1xf32> to vector<256x256xf32>
    %23 = arith.subf %21, %22 : vector<256x256xf32>
    %24 = arith.mulf %23, %23 : vector<256x256xf32>
    %cst_14 = arith.constant -5.000000e+01 : f32
    %25 = vector.broadcast %cst_14 : f32 to vector<256x256xf32>
    %26 = arith.mulf %24, %25 : vector<256x256xf32>
    %27 = math.exp %26 : vector<256x256xf32>
    %28 = arith.truncf %27 : vector<256x256xf32> to vector<256x256xbf16>
    %c0_15 = arith.constant 0 : index
    %c0_16 = arith.constant 0 : index
    %29 = vector.load %arg7[%c0_15, %c0_16] : memref<256x128xf32, #tpu.memory_space<vmem>>, vector<256x128xf32>
    %cst_17 = arith.constant dense<0.000000e+00> : vector<256x128xf32>
    %30 = tpu.matmul %16, %4, %cst_17 {dimension_numbers = #tpu.dot_dimension_numbers<[1], [0], [0], [1], [0, 0, 1, 1], [], []>} : vector<256x256xbf16>, vector<256x128xbf16>, vector<256x128xf32> -> vector<256x128xf32>
    %31 = arith.addf %29, %30 : vector<256x128xf32>
    %c0_18 = arith.constant 0 : index
    %c0_19 = arith.constant 0 : index
    %32 = vector.load %arg7[%c0_18, %c0_19] : memref<256x128xf32, #tpu.memory_space<vmem>>, vector<256x128xf32>
    tpu.vector_store %arg7[%c0_18, %c0_19], %31 {strides = array<i32>} : memref<256x128xf32, #tpu.memory_space<vmem>>, vector<256x128xf32>,
    %c0_20 = arith.constant 0 : index
    %c0_21 = arith.constant 0 : index
    %33 = vector.load %arg8[%c0_20, %c0_21] : memref<256x128xf32, #tpu.memory_space<vmem>>, vector<256x128xf32>
    %cst_22 = arith.constant dense<0.000000e+00> : vector<256x128xf32>
    %34 = tpu.matmul %28, %4, %cst_22 {dimension_numbers = #tpu.dot_dimension_numbers<[1], [0], [0], [1], [0, 0, 1, 1], [], []>} : vector<256x256xbf16>, vector<256x128xbf16>, vector<256x128xf32> -> vector<256x128xf32>
    %35 = arith.addf %33, %34 : vector<256x128xf32>
    %c0_23 = arith.constant 0 : index
    %c0_24 = arith.constant 0 : index
    %36 = vector.load %arg8[%c0_23, %c0_24] : memref<256x128xf32, #tpu.memory_space<vmem>>, vector<256x128xf32>
    tpu.vector_store %arg8[%c0_23, %c0_24], %35 {strides = array<i32>} : memref<256x128xf32, #tpu.memory_space<vmem>>, vector<256x128xf32>,
    %c0_25 = arith.constant 0 : index
    %c0_26 = arith.constant 0 : index
    %37 = vector.load %arg9[%c0_25, %c0_26] : memref<256x256xf32, #tpu.memory_space<vmem>>, vector<256x256xf32>
    %cst_27 = arith.constant dense<0.000000e+00> : vector<256x256xf32>
    %38 = tpu.matmul %16, %28, %cst_27 {dimension_numbers = #tpu.dot_dimension_numbers<[1], [1], [0], [0], [0, 0, 1, 0], [], []>} : vector<256x256xbf16>, vector<256x256xbf16>, vector<256x256xf32> -> vector<256x256xf32>
    %39 = arith.addf %37, %38 : vector<256x256xf32>
    %c0_28 = arith.constant 0 : index
    %c0_29 = arith.constant 0 : index
    %40 = vector.load %arg9[%c0_28, %c0_29] : memref<256x256xf32, #tpu.memory_space<vmem>>, vector<256x256xf32>
    tpu.vector_store %arg9[%c0_28, %c0_29], %39 {strides = array<i32>} : memref<256x256xf32, #tpu.memory_space<vmem>>, vector<256x256xf32>,
    %c0_i32_30 = arith.constant 0 : i32
    %41 = arith.cmpi eq, %arg1, %c0_i32_30 : i32
    %42 = arith.extui %41 : i1 to i32
    %c0_i32_31 = arith.constant 0 : i32
    %43 = arith.cmpi ne, %42, %c0_i32_31 : i32
    scf.if %43 {
      %c0_32 = arith.constant 0 : index
      %c0_33 = arith.constant 0 : index
      %44 = vector.load %arg7[%c0_32, %c0_33] : memref<256x128xf32, #tpu.memory_space<vmem>>, vector<256x1xf32>
      %cst_34 = arith.constant 3.906250e-03 : f32
      %45 = vector.broadcast %cst_34 : f32 to vector<256x1xf32>
      %46 = arith.mulf %44, %45 : vector<256x1xf32>
      %47 = vector.shape_cast %46 : vector<256x1xf32> to vector<1x256x1xf32>
      %cst_35 = arith.constant dense<0.000000e+00> : vector<1xf32>
      %48 = vector.multi_reduction <add>, %47, %cst_35 [1, 2] : vector<1x256x1xf32> to vector<1xf32>
      %49 = vector.shape_cast %48 : vector<1xf32> to vector<1x1x1xf32>
      %50 = vector.extract %49[0, 0, 0] : f32 from vector<1x1x1xf32>
      %cst_36 = arith.constant 1.000000e-10 : f32
      %51 = arith.addf %50, %cst_36 : f32
      %cst_37 = arith.constant 1.000000e+00 : f32
      %52 = arith.divf %cst_37, %51 : f32
      %53 = vector.broadcast %52 : f32 to vector<256x1xf32>
      %54 = arith.mulf %46, %53 : vector<256x1xf32>
      %c0_38 = arith.constant 0 : index
      %c0_39 = arith.constant 0 : index
      %55 = vector.load %arg8[%c0_38, %c0_39] : memref<256x128xf32, #tpu.memory_space<vmem>>, vector<256x1xf32>
      %cst_40 = arith.constant 3.906250e-03 : f32
      %56 = vector.broadcast %cst_40 : f32 to vector<256x1xf32>
      %57 = arith.mulf %55, %56 : vector<256x1xf32>
      %58 = vector.shape_cast %57 : vector<256x1xf32> to vector<1x256x1xf32>
      %cst_41 = arith.constant dense<0.000000e+00> : vector<1xf32>
      %59 = vector.multi_reduction <add>, %58, %cst_41 [1, 2] : vector<1x256x1xf32> to vector<1xf32>
      %60 = vector.shape_cast %59 : vector<1xf32> to vector<1x1x1xf32>
      %61 = vector.extract %60[0, 0, 0] : f32 from vector<1x1x1xf32>
      %cst_42 = arith.constant 1.000000e-10 : f32
      %62 = arith.addf %61, %cst_42 : f32
      %cst_43 = arith.constant 1.000000e+00 : f32
      %63 = arith.divf %cst_43, %62 : f32
      %64 = vector.broadcast %63 : f32 to vector<256x1xf32>
      %65 = arith.mulf %57, %64 : vector<256x1xf32>
      %c0_44 = arith.constant 0 : index
      %c0_45 = arith.constant 0 : index
      %66 = vector.load %arg9[%c0_44, %c0_45] : memref<256x256xf32, #tpu.memory_space<vmem>>, vector<256x256xf32>
      %67 = vector.shape_cast %66 : vector<256x256xf32> to vector<1x256x256xf32>
      %cst_46 = arith.constant dense<0.000000e+00> : vector<1xf32>
      %68 = vector.multi_reduction <add>, %67, %cst_46 [1, 2] : vector<1x256x256xf32> to vector<1xf32>
      %69 = vector.shape_cast %68 : vector<1xf32> to vector<1x1x1xf32>
      %70 = vector.extract %69[0, 0, 0] : f32 from vector<1x1x1xf32>
      %cst_47 = arith.constant 1.000000e-10 : f32
      %71 = arith.addf %70, %cst_47 : f32
      %cst_48 = arith.constant 1.000000e+00 : f32
      %72 = arith.divf %cst_48, %71 : f32
      %73 = vector.broadcast %72 : f32 to vector<256x256xf32>
      %74 = arith.mulf %66, %73 : vector<256x256xf32>
      %cst_49 = arith.constant 1.000000e-10 : f32
      %75 = vector.broadcast %cst_49 : f32 to vector<256x1xf32>
      %76 = arith.addf %54, %75 : vector<256x1xf32>
      %77 = math.log %76 : vector<256x1xf32>
      %cst_50 = arith.constant 2.000000e+00 : f32
      %78 = math.log %cst_50 : f32
      %79 = vector.broadcast %78 : f32 to vector<256x1xf32>
      %80 = arith.divf %77, %79 : vector<256x1xf32>
      %81 = arith.mulf %54, %80 : vector<256x1xf32>
      %82 = vector.shape_cast %81 : vector<256x1xf32> to vector<1x256x1xf32>
      %cst_51 = arith.constant dense<0.000000e+00> : vector<1xf32>
      %83 = vector.multi_reduction <add>, %82, %cst_51 [1, 2] : vector<1x256x1xf32> to vector<1xf32>
      %84 = vector.shape_cast %83 : vector<1xf32> to vector<1x1x1xf32>
      %85 = vector.extract %84[0, 0, 0] : f32 from vector<1x1x1xf32>
      %cst_52 = arith.constant 0.000000e+00 : f32
      %86 = arith.subf %cst_52, %85 : f32
      %cst_53 = arith.constant 1.000000e-10 : f32
      %87 = vector.broadcast %cst_53 : f32 to vector<256x1xf32>
      %88 = arith.addf %65, %87 : vector<256x1xf32>
      %89 = math.log %88 : vector<256x1xf32>
      %cst_54 = arith.constant 2.000000e+00 : f32
      %90 = math.log %cst_54 : f32
      %91 = vector.broadcast %90 : f32 to vector<256x1xf32>
      %92 = arith.divf %89, %91 : vector<256x1xf32>
      %93 = arith.mulf %65, %92 : vector<256x1xf32>
      %94 = vector.shape_cast %93 : vector<256x1xf32> to vector<1x256x1xf32>
      %cst_55 = arith.constant dense<0.000000e+00> : vector<1xf32>
      %95 = vector.multi_reduction <add>, %94, %cst_55 [1, 2] : vector<1x256x1xf32> to vector<1xf32>
      %96 = vector.shape_cast %95 : vector<1xf32> to vector<1x1x1xf32>
      %97 = vector.extract %96[0, 0, 0] : f32 from vector<1x1x1xf32>
      %cst_56 = arith.constant 0.000000e+00 : f32
      %98 = arith.subf %cst_56, %97 : f32
      %cst_57 = arith.constant 1.000000e-10 : f32
      %99 = vector.broadcast %cst_57 : f32 to vector<256x256xf32>
      %100 = arith.addf %74, %99 : vector<256x256xf32>
      %101 = math.log %100 : vector<256x256xf32>
      %cst_58 = arith.constant 2.000000e+00 : f32
      %102 = math.log %cst_58 : f32
      %103 = vector.broadcast %102 : f32 to vector<256x256xf32>
      %104 = arith.divf %101, %103 : vector<256x256xf32>
      %105 = arith.mulf %74, %104 : vector<256x256xf32>
      %106 = vector.shape_cast %105 : vector<256x256xf32> to vector<1x256x256xf32>
      %cst_59 = arith.constant dense<0.000000e+00> : vector<1xf32>
      %107 = vector.multi_reduction <add>, %106, %cst_59 [1, 2] : vector<1x256x256xf32> to vector<1xf32>
      %108 = vector.shape_cast %107 : vector<1xf32> to vector<1x1x1xf32>
      %109 = vector.extract %108[0, 0, 0] : f32 from vector<1x1x1xf32>
      %cst_60 = arith.constant 0.000000e+00 : f32
      %110 = arith.subf %cst_60, %109 : f32
      %111 = arith.addf %86, %98 : f32
      %112 = arith.subf %111, %110 : f32
      %cst_61 = arith.constant 2.000000e+00 : f32
      %113 = arith.mulf %cst_61, %112 : f32
      %114 = arith.addf %86, %98 : f32
      %115 = arith.divf %113, %114 : f32
      %116 = vector.broadcast %115 : f32 to vector<1x1x1xf32>
      %c0_62 = arith.constant 0 : index
      %c0_63 = arith.constant 0 : index
      %c0_64 = arith.constant 0 : index
      %117 = vector.load %arg6[%c0_62, %c0_63, %c0_64] : memref<1x1x1xf32, #tpu.memory_space<vmem>>, vector<1x1x1xf32>
      tpu.vector_store %arg6[%c0_62, %c0_63, %c0_64], %116 {strides = array<i32>} : memref<1x1x1xf32, #tpu.memory_space<vmem>>, vector<1x1x1xf32>,
    } else {
    }
    return
  }
  func.func @transform_0(%arg0: i32, %arg1: i32) -> (i32, i32, i32, i32) {
    %c0_i32 = arith.constant 0 : i32
    %c0_i32_0 = arith.constant 0 : i32
    %c0_i32_1 = arith.constant 0 : i32
    return %arg0, %arg1, %c0_i32, %c0_i32_0 : i32, i32, i32, i32
  }
  func.func @transform_1(%arg0: i32, %arg1: i32) -> (i32, i32, i32, i32) {
    %c0_i32 = arith.constant 0 : i32
    %c0_i32_0 = arith.constant 0 : i32
    %c0_i32_1 = arith.constant 0 : i32
    return %arg0, %arg1, %c0_i32, %c0_i32_0 : i32, i32, i32, i32
  }
  func.func @transform_2(%arg0: i32, %arg1: i32) -> (i32, i32) {
    %c0_i32 = arith.constant 0 : i32
    %c0_i32_0 = arith.constant 0 : i32
    %c0_i32_1 = arith.constant 0 : i32
    return %c0_i32, %c0_i32_0 : i32, i32
  }
  func.func @transform_3(%arg0: i32, %arg1: i32) -> (i32, i32) {
    %c0_i32 = arith.constant 0 : i32
    %c0_i32_0 = arith.constant 0 : i32
    %c0_i32_1 = arith.constant 0 : i32
    return %c0_i32, %c0_i32_0 : i32, i32
  }
  func.func @transform_4(%arg0: i32, %arg1: i32) -> (i32, i32, i32) {
    %c0_i32 = arith.constant 0 : i32
    %c0_i32_0 = arith.constant 0 : i32
    %c0_i32_1 = arith.constant 0 : i32
    return %arg0, %c0_i32, %c0_i32_0 : i32, i32, i32
  }
}

</mosaic_0001>

<llo_original>
// kernel: tpu_custom_call.1
$region0: #{tpu_custom_call.1}
  #allocation0 [shape = 'u32[]', space=smem, size = 0x4, offset = 0x4, fixed_abs, tag = 'smem constant byte address 0x4 - core index']
  #allocation1 [shape = 'u32[144,128]{1,0:T(1,128)}', space=vmem, size = 0x12000, scoped, tag = 'internal scratch']
  #allocation2 [shape = 'f32[256,128]{1,0:T(8,128)}', space=vmem, size = 0x20000, scoped, tag = 'scratch operand']
  #allocation3 [shape = 'f32[256,128]{1,0:T(8,128)}', space=vmem, size = 0x20000, scoped, tag = 'scratch operand']
  #allocation4 [shape = 'f32[256,256]{1,0:T(8,128)}', space=vmem, size = 0x40000, scoped, tag = 'scratch operand']
  %s0 = inlined_call_operand.vmem [shape: f32[2,1,1,256], index: 0, kind: input, shape index: {}]
  %s1 = inlined_call_operand.vmem [shape: f32[2,1,1,256], index: 1, kind: input, shape index: {}]
  %s2 = inlined_call_operand.vmem [shape: f32[256,1], index: 2, kind: input, shape index: {}]
  %s3 = inlined_call_operand.vmem [shape: bf16[256,128], index: 3, kind: input, shape index: {}]
  %s4 = inlined_call_operand.vmem [shape: f32[2,1,1], index: 4, kind: output, shape index: {}]
  %s5 = sld [smem:[#allocation0]]
  $region57: #{tpu_custom_call.1} parent=0
    _
  %s7 = ssub.s32 1, %s5
  %s8 = scalar_select 0, %s7, %s5
  loop: start=0, step=1, limit=4
  $region2: #{tpu_custom_call.1} parent=0 // loop_pre_header
    _
  $region3: #{tpu_custom_call.1} parent=0 // loop_header
    %s10 = sphi 0, %s14
    %p11 = scmp.ge.s32.totalorder %s10, 4
    %s17 = sphi 0, %s29
    %s18 = sphi 0, %s25
    %s19 = sphi 0, %s17
    %s20 = sphi 0, %s18
    %s21 = sphi 0, %s19
    %s22 = sphi 0, %s20
    %s34 = sphi 0, %s36
    %s37 = sphi 0, %s34
    %s38 = sphi 0, %s37
    %s54 = sphi 0, %s38
    %s62 = sphi 0, %s64
    %s65 = sphi 0, %s62
    %s66 = sphi 0, %s65
    %s82 = sphi 0, %s66
    %s86 = sphi 0, %s86
    %s88 = sphi 0, %s86
    %s89 = sphi 0, %s88
    %s103 = sphi 0, %s89
    %s107 = sphi 0, %s107
    %s109 = sphi 0, %s107
    %s110 = sphi 0, %s109
    %s124 = sphi 0, %s110
    %s130 = sphi 0, %s132
    %s133 = sphi 0, %s130
    %s134 = sphi 0, %s133
    %s150 = sphi 0, %s134
  $region4: #{tpu_custom_call.1} parent=0 // loop_header_branch
    %13 = sbr.rel (%p11) target = $region8
  $region5: #{tpu_custom_call.1} parent=0 // loop_body
    %s15 = ssub.s32 %s10, 1
    %s16 = ssub.s32 %s10, 2
    %s23 = sadd.s32 1, %s18
    %p24 = scmp.ge.s32.totalorder %s23, 1
    %s25 = scalar_select %p24, 0, %s23
    %s26 = sadd.s32 1, %s17
    %s27 = scalar_select %p24, %s26, %s17
    %p28 = scmp.ge.s32.totalorder %s27, 2
    %s29 = scalar_select %p28, 0, %s27
    %s30 = ssub.s32 %s17, %s29
    %s31 = ssub.s32 %s18, %s25
    %s32 = sor.u32 %s30, %s31
    %p33 = scmp.eq.s32.totalorder %s32, 0
    %s35 = sadd.s32 %s34, 1
    %s36 = scalar_select %p33, %s34, %s35
    %p39 = pneg %p33
    %p40 = scmp.eq.s32.totalorder %s10, 1
    %p41 = por %p39, %p40
    %p42 = scmp.ne.s32.totalorder %s34, %s37
    %p43 = scmp.eq.s32.totalorder %s10, 0
    %p44 = por %p42, %p43
    %p45 = scmp.ne.s32.totalorder %s34, %s37
    %p46 = scmp.eq.s32.totalorder %s15, 1
    %p47 = por %p45, %p46
    %p48 = scmp.ne.s32.totalorder %s37, %s38
    %p49 = scmp.eq.s32.totalorder %s15, 0
    %p50 = por %p48, %p49
    %p51 = scmp.ne.s32.totalorder %s37, %s38
    %p52 = scmp.eq.s32.totalorder %s16, 1
    %p53 = por %p51, %p52
    %p55 = scmp.ne.s32.totalorder %s38, %s54
    %p56 = scmp.eq.s32.totalorder %s16, 0
    %p57 = por %p55, %p56
    %s58 = ssub.s32 %s17, %s29
    %s59 = ssub.s32 %s18, %s25
    %s60 = sor.u32 %s58, %s59
    %p61 = scmp.eq.s32.totalorder %s60, 0
    %s63 = sadd.s32 %s62, 1
    %s64 = scalar_select %p61, %s62, %s63
    %p67 = pneg %p61
    %p68 = scmp.eq.s32.totalorder %s10, 1
    %p69 = por %p67, %p68
    %p70 = scmp.ne.s32.totalorder %s62, %s65
    %p71 = scmp.eq.s32.totalorder %s10, 0
    %p72 = por %p70, %p71
    %p73 = scmp.ne.s32.totalorder %s62, %s65
    %p74 = scmp.eq.s32.totalorder %s15, 1
    %p75 = por %p73, %p74
    %p76 = scmp.ne.s32.totalorder %s65, %s66
    %p77 = scmp.eq.s32.totalorder %s15, 0
    %p78 = por %p76, %p77
    %p79 = scmp.ne.s32.totalorder %s65, %s66
    %p80 = scmp.eq.s32.totalorder %s16, 1
    %p81 = por %p79, %p80
    %p83 = scmp.ne.s32.totalorder %s66, %s82
    %p84 = scmp.eq.s32.totalorder %s16, 0
    %p85 = por %p83, %p84
    %s87 = sadd.s32 %s86, 1
    %p90 = scmp.eq.s32.totalorder %s10, 1
    %p91 = scmp.ne.s32.totalorder %s86, %s88
    %p92 = scmp.eq.s32.totalorder %s10, 0
    %p93 = por %p91, %p92
    %p94 = scmp.ne.s32.totalorder %s86, %s88
    %p95 = scmp.eq.s32.totalorder %s15, 1
    %p96 = por %p94, %p95
    %p97 = scmp.ne.s32.totalorder %s88, %s89
    %p98 = scmp.eq.s32.totalorder %s15, 0
    %p99 = por %p97, %p98
    %p100 = scmp.ne.s32.totalorder %s88, %s89
    %p101 = scmp.eq.s32.totalorder %s16, 1
    %p102 = por %p100, %p101
    %p104 = scmp.ne.s32.totalorder %s89, %s103
    %p105 = scmp.eq.s32.totalorder %s16, 0
    %p106 = por %p104, %p105
    %s108 = sadd.s32 %s107, 1
    %p111 = scmp.eq.s32.totalorder %s10, 1
    %p112 = scmp.ne.s32.totalorder %s107, %s109
    %p113 = scmp.eq.s32.totalorder %s10, 0
    %p114 = por %p112, %p113
    %p115 = scmp.ne.s32.totalorder %s107, %s109
    %p116 = scmp.eq.s32.totalorder %s15, 1
    %p117 = por %p115, %p116
    %p118 = scmp.ne.s32.totalorder %s109, %s110
    %p119 = scmp.eq.s32.totalorder %s15, 0
    %p120 = por %p118, %p119
    %p121 = scmp.ne.s32.totalorder %s109, %s110
    %p122 = scmp.eq.s32.totalorder %s16, 1
    %p123 = por %p121, %p122
    %p125 = scmp.ne.s32.totalorder %s110, %s124
    %p126 = scmp.eq.s32.totalorder %s16, 0
    %p127 = por %p125, %p126
    %s128 = ssub.s32 %s17, %s29
    %p129 = scmp.eq.s32.totalorder %s128, 0
    %s131 = sadd.s32 %s130, 1
    %s132 = scalar_select %p129, %s130, %s131
    %p135 = pneg %p129
    %p136 = scmp.eq.s32.totalorder %s10, 1
    %p137 = por %p135, %p136
    %p138 = scmp.ne.s32.totalorder %s130, %s133
    %p139 = scmp.eq.s32.totalorder %s10, 0
    %p140 = por %p138, %p139
    %p141 = scmp.ne.s32.totalorder %s130, %s133
    %p142 = scmp.eq.s32.totalorder %s15, 1
    %p143 = por %p141, %p142
    %p144 = scmp.ne.s32.totalorder %s133, %s134
    %p145 = scmp.eq.s32.totalorder %s15, 0
    %p146 = por %p144, %p145
    %p147 = scmp.ne.s32.totalorder %s133, %s134
    %p148 = scmp.eq.s32.totalorder %s16, 1
    %p149 = por %p147, %p148
    %p151 = scmp.ne.s32.totalorder %s134, %s150
    %p152 = scmp.eq.s32.totalorder %s16, 0
    %p153 = por %p151, %p152
    %p154 = scmp.le.s32.totalorder 1, %s10
    %p155 = scmp.lt.s32.totalorder %s10, 3
    %p156 = pnand %p154, %p155
    %p157 = pneg %p156
    // Predicated region
    $region9: #{tpu_custom_call.1} parent=5 // pred_check
      _
    $region10: #{tpu_custom_call.1} parent=5 // pred_check_branch
      %159 = sbr.rel (%p156) target = $region12
    $region11: #{tpu_custom_call.1} parent=5 // pred_region
      %s160 = ssub.s32 %s10, 1
      // Predicated region
      $region13: #{tpu_custom_call.1} parent=11 // pred_check
        %p161 = pneg %p99
      $region14: #{tpu_custom_call.1} parent=11 // pred_check_branch
        %163 = sbr.rel (%p161) target = $region16
      $region15: #{tpu_custom_call.1} parent=11 // pred_region
        _
      $region16: #{tpu_custom_call.1} parent=11 // pred_fallthru
        _
      // Predicated region
      $region17: #{tpu_custom_call.1} parent=11 // pred_check
        %p164 = pneg %p120
      $region18: #{tpu_custom_call.1} parent=11 // pred_check_branch
        %166 = sbr.rel (%p164) target = $region20
      $region19: #{tpu_custom_call.1} parent=11 // pred_region
        _
      $region20: #{tpu_custom_call.1} parent=11 // pred_fallthru
        _
    $region12: #{tpu_custom_call.1} parent=5 // pred_fallthru
      _
    %p167 = scmp.lt.s32.totalorder %s10, 2
    // Predicated region
    $region21: #{tpu_custom_call.1} parent=5 // pred_check
      %p168 = pneg %p167
    $region22: #{tpu_custom_call.1} parent=5 // pred_check_branch
      %170 = sbr.rel (%p168) target = $region24
    $region23: #{tpu_custom_call.1} parent=5 // pred_region
      // Predicated region
      $region25: #{tpu_custom_call.1} parent=23 // pred_check
        %p171 = pneg %p44
      $region26: #{tpu_custom_call.1} parent=23 // pred_check_branch
        %173 = sbr.rel (%p171) target = $region28
      $region27: #{tpu_custom_call.1} parent=23 // pred_region
        %p174 = scmp.lt.s32.totalorder %s17, 1
        %s175 = scalar_select %p174, %s17, 1
        %p176 = scmp.lt.s32.totalorder %s18, 0
        %s177 = scalar_select %p176, %s18, 0
        %s178 = smul.addr %s177, 2
        %s179 = smul.addr %s175, 2
        %s180 = sadd.s32 %s178, %s179
        %s181 = scalar_lea.vmem %s0, %s180
      $region28: #{tpu_custom_call.1} parent=23 // pred_fallthru
        _
      // Predicated region
      $region29: #{tpu_custom_call.1} parent=23 // pred_check
        %p182 = pneg %p72
      $region30: #{tpu_custom_call.1} parent=23 // pred_check_branch
        %184 = sbr.rel (%p182) target = $region32
      $region31: #{tpu_custom_call.1} parent=23 // pred_region
        %p185 = scmp.lt.s32.totalorder %s17, 1
        %s186 = scalar_select %p185, %s17, 1
        %p187 = scmp.lt.s32.totalorder %s18, 0
        %s188 = scalar_select %p187, %s18, 0
        %s189 = smul.addr %s188, 2
        %s190 = smul.addr %s186, 2
        %s191 = sadd.s32 %s189, %s190
        %s192 = scalar_lea.vmem %s1, %s191
      $region32: #{tpu_custom_call.1} parent=23 // pred_fallthru
        _
    $region24: #{tpu_custom_call.1} parent=5 // pred_fallthru
      _
    %p193 = scmp.le.s32.totalorder 1, %s10
    %p194 = scmp.lt.s32.totalorder %s10, 3
    %p195 = pnand %p193, %p194
    %p196 = pneg %p195
    // Predicated region
    $region33: #{tpu_custom_call.1} parent=5 // pred_check
      _
    $region34: #{tpu_custom_call.1} parent=5 // pred_check_branch
      %198 = sbr.rel (%p195) target = $region36
    $region35: #{tpu_custom_call.1} parent=5 // pred_region
      %s199 = ssub.s32 %s10, 1
      %p200 = scmp.lt.s32.totalorder %s19, 1
      %s201 = scalar_select %p200, %s19, 1
      %p202 = scmp.lt.s32.totalorder %s20, 0
      %s203 = scalar_select %p202, %s20, 0
      %s204 = smul.addr %s203, 2
      %s205 = smul.addr %s201, 2
      %s206 = sadd.s32 %s204, %s205
      %s207 = scalar_lea.vmem %s0, %s206
      %p208 = pneg %p50
      %p209 = pneg %p47
      %p210 = scmp.lt.s32.totalorder %s19, 1
      %s211 = scalar_select %p210, %s19, 1
      %p212 = scmp.lt.s32.totalorder %s20, 0
      %s213 = scalar_select %p212, %s20, 0
      %s214 = smul.addr %s213, 2
      %s215 = smul.addr %s211, 2
      %s216 = sadd.s32 %s214, %s215
      %s217 = scalar_lea.vmem %s1, %s216
      %p218 = pneg %p78
      %p219 = pneg %p75
      %p220 = pneg %p99
      %p221 = pneg %p96
      %p222 = pneg %p120
      %p223 = pneg %p117
      %p224 = pneg %p146
      %p225 = pneg %p143
      %p226 = scmp.lt.s32.totalorder %s19, 1
      %s227 = scalar_select %p226, %s19, 1
      %s228 = scalar_lea.vmem %s4, %s227
      %p229 = scmp.lt.s32.totalorder %s19, 1
      %s230 = scalar_select %p229, %s19, 1
      %p231 = scmp.lt.s32.totalorder %s20, 0
      %s232 = scalar_select %p231, %s20, 0
      %s233 = smul.addr %s232, 2
      %s234 = smul.addr %s230, 2
      %s235 = sadd.s32 %s233, %s234
      %s236 = scalar_lea.vmem %s0, %s235
      %p237 = scmp.lt.s32.totalorder %s19, 1
      %s238 = scalar_select %p237, %s19, 1
      %p239 = scmp.lt.s32.totalorder %s20, 0
      %s240 = scalar_select %p239, %s20, 0
      %s241 = smul.addr %s240, 2
      %s242 = smul.addr %s238, 2
      %s243 = sadd.s32 %s241, %s242
      %s244 = scalar_lea.vmem %s1, %s243
      %p245 = scmp.lt.s32.totalorder %s19, 1
      %s246 = scalar_select %p245, %s19, 1
      %s247 = scalar_lea.vmem %s4, %s246
      %p249 = scmp.eq.s32.totalorder %s20, 0
      // Predicated region
      $region37: #{tpu_custom_call.1} parent=35 // pred_check
        %p250 = pneg %p249
      $region38: #{tpu_custom_call.1} parent=35 // pred_check_branch
        %252 = sbr.rel (%p250) target = $region40
      $region39: #{tpu_custom_call.1} parent=35 // pred_region
        %253 = vst [vmem:[#allocation2] sm:$0xff] 0.0
        %254 = vst [vmem:[#allocation2 + $0x8] sm:$0xff] 0.0
        %255 = vst [vmem:[#allocation2 + $0x10] sm:$0xff] 0.0
        %256 = vst [vmem:[#allocation2 + $0x18] sm:$0xff] 0.0
        %257 = vst [vmem:[#allocation2 + $0x20] sm:$0xff] 0.0
        %258 = vst [vmem:[#allocation2 + $0x28] sm:$0xff] 0.0
        %259 = vst [vmem:[#allocation2 + $0x30] sm:$0xff] 0.0
        %260 = vst [vmem:[#allocation2 + $0x38] sm:$0xff] 0.0
        %261 = vst [vmem:[#allocation2 + $0x40] sm:$0xff] 0.0
        %262 = vst [vmem:[#allocation2 + $0x48] sm:$0xff] 0.0
        %263 = vst [vmem:[#allocation2 + $0x50] sm:$0xff] 0.0
        %264 = vst [vmem:[#allocation2 + $0x58] sm:$0xff] 0.0
        %265 = vst [vmem:[#allocation2 + $0x60] sm:$0xff] 0.0
        %266 = vst [vmem:[#allocation2 + $0x68] sm:$0xff] 0.0
        %267 = vst [vmem:[#allocation2 + $0x70] sm:$0xff] 0.0
        %268 = vst [vmem:[#allocation2 + $0x78] sm:$0xff] 0.0
        %269 = vst [vmem:[#allocation2 + $0x80] sm:$0xff] 0.0
        %270 = vst [vmem:[#allocation2 + $0x88] sm:$0xff] 0.0
        %271 = vst [vmem:[#allocation2 + $0x90] sm:$0xff] 0.0
        %272 = vst [vmem:[#allocation2 + $0x98] sm:$0xff] 0.0
        %273 = vst [vmem:[#allocation2 + $0xa0] sm:$0xff] 0.0
        %274 = vst [vmem:[#allocation2 + $0xa8] sm:$0xff] 0.0
        %275 = vst [vmem:[#allocation2 + $0xb0] sm:$0xff] 0.0
        %276 = vst [vmem:[#allocation2 + $0xb8] sm:$0xff] 0.0
        %277 = vst [vmem:[#allocation2 + $0xc0] sm:$0xff] 0.0
        %278 = vst [vmem:[#allocation2 + $0xc8] sm:$0xff] 0.0
        %279 = vst [vmem:[#allocation2 + $0xd0] sm:$0xff] 0.0
        %280 = vst [vmem:[#allocation2 + $0xd8] sm:$0xff] 0.0
        %281 = vst [vmem:[#allocation2 + $0xe0] sm:$0xff] 0.0
        %282 = vst [vmem:[#allocation2 + $0xe8] sm:$0xff] 0.0
        %283 = vst [vmem:[#allocation2 + $0xf0] sm:$0xff] 0.0
        %284 = vst [vmem:[#allocation2 + $0xf8] sm:$0xff] 0.0
        %285 = vst [vmem:[#allocation3] sm:$0xff] 0.0
        %286 = vst [vmem:[#allocation3 + $0x8] sm:$0xff] 0.0
        %287 = vst [vmem:[#allocation3 + $0x10] sm:$0xff] 0.0
        %288 = vst [vmem:[#allocation3 + $0x18] sm:$0xff] 0.0
        %289 = vst [vmem:[#allocation3 + $0x20] sm:$0xff] 0.0
        %290 = vst [vmem:[#allocation3 + $0x28] sm:$0xff] 0.0
        %291 = vst [vmem:[#allocation3 + $0x30] sm:$0xff] 0.0
        %292 = vst [vmem:[#allocation3 + $0x38] sm:$0xff] 0.0
        %293 = vst [vmem:[#allocation3 + $0x40] sm:$0xff] 0.0
        %294 = vst [vmem:[#allocation3 + $0x48] sm:$0xff] 0.0
        %295 = vst [vmem:[#allocation3 + $0x50] sm:$0xff] 0.0
        %296 = vst [vmem:[#allocation3 + $0x58] sm:$0xff] 0.0
        %297 = vst [vmem:[#allocation3 + $0x60] sm:$0xff] 0.0
        %298 = vst [vmem:[#allocation3 + $0x68] sm:$0xff] 0.0
        %299 = vst [vmem:[#allocation3 + $0x70] sm:$0xff] 0.0
        %300 = vst [vmem:[#allocation3 + $0x78] sm:$0xff] 0.0
        %301 = vst [vmem:[#allocation3 + $0x80] sm:$0xff] 0.0
        %302 = vst [vmem:[#allocation3 + $0x88] sm:$0xff] 0.0
        %303 = vst [vmem:[#allocation3 + $0x90] sm:$0xff] 0.0
        %304 = vst [vmem:[#allocation3 + $0x98] sm:$0xff] 0.0
        %305 = vst [vmem:[#allocation3 + $0xa0] sm:$0xff] 0.0
        %306 = vst [vmem:[#allocation3 + $0xa8] sm:$0xff] 0.0
        %307 = vst [vmem:[#allocation3 + $0xb0] sm:$0xff] 0.0
        %308 = vst [vmem:[#allocation3 + $0xb8] sm:$0xff] 0.0
        %309 = vst [vmem:[#allocation3 + $0xc0] sm:$0xff] 0.0
        %310 = vst [vmem:[#allocation3 + $0xc8] sm:$0xff] 0.0
        %311 = vst [vmem:[#allocation3 + $0xd0] sm:$0xff] 0.0
        %312 = vst [vmem:[#allocation3 + $0xd8] sm:$0xff] 0.0
        %313 = vst [vmem:[#allocation3 + $0xe0] sm:$0xff] 0.0
        %314 = vst [vmem:[#allocation3 + $0xe8] sm:$0xff] 0.0
        %315 = vst [vmem:[#allocation3 + $0xf0] sm:$0xff] 0.0
        %316 = vst [vmem:[#allocation3 + $0xf8] sm:$0xff] 0.0
        %317 = vst [vmem:[#allocation4] sm:$0xff] 0.0
        %318 = vst [vmem:[#allocation4 + $0x8] sm:$0xff] 0.0
        %319 = vst [vmem:[#allocation4 + $0x10] sm:$0xff] 0.0
        %320 = vst [vmem:[#allocation4 + $0x18] sm:$0xff] 0.0
        %321 = vst [vmem:[#allocation4 + $0x20] sm:$0xff] 0.0
        %322 = vst [vmem:[#allocation4 + $0x28] sm:$0xff] 0.0
        %323 = vst [vmem:[#allocation4 + $0x30] sm:$0xff] 0.0
        %324 = vst [vmem:[#allocation4 + $0x38] sm:$0xff] 0.0
        %325 = vst [vmem:[#allocation4 + $0x40] sm:$0xff] 0.0
        %326 = vst [vmem:[#allocation4 + $0x48] sm:$0xff] 0.0
        %327 = vst [vmem:[#allocation4 + $0x50] sm:$0xff] 0.0
        %328 = vst [vmem:[#allocation4 + $0x58] sm:$0xff] 0.0
        %329 = vst [vmem:[#allocation4 + $0x60] sm:$0xff] 0.0
        %330 = vst [vmem:[#allocation4 + $0x68] sm:$0xff] 0.0
        %331 = vst [vmem:[#allocation4 + $0x70] sm:$0xff] 0.0
        %332 = vst [vmem:[#allocation4 + $0x78] sm:$0xff] 0.0
        %333 = vst [vmem:[#allocation4 + $0x80] sm:$0xff] 0.0
        %334 = vst [vmem:[#allocation4 + $0x88] sm:$0xff] 0.0
        %335 = vst [vmem:[#allocation4 + $0x90] sm:$0xff] 0.0
        %336 = vst [vmem:[#allocation4 + $0x98] sm:$0xff] 0.0
        %337 = vst [vmem:[#allocation4 + $0xa0] sm:$0xff] 0.0
        %338 = vst [vmem:[#allocation4 + $0xa8] sm:$0xff] 0.0
        %339 = vst [vmem:[#allocation4 + $0xb0] sm:$0xff] 0.0
        %340 = vst [vmem:[#allocation4 + $0xb8] sm:$0xff] 0.0
        %341 = vst [vmem:[#allocation4 + $0xc0] sm:$0xff] 0.0
        %342 = vst [vmem:[#allocation4 + $0xc8] sm:$0xff] 0.0
        %343 = vst [vmem:[#allocation4 + $0xd0] sm:$0xff] 0.0
        %344 = vst [vmem:[#allocation4 + $0xd8] sm:$0xff] 0.0
        %345 = vst [vmem:[#allocation4 + $0xe0] sm:$0xff] 0.0
        %346 = vst [vmem:[#allocation4 + $0xe8] sm:$0xff] 0.0
        %347 = vst [vmem:[#allocation4 + $0xf0] sm:$0xff] 0.0
        %348 = vst [vmem:[#allocation4 + $0xf8] sm:$0xff] 0.0
        %349 = vst [vmem:[#allocation4 + $0x100] sm:$0xff] 0.0
        %350 = vst [vmem:[#allocation4 + $0x108] sm:$0xff] 0.0
        %351 = vst [vmem:[#allocation4 + $0x110] sm:$0xff] 0.0
        %352 = vst [vmem:[#allocation4 + $0x118] sm:$0xff] 0.0
        %353 = vst [vmem:[#allocation4 + $0x120] sm:$0xff] 0.0
        %354 = vst [vmem:[#allocation4 + $0x128] sm:$0xff] 0.0
        %355 = vst [vmem:[#allocation4 + $0x130] sm:$0xff] 0.0
        %356 = vst [vmem:[#allocation4 + $0x138] sm:$0xff] 0.0
        %357 = vst [vmem:[#allocation4 + $0x140] sm:$0xff] 0.0
        %358 = vst [vmem:[#allocation4 + $0x148] sm:$0xff] 0.0
        %359 = vst [vmem:[#allocation4 + $0x150] sm:$0xff] 0.0
        %360 = vst [vmem:[#allocation4 + $0x158] sm:$0xff] 0.0
        %361 = vst [vmem:[#allocation4 + $0x160] sm:$0xff] 0.0
        %362 = vst [vmem:[#allocation4 + $0x168] sm:$0xff] 0.0
        %363 = vst [vmem:[#allocation4 + $0x170] sm:$0xff] 0.0
        %364 = vst [vmem:[#allocation4 + $0x178] sm:$0xff] 0.0
        %365 = vst [vmem:[#allocation4 + $0x180] sm:$0xff] 0.0
        %366 = vst [vmem:[#allocation4 + $0x188] sm:$0xff] 0.0
        %367 = vst [vmem:[#allocation4 + $0x190] sm:$0xff] 0.0
        %368 = vst [vmem:[#allocation4 + $0x198] sm:$0xff] 0.0
        %369 = vst [vmem:[#allocation4 + $0x1a0] sm:$0xff] 0.0
        %370 = vst [vmem:[#allocation4 + $0x1a8] sm:$0xff] 0.0
        %371 = vst [vmem:[#allocation4 + $0x1b0] sm:$0xff] 0.0
        %372 = vst [vmem:[#allocation4 + $0x1b8] sm:$0xff] 0.0
        %373 = vst [vmem:[#allocation4 + $0x1c0] sm:$0xff] 0.0
        %374 = vst [vmem:[#allocation4 + $0x1c8] sm:$0xff] 0.0
        %375 = vst [vmem:[#allocation4 + $0x1d0] sm:$0xff] 0.0
        %376 = vst [vmem:[#allocation4 + $0x1d8] sm:$0xff] 0.0
        %377 = vst [vmem:[#allocation4 + $0x1e0] sm:$0xff] 0.0
        %378 = vst [vmem:[#allocation4 + $0x1e8] sm:$0xff] 0.0
        %379 = vst [vmem:[#allocation4 + $0x1f0] sm:$0xff] 0.0
        %380 = vst [vmem:[#allocation4 + $0x1f8] sm:$0xff] 0.0
      $region40: #{tpu_custom_call.1} parent=35 // pred_fallthru
        _
      %v381 = vld [vmem:[%s2] sm:$0xff]
      %v382 = vld [vmem:[%s2 + $0x8] sm:$0xff]
      %v383 = vld [vmem:[%s2 + $0x10] sm:$0xff]
      %v384 = vld [vmem:[%s2 + $0x18] sm:$0xff]
      %v385 = vld [vmem:[%s2 + $0x20] sm:$0xff]
      %v386 = vld [vmem:[%s2 + $0x28] sm:$0xff]
      %v387 = vld [vmem:[%s2 + $0x30] sm:$0xff]
      %v388 = vld [vmem:[%s2 + $0x38] sm:$0xff]
      %v389 = vld [vmem:[%s2 + $0x40] sm:$0xff]
      %v390 = vld [vmem:[%s2 + $0x48] sm:$0xff]
      %v391 = vld [vmem:[%s2 + $0x50] sm:$0xff]
      %v392 = vld [vmem:[%s2 + $0x58] sm:$0xff]
      %v393 = vld [vmem:[%s2 + $0x60] sm:$0xff]
      %v394 = vld [vmem:[%s2 + $0x68] sm:$0xff]
      %v395 = vld [vmem:[%s2 + $0x70] sm:$0xff]
      %v396 = vld [vmem:[%s2 + $0x78] sm:$0xff]
      %v397 = vld [vmem:[%s2 + $0x80] sm:$0xff]
      %v398 = vld [vmem:[%s2 + $0x88] sm:$0xff]
      %v399 = vld [vmem:[%s2 + $0x90] sm:$0xff]
      %v400 = vld [vmem:[%s2 + $0x98] sm:$0xff]
      %v401 = vld [vmem:[%s2 + $0xa0] sm:$0xff]
      %v402 = vld [vmem:[%s2 + $0xa8] sm:$0xff]
      %v403 = vld [vmem:[%s2 + $0xb0] sm:$0xff]
      %v404 = vld [vmem:[%s2 + $0xb8] sm:$0xff]
      %v405 = vld [vmem:[%s2 + $0xc0] sm:$0xff]
      %v406 = vld [vmem:[%s2 + $0xc8] sm:$0xff]
      %v407 = vld [vmem:[%s2 + $0xd0] sm:$0xff]
      %v408 = vld [vmem:[%s2 + $0xd8] sm:$0xff]
      %v409 = vld [vmem:[%s2 + $0xe0] sm:$0xff]
      %v410 = vld [vmem:[%s2 + $0xe8] sm:$0xff]
      %v411 = vld [vmem:[%s2 + $0xf0] sm:$0xff]
      %v412 = vld [vmem:[%s2 + $0xf8] sm:$0xff]
      %v413 = vld [vmem:[%s3] sm:$0xf]
      %v414 = vld [vmem:[%s3 + $0x4] sm:$0xf]
      %v415 = vld [vmem:[%s3 + $0x8] sm:$0xf]
      %v416 = vld [vmem:[%s3 + $0xc] sm:$0xf]
      %v417 = vld [vmem:[%s3 + $0x10] sm:$0xf]
      %v418 = vld [vmem:[%s3 + $0x14] sm:$0xf]
      %v419 = vld [vmem:[%s3 + $0x18] sm:$0xf]
      %v420 = vld [vmem:[%s3 + $0x1c] sm:$0xf]
      %v421 = vld [vmem:[%s3 + $0x20] sm:$0xf]
      %v422 = vld [vmem:[%s3 + $0x24] sm:$0xf]
      %v423 = vld [vmem:[%s3 + $0x28] sm:$0xf]
      %v424 = vld [vmem:[%s3 + $0x2c] sm:$0xf]
      %v425 = vld [vmem:[%s3 + $0x30] sm:$0xf]
      %v426 = vld [vmem:[%s3 + $0x34] sm:$0xf]
      %v427 = vld [vmem:[%s3 + $0x38] sm:$0xf]
      %v428 = vld [vmem:[%s3 + $0x3c] sm:$0xf]
      %v429 = vld [vmem:[%s3 + $0x40] sm:$0xf]
      %v430 = vld [vmem:[%s3 + $0x44] sm:$0xf]
      %v431 = vld [vmem:[%s3 + $0x48] sm:$0xf]
      %v432 = vld [vmem:[%s3 + $0x4c] sm:$0xf]
      %v433 = vld [vmem:[%s3 + $0x50] sm:$0xf]
      %v434 = vld [vmem:[%s3 + $0x54] sm:$0xf]
      %v435 = vld [vmem:[%s3 + $0x58] sm:$0xf]
      %v436 = vld [vmem:[%s3 + $0x5c] sm:$0xf]
      %v437 = vld [vmem:[%s3 + $0x60] sm:$0xf]
      %v438 = vld [vmem:[%s3 + $0x64] sm:$0xf]
      %v439 = vld [vmem:[%s3 + $0x68] sm:$0xf]
      %v440 = vld [vmem:[%s3 + $0x6c] sm:$0xf]
      %v441 = vld [vmem:[%s3 + $0x70] sm:$0xf]
      %v442 = vld [vmem:[%s3 + $0x74] sm:$0xf]
      %v443 = vld [vmem:[%s3 + $0x78] sm:$0xf]
      %v444 = vld [vmem:[%s3 + $0x7c] sm:$0xf]
      %v445 = vld [vmem:[%s236] sm:$0x3]
      %v446 = vmul.f32 %v445, 255.0
      %v448 = vlaneseq
      %v449 = vshrl.u32 %v448, 7
      %v450 = vsub.s32 0, %v449
      %v451 = vrot.slane %v446, %v450
      %v452 = vlaneseq
      %v453 = vshrl.u32 %v452, 7
      %v454 = vsub.s32 1, %v453
      %v455 = vrot.slane %v446, %v454
      %459 = vset.pattern.permute.xlu0 0
      %460 = vperm.xlu0 %459, %v381
      %v461 = vpop.permute.xlu0 %460
      %464 = vset.pattern.permute.xlu0 0
      %465 = vperm.xlu0 %464, %v382
      %v466 = vpop.permute.xlu0 %465
      %469 = vset.pattern.permute.xlu0 0
      %470 = vperm.xlu0 %469, %v383
      %v471 = vpop.permute.xlu0 %470
      %474 = vset.pattern.permute.xlu0 0
      %475 = vperm.xlu0 %474, %v384
      %v476 = vpop.permute.xlu0 %475
      %479 = vset.pattern.permute.xlu0 0
      %480 = vperm.xlu0 %479, %v385
      %v481 = vpop.permute.xlu0 %480
      %484 = vset.pattern.permute.xlu0 0
      %485 = vperm.xlu0 %484, %v386
      %v486 = vpop.permute.xlu0 %485
      %489 = vset.pattern.permute.xlu0 0
      %490 = vperm.xlu0 %489, %v387
      %v491 = vpop.permute.xlu0 %490
      %494 = vset.pattern.permute.xlu0 0
      %495 = vperm.xlu0 %494, %v388
      %v496 = vpop.permute.xlu0 %495
      %499 = vset.pattern.permute.xlu0 0
      %500 = vperm.xlu0 %499, %v389
      %v501 = vpop.permute.xlu0 %500
      %504 = vset.pattern.permute.xlu0 0
      %505 = vperm.xlu0 %504, %v390
      %v506 = vpop.permute.xlu0 %505
      %509 = vset.pattern.permute.xlu0 0
      %510 = vperm.xlu0 %509, %v391
      %v511 = vpop.permute.xlu0 %510
      %514 = vset.pattern.permute.xlu0 0
      %515 = vperm.xlu0 %514, %v392
      %v516 = vpop.permute.xlu0 %515
      %519 = vset.pattern.permute.xlu0 0
      %520 = vperm.xlu0 %519, %v393
      %v521 = vpop.permute.xlu0 %520
      %524 = vset.pattern.permute.xlu0 0
      %525 = vperm.xlu0 %524, %v394
      %v526 = vpop.permute.xlu0 %525
      %529 = vset.pattern.permute.xlu0 0
      %530 = vperm.xlu0 %529, %v395
      %v531 = vpop.permute.xlu0 %530
      %534 = vset.pattern.permute.xlu0 0
      %535 = vperm.xlu0 %534, %v396
      %v536 = vpop.permute.xlu0 %535
      %539 = vset.pattern.permute.xlu0 0
      %540 = vperm.xlu0 %539, %v397
      %v541 = vpop.permute.xlu0 %540
      %544 = vset.pattern.permute.xlu0 0
      %545 = vperm.xlu0 %544, %v398
      %v546 = vpop.permute.xlu0 %545
      %549 = vset.pattern.permute.xlu0 0
      %550 = vperm.xlu0 %549, %v399
      %v551 = vpop.permute.xlu0 %550
      %554 = vset.pattern.permute.xlu0 0
      %555 = vperm.xlu0 %554, %v400
      %v556 = vpop.permute.xlu0 %555
      %559 = vset.pattern.permute.xlu0 0
      %560 = vperm.xlu0 %559, %v401
      %v561 = vpop.permute.xlu0 %560
      %564 = vset.pattern.permute.xlu0 0
      %565 = vperm.xlu0 %564, %v402
      %v566 = vpop.permute.xlu0 %565
      %569 = vset.pattern.permute.xlu0 0
      %570 = vperm.xlu0 %569, %v403
      %v571 = vpop.permute.xlu0 %570
      %574 = vset.pattern.permute.xlu0 0
      %575 = vperm.xlu0 %574, %v404
      %v576 = vpop.permute.xlu0 %575
      %579 = vset.pattern.permute.xlu0 0
      %580 = vperm.xlu0 %579, %v405
      %v581 = vpop.permute.xlu0 %580
      %584 = vset.pattern.permute.xlu0 0
      %585 = vperm.xlu0 %584, %v406
      %v586 = vpop.permute.xlu0 %585
      %589 = vset.pattern.permute.xlu0 0
      %590 = vperm.xlu0 %589, %v407
      %v591 = vpop.permute.xlu0 %590
      %594 = vset.pattern.permute.xlu0 0
      %595 = vperm.xlu0 %594, %v408
      %v596 = vpop.permute.xlu0 %595
      %599 = vset.pattern.permute.xlu0 0
      %600 = vperm.xlu0 %599, %v409
      %v601 = vpop.permute.xlu0 %600
      %604 = vset.pattern.permute.xlu0 0
      %605 = vperm.xlu0 %604, %v410
      %v606 = vpop.permute.xlu0 %605
      %609 = vset.pattern.permute.xlu0 0
      %610 = vperm.xlu0 %609, %v411
      %v611 = vpop.permute.xlu0 %610
      %614 = vset.pattern.permute.xlu0 0
      %615 = vperm.xlu0 %614, %v412
      %v616 = vpop.permute.xlu0 %615
      %v618 = vsub.f32 %v451, %v461
      %v619 = vsub.f32 %v455, %v461
      %v620 = vsub.f32 %v451, %v466
      %v621 = vsub.f32 %v455, %v466
      %v622 = vsub.f32 %v451, %v471
      %v623 = vsub.f32 %v455, %v471
      %v624 = vsub.f32 %v451, %v476
      %v625 = vsub.f32 %v455, %v476
      %v626 = vsub.f32 %v451, %v481
      %v627 = vsub.f32 %v455, %v481
      %v628 = vsub.f32 %v451, %v486
      %v629 = vsub.f32 %v455, %v486
      %v630 = vsub.f32 %v451, %v491
      %v631 = vsub.f32 %v455, %v491
      %v632 = vsub.f32 %v451, %v496
      %v633 = vsub.f32 %v455, %v496
      %v634 = vsub.f32 %v451, %v501
      %v635 = vsub.f32 %v455, %v501
      %v636 = vsub.f32 %v451, %v506
      %v637 = vsub.f32 %v455, %v506
      %v638 = vsub.f32 %v451, %v511
      %v639 = vsub.f32 %v455, %v511
      %v640 = vsub.f32 %v451, %v516
      %v641 = vsub.f32 %v455, %v516
      %v642 = vsub.f32 %v451, %v521
      %v643 = vsub.f32 %v455, %v521
      %v644 = vsub.f32 %v451, %v526
      %v645 = vsub.f32 %v455, %v526
      %v646 = vsub.f32 %v451, %v531
      %v647 = vsub.f32 %v455, %v531
      %v648 = vsub.f32 %v451, %v536
      %v649 = vsub.f32 %v455, %v536
      %v650 = vsub.f32 %v451, %v541
      %v651 = vsub.f32 %v455, %v541
      %v652 = vsub.f32 %v451, %v546
      %v653 = vsub.f32 %v455, %v546
      %v654 = vsub.f32 %v451, %v551
      %v655 = vsub.f32 %v455, %v551
      %v656 = vsub.f32 %v451, %v556
      %v657 = vsub.f32 %v455, %v556
      %v658 = vsub.f32 %v451, %v561
      %v659 = vsub.f32 %v455, %v561
      %v660 = vsub.f32 %v451, %v566
      %v661 = vsub.f32 %v455, %v566
      %v662 = vsub.f32 %v451, %v571
      %v663 = vsub.f32 %v455, %v571
      %v664 = vsub.f32 %v451, %v576
      %v665 = vsub.f32 %v455, %v576
      %v666 = vsub.f32 %v451, %v581
      %v667 = vsub.f32 %v455, %v581
      %v668 = vsub.f32 %v451, %v586
      %v669 = vsub.f32 %v455, %v586
      %v670 = vsub.f32 %v451, %v591
      %v671 = vsub.f32 %v455, %v591
      %v672 = vsub.f32 %v451, %v596
      %v673 = vsub.f32 %v455, %v596
      %v674 = vsub.f32 %v451, %v601
      %v675 = vsub.f32 %v455, %v601
      %v676 = vsub.f32 %v451, %v606
      %v677 = vsub.f32 %v455, %v606
      %v678 = vsub.f32 %v451, %v611
      %v679 = vsub.f32 %v455, %v611
      %v680 = vsub.f32 %v451, %v616
      %v681 = vsub.f32 %v455, %v616
      %v682 = vmul.f32 %v618, %v618
      %v683 = vmul.f32 %v619, %v619
      %v684 = vmul.f32 %v620, %v620
      %v685 = vmul.f32 %v621, %v621
      %v686 = vmul.f32 %v622, %v622
      %v687 = vmul.f32 %v623, %v623
      %v688 = vmul.f32 %v624, %v624
      %v689 = vmul.f32 %v625, %v625
      %v690 = vmul.f32 %v626, %v626
      %v691 = vmul.f32 %v627, %v627
      %v692 = vmul.f32 %v628, %v628
      %v693 = vmul.f32 %v629, %v629
      %v694 = vmul.f32 %v630, %v630
      %v695 = vmul.f32 %v631, %v631
      %v696 = vmul.f32 %v632, %v632
      %v697 = vmul.f32 %v633, %v633
      %v698 = vmul.f32 %v634, %v634
      %v699 = vmul.f32 %v635, %v635
      %v700 = vmul.f32 %v636, %v636
      %v701 = vmul.f32 %v637, %v637
      %v702 = vmul.f32 %v638, %v638
      %v703 = vmul.f32 %v639, %v639
      %v704 = vmul.f32 %v640, %v640
      %v705 = vmul.f32 %v641, %v641
      %v706 = vmul.f32 %v642, %v642
      %v707 = vmul.f32 %v643, %v643
      %v708 = vmul.f32 %v644, %v644
      %v709 = vmul.f32 %v645, %v645
      %v710 = vmul.f32 %v646, %v646
      %v711 = vmul.f32 %v647, %v647
      %v712 = vmul.f32 %v648, %v648
      %v713 = vmul.f32 %v649, %v649
      %v714 = vmul.f32 %v650, %v650
      %v715 = vmul.f32 %v651, %v651
      %v716 = vmul.f32 %v652, %v652
      %v717 = vmul.f32 %v653, %v653
      %v718 = vmul.f32 %v654, %v654
      %v719 = vmul.f32 %v655, %v655
      %v720 = vmul.f32 %v656, %v656
      %v721 = vmul.f32 %v657, %v657
      %v722 = vmul.f32 %v658, %v658
      %v723 = vmul.f32 %v659, %v659
      %v724 = vmul.f32 %v660, %v660
      %v725 = vmul.f32 %v661, %v661
      %v726 = vmul.f32 %v662, %v662
      %v727 = vmul.f32 %v663, %v663
      %v728 = vmul.f32 %v664, %v664
      %v729 = vmul.f32 %v665, %v665
      %v730 = vmul.f32 %v666, %v666
      %v731 = vmul.f32 %v667, %v667
      %v732 = vmul.f32 %v668, %v668
      %v733 = vmul.f32 %v669, %v669
      %v734 = vmul.f32 %v670, %v670
      %v735 = vmul.f32 %v671, %v671
      %v736 = vmul.f32 %v672, %v672
      %v737 = vmul.f32 %v673, %v673
      %v738 = vmul.f32 %v674, %v674
      %v739 = vmul.f32 %v675, %v675
      %v740 = vmul.f32 %v676, %v676
      %v741 = vmul.f32 %v677, %v677
      %v742 = vmul.f32 %v678, %v678
      %v743 = vmul.f32 %v679, %v679
      %v744 = vmul.f32 %v680, %v680
      %v745 = vmul.f32 %v681, %v681
      %v746 = vmul.f32 %v682, -50.0
      %v747 = vmul.f32 %v683, -50.0
      %v748 = vmul.f32 %v684, -50.0
      %v749 = vmul.f32 %v685, -50.0
      %v750 = vmul.f32 %v686, -50.0
      %v751 = vmul.f32 %v687, -50.0
      %v752 = vmul.f32 %v688, -50.0
      %v753 = vmul.f32 %v689, -50.0
      %v754 = vmul.f32 %v690, -50.0
      %v755 = vmul.f32 %v691, -50.0
      %v756 = vmul.f32 %v692, -50.0
      %v757 = vmul.f32 %v693, -50.0
      %v758 = vmul.f32 %v694, -50.0
      %v759 = vmul.f32 %v695, -50.0
      %v760 = vmul.f32 %v696, -50.0
      %v761 = vmul.f32 %v697, -50.0
      %v762 = vmul.f32 %v698, -50.0
      %v763 = vmul.f32 %v699, -50.0
      %v764 = vmul.f32 %v700, -50.0
      %v765 = vmul.f32 %v701, -50.0
      %v766 = vmul.f32 %v702, -50.0
      %v767 = vmul.f32 %v703, -50.0
      %v768 = vmul.f32 %v704, -50.0
      %v769 = vmul.f32 %v705, -50.0
      %v770 = vmul.f32 %v706, -50.0
      %v771 = vmul.f32 %v707, -50.0
      %v772 = vmul.f32 %v708, -50.0
      %v773 = vmul.f32 %v709, -50.0
      %v774 = vmul.f32 %v710, -50.0
      %v775 = vmul.f32 %v711, -50.0
      %v776 = vmul.f32 %v712, -50.0
      %v777 = vmul.f32 %v713, -50.0
      %v778 = vmul.f32 %v714, -50.0
      %v779 = vmul.f32 %v715, -50.0
      %v780 = vmul.f32 %v716, -50.0
      %v781 = vmul.f32 %v717, -50.0
      %v782 = vmul.f32 %v718, -50.0
      %v783 = vmul.f32 %v719, -50.0
      %v784 = vmul.f32 %v720, -50.0
      %v785 = vmul.f32 %v721, -50.0
      %v786 = vmul.f32 %v722, -50.0
      %v787 = vmul.f32 %v723, -50.0
      %v788 = vmul.f32 %v724, -50.0
      %v789 = vmul.f32 %v725, -50.0
      %v790 = vmul.f32 %v726, -50.0
      %v791 = vmul.f32 %v727, -50.0
      %v792 = vmul.f32 %v728, -50.0
      %v793 = vmul.f32 %v729, -50.0
      %v794 = vmul.f32 %v730, -50.0
      %v795 = vmul.f32 %v731, -50.0
      %v796 = vmul.f32 %v732, -50.0
      %v797 = vmul.f32 %v733, -50.0
      %v798 = vmul.f32 %v734, -50.0
      %v799 = vmul.f32 %v735, -50.0
      %v800 = vmul.f32 %v736, -50.0
      %v801 = vmul.f32 %v737, -50.0
      %v802 = vmul.f32 %v738, -50.0
      %v803 = vmul.f32 %v739, -50.0
      %v804 = vmul.f32 %v740, -50.0
      %v805 = vmul.f32 %v741, -50.0
      %v806 = vmul.f32 %v742, -50.0
      %v807 = vmul.f32 %v743, -50.0
      %v808 = vmul.f32 %v744, -50.0
      %v809 = vmul.f32 %v745, -50.0
      %v810 = vmul.f32 %v746, 1.442695
      %v811 = vpow.pop %v810
      %v812 = vmul.f32 %v747, 1.442695
      %v813 = vpow.pop %v812
      %v814 = vmul.f32 %v748, 1.442695
      %v815 = vpow.pop %v814
      %v816 = vmul.f32 %v749, 1.442695
      %v817 = vpow.pop %v816
      %v818 = vmul.f32 %v750, 1.442695
      %v819 = vpow.pop %v818
      %v820 = vmul.f32 %v751, 1.442695
      %v821 = vpow.pop %v820
      %v822 = vmul.f32 %v752, 1.442695
      %v823 = vpow.pop %v822
      %v824 = vmul.f32 %v753, 1.442695
      %v825 = vpow.pop %v824
      %v826 = vmul.f32 %v754, 1.442695
      %v827 = vpow.pop %v826
      %v828 = vmul.f32 %v755, 1.442695
      %v829 = vpow.pop %v828
      %v830 = vmul.f32 %v756, 1.442695
      %v831 = vpow.pop %v830
      %v832 = vmul.f32 %v757, 1.442695
      %v833 = vpow.pop %v832
      %v834 = vmul.f32 %v758, 1.442695
      %v835 = vpow.pop %v834
      %v836 = vmul.f32 %v759, 1.442695
      %v837 = vpow.pop %v836
      %v838 = vmul.f32 %v760, 1.442695
      %v839 = vpow.pop %v838
      %v840 = vmul.f32 %v761, 1.442695
      %v841 = vpow.pop %v840
      %v842 = vmul.f32 %v762, 1.442695
      %v843 = vpow.pop %v842
      %v844 = vmul.f32 %v763, 1.442695
      %v845 = vpow.pop %v844
      %v846 = vmul.f32 %v764, 1.442695
      %v847 = vpow.pop %v846
      %v848 = vmul.f32 %v765, 1.442695
      %v849 = vpow.pop %v848
      %v850 = vmul.f32 %v766, 1.442695
      %v851 = vpow.pop %v850
      %v852 = vmul.f32 %v767, 1.442695
      %v853 = vpow.pop %v852
      %v854 = vmul.f32 %v768, 1.442695
      %v855 = vpow.pop %v854
      %v856 = vmul.f32 %v769, 1.442695
      %v857 = vpow.pop %v856
      %v858 = vmul.f32 %v770, 1.442695
      %v859 = vpow.pop %v858
      %v860 = vmul.f32 %v771, 1.442695
      %v861 = vpow.pop %v860
      %v862 = vmul.f32 %v772, 1.442695
      %v863 = vpow.pop %v862
      %v864 = vmul.f32 %v773, 1.442695
      %v865 = vpow.pop %v864
      %v866 = vmul.f32 %v774, 1.442695
      %v867 = vpow.pop %v866
      %v868 = vmul.f32 %v775, 1.442695
      %v869 = vpow.pop %v868
      %v870 = vmul.f32 %v776, 1.442695
      %v871 = vpow.pop %v870
      %v872 = vmul.f32 %v777, 1.442695
      %v873 = vpow.pop %v872
      %v874 = vmul.f32 %v778, 1.442695
      %v875 = vpow.pop %v874
      %v876 = vmul.f32 %v779, 1.442695
      %v877 = vpow.pop %v876
      %v878 = vmul.f32 %v780, 1.442695
      %v879 = vpow.pop %v878
      %v880 = vmul.f32 %v781, 1.442695
      %v881 = vpow.pop %v880
      %v882 = vmul.f32 %v782, 1.442695
      %v883 = vpow.pop %v882
      %v884 = vmul.f32 %v783, 1.442695
      %v885 = vpow.pop %v884
      %v886 = vmul.f32 %v784, 1.442695
      %v887 = vpow.pop %v886
      %v888 = vmul.f32 %v785, 1.442695
      %v889 = vpow.pop %v888
      %v890 = vmul.f32 %v786, 1.442695
      %v891 = vpow.pop %v890
      %v892 = vmul.f32 %v787, 1.442695
      %v893 = vpow.pop %v892
      %v894 = vmul.f32 %v788, 1.442695
      %v895 = vpow.pop %v894
      %v896 = vmul.f32 %v789, 1.442695
      %v897 = vpow.pop %v896
      %v898 = vmul.f32 %v790, 1.442695
      %v899 = vpow.pop %v898
      %v900 = vmul.f32 %v791, 1.442695
      %v901 = vpow.pop %v900
      %v902 = vmul.f32 %v792, 1.442695
      %v903 = vpow.pop %v902
      %v904 = vmul.f32 %v793, 1.442695
      %v905 = vpow.pop %v904
      %v906 = vmul.f32 %v794, 1.442695
      %v907 = vpow.pop %v906
      %v908 = vmul.f32 %v795, 1.442695
      %v909 = vpow.pop %v908
      %v910 = vmul.f32 %v796, 1.442695
      %v911 = vpow.pop %v910
      %v912 = vmul.f32 %v797, 1.442695
      %v913 = vpow.pop %v912
      %v914 = vmul.f32 %v798, 1.442695
      %v915 = vpow.pop %v914
      %v916 = vmul.f32 %v799, 1.442695
      %v917 = vpow.pop %v916
      %v918 = vmul.f32 %v800, 1.442695
      %v919 = vpow.pop %v918
      %v920 = vmul.f32 %v801, 1.442695
      %v921 = vpow.pop %v920
      %v922 = vmul.f32 %v802, 1.442695
      %v923 = vpow.pop %v922
      %v924 = vmul.f32 %v803, 1.442695
      %v925 = vpow.pop %v924
      %v926 = vmul.f32 %v804, 1.442695
      %v927 = vpow.pop %v926
      %v928 = vmul.f32 %v805, 1.442695
      %v929 = vpow.pop %v928
      %v930 = vmul.f32 %v806, 1.442695
      %v931 = vpow.pop %v930
      %v932 = vmul.f32 %v807, 1.442695
      %v933 = vpow.pop %v932
      %v934 = vmul.f32 %v808, 1.442695
      %v935 = vpow.pop %v934
      %v936 = vmul.f32 %v809, 1.442695
      %v937 = vpow.pop %v936
      %v938 = vpack.c.bf16 %v815, %v811
      %v939 = vpack.c.bf16 %v817, %v813
      %v940 = vpack.c.bf16 %v823, %v819
      %v941 = vpack.c.bf16 %v825, %v821
      %v942 = vpack.c.bf16 %v831, %v827
      %v943 = vpack.c.bf16 %v833, %v829
      %v944 = vpack.c.bf16 %v839, %v835
      %v945 = vpack.c.bf16 %v841, %v837
      %v946 = vpack.c.bf16 %v847, %v843
      %v947 = vpack.c.bf16 %v849, %v845
      %v948 = vpack.c.bf16 %v855, %v851
      %v949 = vpack.c.bf16 %v857, %v853
      %v950 = vpack.c.bf16 %v863, %v859
      %v951 = vpack.c.bf16 %v865, %v861
      %v952 = vpack.c.bf16 %v871, %v867
      %v953 = vpack.c.bf16 %v873, %v869
      %v954 = vpack.c.bf16 %v879, %v875
      %v955 = vpack.c.bf16 %v881, %v877
      %v956 = vpack.c.bf16 %v887, %v883
      %v957 = vpack.c.bf16 %v889, %v885
      %v958 = vpack.c.bf16 %v895, %v891
      %v959 = vpack.c.bf16 %v897, %v893
      %v960 = vpack.c.bf16 %v903, %v899
      %v961 = vpack.c.bf16 %v905, %v901
      %v962 = vpack.c.bf16 %v911, %v907
      %v963 = vpack.c.bf16 %v913, %v909
      %v964 = vpack.c.bf16 %v919, %v915
      %v965 = vpack.c.bf16 %v921, %v917
      %v966 = vpack.c.bf16 %v927, %v923
      %v967 = vpack.c.bf16 %v929, %v925
      %v968 = vpack.c.bf16 %v935, %v931
      %v969 = vpack.c.bf16 %v937, %v933
      %v970 = vld [vmem:[%s244] sm:$0x3]
      %v971 = vmul.f32 %v970, 255.0
      %v973 = vlaneseq
      %v974 = vshrl.u32 %v973, 7
      %v975 = vsub.s32 0, %v974
      %v976 = vrot.slane %v971, %v975
      %v977 = vlaneseq
      %v978 = vshrl.u32 %v977, 7
      %v979 = vsub.s32 1, %v978
      %v980 = vrot.slane %v971, %v979
      %v983 = vsub.f32 %v976, %v461
      %v984 = vsub.f32 %v980, %v461
      %v985 = vsub.f32 %v976, %v466
      %v986 = vsub.f32 %v980, %v466
      %v987 = vsub.f32 %v976, %v471
      %v988 = vsub.f32 %v980, %v471
      %v989 = vsub.f32 %v976, %v476
      %v990 = vsub.f32 %v980, %v476
      %v991 = vsub.f32 %v976, %v481
      %v992 = vsub.f32 %v980, %v481
      %v993 = vsub.f32 %v976, %v486
      %v994 = vsub.f32 %v980, %v486
      %v995 = vsub.f32 %v976, %v491
      %v996 = vsub.f32 %v980, %v491
      %v997 = vsub.f32 %v976, %v496
      %v998 = vsub.f32 %v980, %v496
      %v999 = vsub.f32 %v976, %v501
      %v1000 = vsub.f32 %v980, %v501
      %v1001 = vsub.f32 %v976, %v506
      %v1002 = vsub.f32 %v980, %v506
      %v1003 = vsub.f32 %v976, %v511
      %v1004 = vsub.f32 %v980, %v511
      %v1005 = vsub.f32 %v976, %v516
      %v1006 = vsub.f32 %v980, %v516
      %v1007 = vsub.f32 %v976, %v521
      %v1008 = vsub.f32 %v980, %v521
      %v1009 = vsub.f32 %v976, %v526
      %v1010 = vsub.f32 %v980, %v526
      %v1011 = vsub.f32 %v976, %v531
      %v1012 = vsub.f32 %v980, %v531
      %v1013 = vsub.f32 %v976, %v536
      %v1014 = vsub.f32 %v980, %v536
      %v1015 = vsub.f32 %v976, %v541
      %v1016 = vsub.f32 %v980, %v541
      %v1017 = vsub.f32 %v976, %v546
      %v1018 = vsub.f32 %v980, %v546
      %v1019 = vsub.f32 %v976, %v551
      %v1020 = vsub.f32 %v980, %v551
      %v1021 = vsub.f32 %v976, %v556
      %v1022 = vsub.f32 %v980, %v556
      %v1023 = vsub.f32 %v976, %v561
      %v1024 = vsub.f32 %v980, %v561
      %v1025 = vsub.f32 %v976, %v566
      %v1026 = vsub.f32 %v980, %v566
      %v1027 = vsub.f32 %v976, %v571
      %v1028 = vsub.f32 %v980, %v571
      %v1029 = vsub.f32 %v976, %v576
      %v1030 = vsub.f32 %v980, %v576
      %v1031 = vsub.f32 %v976, %v581
      %v1032 = vsub.f32 %v980, %v581
      %v1033 = vsub.f32 %v976, %v586
      %v1034 = vsub.f32 %v980, %v586
      %v1035 = vsub.f32 %v976, %v591
      %v1036 = vsub.f32 %v980, %v591
      %v1037 = vsub.f32 %v976, %v596
      %v1038 = vsub.f32 %v980, %v596
      %v1039 = vsub.f32 %v976, %v601
      %v1040 = vsub.f32 %v980, %v601
      %v1041 = vsub.f32 %v976, %v606
      %v1042 = vsub.f32 %v980, %v606
      %v1043 = vsub.f32 %v976, %v611
      %v1044 = vsub.f32 %v980, %v611
      %v1045 = vsub.f32 %v976, %v616
      %v1046 = vsub.f32 %v980, %v616
      %v1047 = vmul.f32 %v983, %v983
      %v1048 = vmul.f32 %v984, %v984
      %v1049 = vmul.f32 %v985, %v985
      %v1050 = vmul.f32 %v986, %v986
      %v1051 = vmul.f32 %v987, %v987
      %v1052 = vmul.f32 %v988, %v988
      %v1053 = vmul.f32 %v989, %v989
      %v1054 = vmul.f32 %v990, %v990
      %v1055 = vmul.f32 %v991, %v991
      %v1056 = vmul.f32 %v992, %v992
      %v1057 = vmul.f32 %v993, %v993
      %v1058 = vmul.f32 %v994, %v994
      %v1059 = vmul.f32 %v995, %v995
      %v1060 = vmul.f32 %v996, %v996
      %v1061 = vmul.f32 %v997, %v997
      %v1062 = vmul.f32 %v998, %v998
      %v1063 = vmul.f32 %v999, %v999
      %v1064 = vmul.f32 %v1000, %v1000
      %v1065 = vmul.f32 %v1001, %v1001
      %v1066 = vmul.f32 %v1002, %v1002
      %v1067 = vmul.f32 %v1003, %v1003
      %v1068 = vmul.f32 %v1004, %v1004
      %v1069 = vmul.f32 %v1005, %v1005
      %v1070 = vmul.f32 %v1006, %v1006
      %v1071 = vmul.f32 %v1007, %v1007
      %v1072 = vmul.f32 %v1008, %v1008
      %v1073 = vmul.f32 %v1009, %v1009
      %v1074 = vmul.f32 %v1010, %v1010
      %v1075 = vmul.f32 %v1011, %v1011
      %v1076 = vmul.f32 %v1012, %v1012
      %v1077 = vmul.f32 %v1013, %v1013
      %v1078 = vmul.f32 %v1014, %v1014
      %v1079 = vmul.f32 %v1015, %v1015
      %v1080 = vmul.f32 %v1016, %v1016
      %v1081 = vmul.f32 %v1017, %v1017
      %v1082 = vmul.f32 %v1018, %v1018
      %v1083 = vmul.f32 %v1019, %v1019
      %v1084 = vmul.f32 %v1020, %v1020
      %v1085 = vmul.f32 %v1021, %v1021
      %v1086 = vmul.f32 %v1022, %v1022
      %v1087 = vmul.f32 %v1023, %v1023
      %v1088 = vmul.f32 %v1024, %v1024
      %v1089 = vmul.f32 %v1025, %v1025
      %v1090 = vmul.f32 %v1026, %v1026
      %v1091 = vmul.f32 %v1027, %v1027
      %v1092 = vmul.f32 %v1028, %v1028
      %v1093 = vmul.f32 %v1029, %v1029
      %v1094 = vmul.f32 %v1030, %v1030
      %v1095 = vmul.f32 %v1031, %v1031
      %v1096 = vmul.f32 %v1032, %v1032
      %v1097 = vmul.f32 %v1033, %v1033
      %v1098 = vmul.f32 %v1034, %v1034
      %v1099 = vmul.f32 %v1035, %v1035
      %v1100 = vmul.f32 %v1036, %v1036
      %v1101 = vmul.f32 %v1037, %v1037
      %v1102 = vmul.f32 %v1038, %v1038
      %v1103 = vmul.f32 %v1039, %v1039
      %v1104 = vmul.f32 %v1040, %v1040
      %v1105 = vmul.f32 %v1041, %v1041
      %v1106 = vmul.f32 %v1042, %v1042
      %v1107 = vmul.f32 %v1043, %v1043
      %v1108 = vmul.f32 %v1044, %v1044
      %v1109 = vmul.f32 %v1045, %v1045
      %v1110 = vmul.f32 %v1046, %v1046
      %v1111 = vmul.f32 %v1047, -50.0
      %v1112 = vmul.f32 %v1048, -50.0
      %v1113 = vmul.f32 %v1049, -50.0
      %v1114 = vmul.f32 %v1050, -50.0
      %v1115 = vmul.f32 %v1051, -50.0
      %v1116 = vmul.f32 %v1052, -50.0
      %v1117 = vmul.f32 %v1053, -50.0
      %v1118 = vmul.f32 %v1054, -50.0
      %v1119 = vmul.f32 %v1055, -50.0
      %v1120 = vmul.f32 %v1056, -50.0
      %v1121 = vmul.f32 %v1057, -50.0
      %v1122 = vmul.f32 %v1058, -50.0
      %v1123 = vmul.f32 %v1059, -50.0
      %v1124 = vmul.f32 %v1060, -50.0
      %v1125 = vmul.f32 %v1061, -50.0
      %v1126 = vmul.f32 %v1062, -50.0
      %v1127 = vmul.f32 %v1063, -50.0
      %v1128 = vmul.f32 %v1064, -50.0
      %v1129 = vmul.f32 %v1065, -50.0
      %v1130 = vmul.f32 %v1066, -50.0
      %v1131 = vmul.f32 %v1067, -50.0
      %v1132 = vmul.f32 %v1068, -50.0
      %v1133 = vmul.f32 %v1069, -50.0
      %v1134 = vmul.f32 %v1070, -50.0
      %v1135 = vmul.f32 %v1071, -50.0
      %v1136 = vmul.f32 %v1072, -50.0
      %v1137 = vmul.f32 %v1073, -50.0
      %v1138 = vmul.f32 %v1074, -50.0
      %v1139 = vmul.f32 %v1075, -50.0
      %v1140 = vmul.f32 %v1076, -50.0
      %v1141 = vmul.f32 %v1077, -50.0
      %v1142 = vmul.f32 %v1078, -50.0
      %v1143 = vmul.f32 %v1079, -50.0
      %v1144 = vmul.f32 %v1080, -50.0
      %v1145 = vmul.f32 %v1081, -50.0
      %v1146 = vmul.f32 %v1082, -50.0
      %v1147 = vmul.f32 %v1083, -50.0
      %v1148 = vmul.f32 %v1084, -50.0
      %v1149 = vmul.f32 %v1085, -50.0
      %v1150 = vmul.f32 %v1086, -50.0
      %v1151 = vmul.f32 %v1087, -50.0
      %v1152 = vmul.f32 %v1088, -50.0
      %v1153 = vmul.f32 %v1089, -50.0
      %v1154 = vmul.f32 %v1090, -50.0
      %v1155 = vmul.f32 %v1091, -50.0
      %v1156 = vmul.f32 %v1092, -50.0
      %v1157 = vmul.f32 %v1093, -50.0
      %v1158 = vmul.f32 %v1094, -50.0
      %v1159 = vmul.f32 %v1095, -50.0
      %v1160 = vmul.f32 %v1096, -50.0
      %v1161 = vmul.f32 %v1097, -50.0
      %v1162 = vmul.f32 %v1098, -50.0
      %v1163 = vmul.f32 %v1099, -50.0
      %v1164 = vmul.f32 %v1100, -50.0
      %v1165 = vmul.f32 %v1101, -50.0
      %v1166 = vmul.f32 %v1102, -50.0
      %v1167 = vmul.f32 %v1103, -50.0
      %v1168 = vmul.f32 %v1104, -50.0
      %v1169 = vmul.f32 %v1105, -50.0
      %v1170 = vmul.f32 %v1106, -50.0
      %v1171 = vmul.f32 %v1107, -50.0
      %v1172 = vmul.f32 %v1108, -50.0
      %v1173 = vmul.f32 %v1109, -50.0
      %v1174 = vmul.f32 %v1110, -50.0
      %v1175 = vmul.f32 %v1111, 1.442695
      %v1176 = vpow.pop %v1175
      %v1177 = vmul.f32 %v1112, 1.442695
      %v1178 = vpow.pop %v1177
      %v1179 = vmul.f32 %v1113, 1.442695
      %v1180 = vpow.pop %v1179
      %v1181 = vmul.f32 %v1114, 1.442695
      %v1182 = vpow.pop %v1181
      %v1183 = vmul.f32 %v1115, 1.442695
      %v1184 = vpow.pop %v1183
      %v1185 = vmul.f32 %v1116, 1.442695
      %v1186 = vpow.pop %v1185
      %v1187 = vmul.f32 %v1117, 1.442695
      %v1188 = vpow.pop %v1187
      %v1189 = vmul.f32 %v1118, 1.442695
      %v1190 = vpow.pop %v1189
      %v1191 = vmul.f32 %v1119, 1.442695
      %v1192 = vpow.pop %v1191
      %v1193 = vmul.f32 %v1120, 1.442695
      %v1194 = vpow.pop %v1193
      %v1195 = vmul.f32 %v1121, 1.442695
      %v1196 = vpow.pop %v1195
      %v1197 = vmul.f32 %v1122, 1.442695
      %v1198 = vpow.pop %v1197
      %v1199 = vmul.f32 %v1123, 1.442695
      %v1200 = vpow.pop %v1199
      %v1201 = vmul.f32 %v1124, 1.442695
      %v1202 = vpow.pop %v1201
      %v1203 = vmul.f32 %v1125, 1.442695
      %v1204 = vpow.pop %v1203
      %v1205 = vmul.f32 %v1126, 1.442695
      %v1206 = vpow.pop %v1205
      %v1207 = vmul.f32 %v1127, 1.442695
      %v1208 = vpow.pop %v1207
      %v1209 = vmul.f32 %v1128, 1.442695
      %v1210 = vpow.pop %v1209
      %v1211 = vmul.f32 %v1129, 1.442695
      %v1212 = vpow.pop %v1211
      %v1213 = vmul.f32 %v1130, 1.442695
      %v1214 = vpow.pop %v1213
      %v1215 = vmul.f32 %v1131, 1.442695
      %v1216 = vpow.pop %v1215
      %v1217 = vmul.f32 %v1132, 1.442695
      %v1218 = vpow.pop %v1217
      %v1219 = vmul.f32 %v1133, 1.442695
      %v1220 = vpow.pop %v1219
      %v1221 = vmul.f32 %v1134, 1.442695
      %v1222 = vpow.pop %v1221
      %v1223 = vmul.f32 %v1135, 1.442695
      %v1224 = vpow.pop %v1223
      %v1225 = vmul.f32 %v1136, 1.442695
      %v1226 = vpow.pop %v1225
      %v1227 = vmul.f32 %v1137, 1.442695
      %v1228 = vpow.pop %v1227
      %v1229 = vmul.f32 %v1138, 1.442695
      %v1230 = vpow.pop %v1229
      %v1231 = vmul.f32 %v1139, 1.442695
      %v1232 = vpow.pop %v1231
      %v1233 = vmul.f32 %v1140, 1.442695
      %v1234 = vpow.pop %v1233
      %v1235 = vmul.f32 %v1141, 1.442695
      %v1236 = vpow.pop %v1235
      %v1237 = vmul.f32 %v1142, 1.442695
      %v1238 = vpow.pop %v1237
      %v1239 = vmul.f32 %v1143, 1.442695
      %v1240 = vpow.pop %v1239
      %v1241 = vmul.f32 %v1144, 1.442695
      %v1242 = vpow.pop %v1241
      %v1243 = vmul.f32 %v1145, 1.442695
      %v1244 = vpow.pop %v1243
      %v1245 = vmul.f32 %v1146, 1.442695
      %v1246 = vpow.pop %v1245
      %v1247 = vmul.f32 %v1147, 1.442695
      %v1248 = vpow.pop %v1247
      %v1249 = vmul.f32 %v1148, 1.442695
      %v1250 = vpow.pop %v1249
      %v1251 = vmul.f32 %v1149, 1.442695
      %v1252 = vpow.pop %v1251
      %v1253 = vmul.f32 %v1150, 1.442695
      %v1254 = vpow.pop %v1253
      %v1255 = vmul.f32 %v1151, 1.442695
      %v1256 = vpow.pop %v1255
      %v1257 = vmul.f32 %v1152, 1.442695
      %v1258 = vpow.pop %v1257
      %v1259 = vmul.f32 %v1153, 1.442695
      %v1260 = vpow.pop %v1259
      %v1261 = vmul.f32 %v1154, 1.442695
      %v1262 = vpow.pop %v1261
      %v1263 = vmul.f32 %v1155, 1.442695
      %v1264 = vpow.pop %v1263
      %v1265 = vmul.f32 %v1156, 1.442695
      %v1266 = vpow.pop %v1265
      %v1267 = vmul.f32 %v1157, 1.442695
      %v1268 = vpow.pop %v1267
      %v1269 = vmul.f32 %v1158, 1.442695
      %v1270 = vpow.pop %v1269
      %v1271 = vmul.f32 %v1159, 1.442695
      %v1272 = vpow.pop %v1271
      %v1273 = vmul.f32 %v1160, 1.442695
      %v1274 = vpow.pop %v1273
      %v1275 = vmul.f32 %v1161, 1.442695
      %v1276 = vpow.pop %v1275
      %v1277 = vmul.f32 %v1162, 1.442695
      %v1278 = vpow.pop %v1277
      %v1279 = vmul.f32 %v1163, 1.442695
      %v1280 = vpow.pop %v1279
      %v1281 = vmul.f32 %v1164, 1.442695
      %v1282 = vpow.pop %v1281
      %v1283 = vmul.f32 %v1165, 1.442695
      %v1284 = vpow.pop %v1283
      %v1285 = vmul.f32 %v1166, 1.442695
      %v1286 = vpow.pop %v1285
      %v1287 = vmul.f32 %v1167, 1.442695
      %v1288 = vpow.pop %v1287
      %v1289 = vmul.f32 %v1168, 1.442695
      %v1290 = vpow.pop %v1289
      %v1291 = vmul.f32 %v1169, 1.442695
      %v1292 = vpow.pop %v1291
      %v1293 = vmul.f32 %v1170, 1.442695
      %v1294 = vpow.pop %v1293
      %v1295 = vmul.f32 %v1171, 1.442695
      %v1296 = vpow.pop %v1295
      %v1297 = vmul.f32 %v1172, 1.442695
      %v1298 = vpow.pop %v1297
      %v1299 = vmul.f32 %v1173, 1.442695
      %v1300 = vpow.pop %v1299
      %v1301 = vmul.f32 %v1174, 1.442695
      %v1302 = vpow.pop %v1301
      %v1303 = vpack.c.bf16 %v1180, %v1176
      %v1304 = vpack.c.bf16 %v1182, %v1178
      %v1305 = vpack.c.bf16 %v1188, %v1184
      %v1306 = vpack.c.bf16 %v1190, %v1186
      %v1307 = vpack.c.bf16 %v1196, %v1192
      %v1308 = vpack.c.bf16 %v1198, %v1194
      %v1309 = vpack.c.bf16 %v1204, %v1200
      %v1310 = vpack.c.bf16 %v1206, %v1202
      %v1311 = vpack.c.bf16 %v1212, %v1208
      %v1312 = vpack.c.bf16 %v1214, %v1210
      %v1313 = vpack.c.bf16 %v1220, %v1216
      %v1314 = vpack.c.bf16 %v1222, %v1218
      %v1315 = vpack.c.bf16 %v1228, %v1224
      %v1316 = vpack.c.bf16 %v1230, %v1226
      %v1317 = vpack.c.bf16 %v1236, %v1232
      %v1318 = vpack.c.bf16 %v1238, %v1234
      %v1319 = vpack.c.bf16 %v1244, %v1240
      %v1320 = vpack.c.bf16 %v1246, %v1242
      %v1321 = vpack.c.bf16 %v1252, %v1248
      %v1322 = vpack.c.bf16 %v1254, %v1250
      %v1323 = vpack.c.bf16 %v1260, %v1256
      %v1324 = vpack.c.bf16 %v1262, %v1258
      %v1325 = vpack.c.bf16 %v1268, %v1264
      %v1326 = vpack.c.bf16 %v1270, %v1266
      %v1327 = vpack.c.bf16 %v1276, %v1272
      %v1328 = vpack.c.bf16 %v1278, %v1274
      %v1329 = vpack.c.bf16 %v1284, %v1280
      %v1330 = vpack.c.bf16 %v1286, %v1282
      %v1331 = vpack.c.bf16 %v1292, %v1288
      %v1332 = vpack.c.bf16 %v1294, %v1290
      %v1333 = vpack.c.bf16 %v1300, %v1296
      %v1334 = vpack.c.bf16 %v1302, %v1298
      %v1335 = vld [vmem:[#allocation2] sm:$0xff]
      %v1336 = vld [vmem:[#allocation2 + $0x8] sm:$0xff]
      %v1337 = vld [vmem:[#allocation2 + $0x10] sm:$0xff]
      %v1338 = vld [vmem:[#allocation2 + $0x18] sm:$0xff]
      %v1339 = vld [vmem:[#allocation2 + $0x20] sm:$0xff]
      %v1340 = vld [vmem:[#allocation2 + $0x28] sm:$0xff]
      %v1341 = vld [vmem:[#allocation2 + $0x30] sm:$0xff]
      %v1342 = vld [vmem:[#allocation2 + $0x38] sm:$0xff]
      %v1343 = vld [vmem:[#allocation2 + $0x40] sm:$0xff]
      %v1344 = vld [vmem:[#allocation2 + $0x48] sm:$0xff]
      %v1345 = vld [vmem:[#allocation2 + $0x50] sm:$0xff]
      %v1346 = vld [vmem:[#allocation2 + $0x58] sm:$0xff]
      %v1347 = vld [vmem:[#allocation2 + $0x60] sm:$0xff]
      %v1348 = vld [vmem:[#allocation2 + $0x68] sm:$0xff]
      %v1349 = vld [vmem:[#allocation2 + $0x70] sm:$0xff]
      %v1350 = vld [vmem:[#allocation2 + $0x78] sm:$0xff]
      %v1351 = vld [vmem:[#allocation2 + $0x80] sm:$0xff]
      %v1352 = vld [vmem:[#allocation2 + $0x88] sm:$0xff]
      %v1353 = vld [vmem:[#allocation2 + $0x90] sm:$0xff]
      %v1354 = vld [vmem:[#allocation2 + $0x98] sm:$0xff]
      %v1355 = vld [vmem:[#allocation2 + $0xa0] sm:$0xff]
      %v1356 = vld [vmem:[#allocation2 + $0xa8] sm:$0xff]
      %v1357 = vld [vmem:[#allocation2 + $0xb0] sm:$0xff]
      %v1358 = vld [vmem:[#allocation2 + $0xb8] sm:$0xff]
      %v1359 = vld [vmem:[#allocation2 + $0xc0] sm:$0xff]
      %v1360 = vld [vmem:[#allocation2 + $0xc8] sm:$0xff]
      %v1361 = vld [vmem:[#allocation2 + $0xd0] sm:$0xff]
      %v1362 = vld [vmem:[#allocation2 + $0xd8] sm:$0xff]
      %v1363 = vld [vmem:[#allocation2 + $0xe0] sm:$0xff]
      %v1364 = vld [vmem:[#allocation2 + $0xe8] sm:$0xff]
      %v1365 = vld [vmem:[#allocation2 + $0xf0] sm:$0xff]
      %v1366 = vld [vmem:[#allocation2 + $0xf8] sm:$0xff]
      %v1399 = vunpack.c.l.b16 %v413
      %v1400 = vunpack.c.l.b16 %v414
      %v1401 = vunpack.c.l.b16 %v415
      %v1402 = vunpack.c.l.b16 %v416
      %v1403 = vunpack.c.l.b16 %v417
      %v1404 = vunpack.c.l.b16 %v418
      %v1405 = vunpack.c.l.b16 %v419
      %v1406 = vunpack.c.l.b16 %v420
      %v1407 = vunpack.c.l.b16 %v421
      %v1408 = vunpack.c.l.b16 %v422
      %v1409 = vunpack.c.l.b16 %v423
      %v1410 = vunpack.c.l.b16 %v424
      %v1411 = vunpack.c.l.b16 %v425
      %v1412 = vunpack.c.l.b16 %v426
      %v1413 = vunpack.c.l.b16 %v427
      %v1414 = vunpack.c.l.b16 %v428
      %v1415 = vunpack.c.l.b16 %v429
      %v1416 = vunpack.c.l.b16 %v430
      %v1417 = vunpack.c.l.b16 %v431
      %v1418 = vunpack.c.l.b16 %v432
      %v1419 = vunpack.c.l.b16 %v433
      %v1420 = vunpack.c.l.b16 %v434
      %v1421 = vunpack.c.l.b16 %v435
      %v1422 = vunpack.c.l.b16 %v436
      %v1423 = vunpack.c.l.b16 %v437
      %v1424 = vunpack.c.l.b16 %v438
      %v1425 = vunpack.c.l.b16 %v439
      %v1426 = vunpack.c.l.b16 %v440
      %v1427 = vunpack.c.l.b16 %v441
      %v1428 = vunpack.c.l.b16 %v442
      %v1429 = vunpack.c.l.b16 %v443
      %v1430 = vunpack.c.l.b16 %v444
      %v1431 = vpack.c.b16 %v1400, %v1399
      %v1432 = vpack.c.b16 %v1402, %v1401
      %v1433 = vpack.c.b16 %v1404, %v1403
      %v1434 = vpack.c.b16 %v1406, %v1405
      %v1435 = vpack.c.b16 %v1408, %v1407
      %v1436 = vpack.c.b16 %v1410, %v1409
      %v1437 = vpack.c.b16 %v1412, %v1411
      %v1438 = vpack.c.b16 %v1414, %v1413
      %v1439 = vpack.c.b16 %v1416, %v1415
      %v1440 = vpack.c.b16 %v1418, %v1417
      %v1441 = vpack.c.b16 %v1420, %v1419
      %v1442 = vpack.c.b16 %v1422, %v1421
      %v1443 = vpack.c.b16 %v1424, %v1423
      %v1444 = vpack.c.b16 %v1426, %v1425
      %v1445 = vpack.c.b16 %v1428, %v1427
      %v1446 = vpack.c.b16 %v1430, %v1429
      %1463 = vmatprep.subr.bf16.mxu0 0
      %1464 = vmatpush1.bf16.msra.mxu0 %v1431
      %1465 = vmatprep.subr.bf16.mxu0 0
      %1466 = vmatpush1.bf16.msra.mxu0 %v1432
      %1467 = vmatprep.subr.bf16.mxu0 0
      %1468 = vmatpush1.bf16.msra.mxu0 %v1433
      %1469 = vmatprep.subr.bf16.mxu0 0
      %1470 = vmatpush1.bf16.msra.mxu0 %v1434
      %1471 = vmatprep.subr.bf16.mxu0 0
      %1472 = vmatpush1.bf16.msra.mxu0 %v1435
      %1473 = vmatprep.subr.bf16.mxu0 0
      %1474 = vmatpush1.bf16.msra.mxu0 %v1436
      %1475 = vmatprep.subr.bf16.mxu0 0
      %1476 = vmatpush1.bf16.msra.mxu0 %v1437
      %1477 = vmatprep.subr.bf16.mxu0 0
      %1478 = vmatpush1.bf16.msra.mxu0 %v1438
      %1479 = vmatprep.subr.bf16.mxu0 0
      %1480 = vmatpush1.bf16.msra.mxu0 %v1439
      %1481 = vmatprep.subr.bf16.mxu0 0
      %1482 = vmatpush1.bf16.msra.mxu0 %v1440
      %1483 = vmatprep.subr.bf16.mxu0 0
      %1484 = vmatpush1.bf16.msra.mxu0 %v1441
      %1485 = vmatprep.subr.bf16.mxu0 0
      %1486 = vmatpush1.bf16.msra.mxu0 %v1442
      %1487 = vmatprep.subr.bf16.mxu0 0
      %1488 = vmatpush1.bf16.msra.mxu0 %v1443
      %1489 = vmatprep.subr.bf16.mxu0 0
      %1490 = vmatpush1.bf16.msra.mxu0 %v1444
      %1491 = vmatprep.subr.bf16.mxu0 0
      %1492 = vmatpush1.bf16.msra.mxu0 %v1445
      %1493 = vmatprep.subr.bf16.mxu0 0
      %1494 = vmatpush1.bf16.msra.mxu0 %v1446
      %1495 = vmatprep.mubr.bf16.mxu0 %v939
      %1496 = vmatmul.mubr.bf16.gmra.mrb[0].mxu0 %v938
      %v1497 = vpop.f32.mrb[0].mxu0
      %v1498 = vadd.f32 0.0, %v1497
      %v1499 = vpop.f32.mrb[0].mxu0
      %v1500 = vpop.f32.mrb[0].mxu0
      %v1501 = vadd.f32 0.0, %v1500
      %v1502 = vpop.f32.mrb[0].mxu0
      %1503 = vmatprep.mubr.bf16.mxu0 %v941
      %1504 = vmatmul.mubr.bf16.gmra.mrb[0].mxu0 %v940
      %v1505 = vpop.f32.mrb[0].mxu0
      %v1506 = vadd.f32 0.0, %v1505
      %v1507 = vpop.f32.mrb[0].mxu0
      %v1508 = vpop.f32.mrb[0].mxu0
      %v1509 = vadd.f32 0.0, %v1508
      %v1510 = vpop.f32.mrb[0].mxu0
      %1511 = vmatprep.mubr.bf16.mxu0 %v943
      %1512 = vmatmul.mubr.bf16.gmra.mrb[0].mxu0 %v942
      %v1513 = vpop.f32.mrb[0].mxu0
      %v1514 = vadd.f32 0.0, %v1513
      %v1515 = vpop.f32.mrb[0].mxu0
      %v1516 = vpop.f32.mrb[0].mxu0
      %v1517 = vadd.f32 0.0, %v1516
      %v1518 = vpop.f32.mrb[0].mxu0
      %1519 = vmatprep.mubr.bf16.mxu0 %v945
      %1520 = vmatmul.mubr.bf16.gmra.mrb[0].mxu0 %v944
      %v1521 = vpop.f32.mrb[0].mxu0
      %v1522 = vadd.f32 0.0, %v1521
      %v1523 = vpop.f32.mrb[0].mxu0
      %v1524 = vpop.f32.mrb[0].mxu0
      %v1525 = vadd.f32 0.0, %v1524
      %v1526 = vpop.f32.mrb[0].mxu0
      %1527 = vmatprep.mubr.bf16.mxu0 %v947
      %1528 = vmatmul.mubr.bf16.gmra.mrb[0].mxu0 %v946
      %v1529 = vpop.f32.mrb[0].mxu0
      %v1530 = vadd.f32 0.0, %v1529
      %v1531 = vpop.f32.mrb[0].mxu0
      %v1532 = vpop.f32.mrb[0].mxu0
      %v1533 = vadd.f32 0.0, %v1532
      %v1534 = vpop.f32.mrb[0].mxu0
      %1535 = vmatprep.mubr.bf16.mxu0 %v949
      %1536 = vmatmul.mubr.bf16.gmra.mrb[0].mxu0 %v948
      %v1537 = vpop.f32.mrb[0].mxu0
      %v1538 = vadd.f32 0.0, %v1537
      %v1539 = vpop.f32.mrb[0].mxu0
      %v1540 = vpop.f32.mrb[0].mxu0
      %v1541 = vadd.f32 0.0, %v1540
      %v1542 = vpop.f32.mrb[0].mxu0
      %1543 = vmatprep.mubr.bf16.mxu0 %v951
      %1544 = vmatmul.mubr.bf16.gmra.mrb[0].mxu0 %v950
      %v1545 = vpop.f32.mrb[0].mxu0
      %v1546 = vadd.f32 0.0, %v1545
      %v1547 = vpop.f32.mrb[0].mxu0
      %v1548 = vpop.f32.mrb[0].mxu0
      %v1549 = vadd.f32 0.0, %v1548
      %v1550 = vpop.f32.mrb[0].mxu0
      %1551 = vmatprep.mubr.bf16.mxu0 %v953
      %1552 = vmatmul.mubr.bf16.gmra.mrb[0].mxu0 %v952
      %v1553 = vpop.f32.mrb[0].mxu0
      %v1554 = vadd.f32 0.0, %v1553
      %v1555 = vpop.f32.mrb[0].mxu0
      %v1556 = vpop.f32.mrb[0].mxu0
      %v1557 = vadd.f32 0.0, %v1556
      %v1558 = vpop.f32.mrb[0].mxu0
      %1559 = vmatprep.mubr.bf16.mxu0 %v955
      %1560 = vmatmul.mubr.bf16.gmra.mrb[0].mxu0 %v954
      %v1561 = vpop.f32.mrb[0].mxu0
      %v1562 = vadd.f32 0.0, %v1561
      %v1563 = vpop.f32.mrb[0].mxu0
      %v1564 = vpop.f32.mrb[0].mxu0
      %v1565 = vadd.f32 0.0, %v1564
      %v1566 = vpop.f32.mrb[0].mxu0
      %1567 = vmatprep.mubr.bf16.mxu0 %v957
      %1568 = vmatmul.mubr.bf16.gmra.mrb[0].mxu0 %v956
      %v1569 = vpop.f32.mrb[0].mxu0
      %v1570 = vadd.f32 0.0, %v1569
      %v1571 = vpop.f32.mrb[0].mxu0
      %v1572 = vpop.f32.mrb[0].mxu0
      %v1573 = vadd.f32 0.0, %v1572
      %v1574 = vpop.f32.mrb[0].mxu0
      %1575 = vmatprep.mubr.bf16.mxu0 %v959
      %1576 = vmatmul.mubr.bf16.gmra.mrb[0].mxu0 %v958
      %v1577 = vpop.f32.mrb[0].mxu0
      %v1578 = vadd.f32 0.0, %v1577
      %v1579 = vpop.f32.mrb[0].mxu0
      %v1580 = vpop.f32.mrb[0].mxu0
      %v1581 = vadd.f32 0.0, %v1580
      %v1582 = vpop.f32.mrb[0].mxu0
      %1583 = vmatprep.mubr.bf16.mxu0 %v961
      %1584 = vmatmul.mubr.bf16.gmra.mrb[0].mxu0 %v960
      %v1585 = vpop.f32.mrb[0].mxu0
      %v1586 = vadd.f32 0.0, %v1585
      %v1587 = vpop.f32.mrb[0].mxu0
      %v1588 = vpop.f32.mrb[0].mxu0
      %v1589 = vadd.f32 0.0, %v1588
      %v1590 = vpop.f32.mrb[0].mxu0
      %1591 = vmatprep.mubr.bf16.mxu0 %v963
      %1592 = vmatmul.mubr.bf16.gmra.mrb[0].mxu0 %v962
      %v1593 = vpop.f32.mrb[0].mxu0
      %v1594 = vadd.f32 0.0, %v1593
      %v1595 = vpop.f32.mrb[0].mxu0
      %v1596 = vpop.f32.mrb[0].mxu0
      %v1597 = vadd.f32 0.0, %v1596
      %v1598 = vpop.f32.mrb[0].mxu0
      %1599 = vmatprep.mubr.bf16.mxu0 %v965
      %1600 = vmatmul.mubr.bf16.gmra.mrb[0].mxu0 %v964
      %v1601 = vpop.f32.mrb[0].mxu0
      %v1602 = vadd.f32 0.0, %v1601
      %v1603 = vpop.f32.mrb[0].mxu0
      %v1604 = vpop.f32.mrb[0].mxu0
      %v1605 = vadd.f32 0.0, %v1604
      %v1606 = vpop.f32.mrb[0].mxu0
      %1607 = vmatprep.mubr.bf16.mxu0 %v967
      %1608 = vmatmul.mubr.bf16.gmra.mrb[0].mxu0 %v966
      %v1609 = vpop.f32.mrb[0].mxu0
      %v1610 = vadd.f32 0.0, %v1609
      %v1611 = vpop.f32.mrb[0].mxu0
      %v1612 = vpop.f32.mrb[0].mxu0
      %v1613 = vadd.f32 0.0, %v1612
      %v1614 = vpop.f32.mrb[0].mxu0
      %1615 = vmatprep.mubr.bf16.mxu0 %v969
      %1616 = vmatmul.mubr.bf16.gmra.mrb[0].mxu0 %v968
      %v1617 = vpop.f32.mrb[0].mxu0
      %v1618 = vadd.f32 0.0, %v1617
      %v1619 = vpop.f32.mrb[0].mxu0
      %v1620 = vpop.f32.mrb[0].mxu0
      %v1621 = vadd.f32 0.0, %v1620
      %v1622 = vpop.f32.mrb[0].mxu0
      %1623 = vdwg.mxu0
      %v1624 = vadd.f32 %v1335, %v1498
      %v1625 = vadd.f32 %v1336, %v1501
      %v1626 = vadd.f32 %v1337, %v1506
      %v1627 = vadd.f32 %v1338, %v1509
      %v1628 = vadd.f32 %v1339, %v1514
      %v1629 = vadd.f32 %v1340, %v1517
      %v1630 = vadd.f32 %v1341, %v1522
      %v1631 = vadd.f32 %v1342, %v1525
      %v1632 = vadd.f32 %v1343, %v1530
      %v1633 = vadd.f32 %v1344, %v1533
      %v1634 = vadd.f32 %v1345, %v1538
      %v1635 = vadd.f32 %v1346, %v1541
      %v1636 = vadd.f32 %v1347, %v1546
      %v1637 = vadd.f32 %v1348, %v1549
      %v1638 = vadd.f32 %v1349, %v1554
      %v1639 = vadd.f32 %v1350, %v1557
      %v1640 = vadd.f32 %v1351, %v1562
      %v1641 = vadd.f32 %v1352, %v1565
      %v1642 = vadd.f32 %v1353, %v1570
      %v1643 = vadd.f32 %v1354, %v1573
      %v1644 = vadd.f32 %v1355, %v1578
      %v1645 = vadd.f32 %v1356, %v1581
      %v1646 = vadd.f32 %v1357, %v1586
      %v1647 = vadd.f32 %v1358, %v1589
      %v1648 = vadd.f32 %v1359, %v1594
      %v1649 = vadd.f32 %v1360, %v1597
      %v1650 = vadd.f32 %v1361, %v1602
      %v1651 = vadd.f32 %v1362, %v1605
      %v1652 = vadd.f32 %v1363, %v1610
      %v1653 = vadd.f32 %v1364, %v1613
      %v1654 = vadd.f32 %v1365, %v1618
      %v1655 = vadd.f32 %v1366, %v1621
      %1656 = vst [vmem:[#allocation2] sm:$0xff] %v1624
      %1657 = vst [vmem:[#allocation2 + $0x8] sm:$0xff] %v1625
      %1658 = vst [vmem:[#allocation2 + $0x10] sm:$0xff] %v1626
      %1659 = vst [vmem:[#allocation2 + $0x18] sm:$0xff] %v1627
      %1660 = vst [vmem:[#allocation2 + $0x20] sm:$0xff] %v1628
      %1661 = vst [vmem:[#allocation2 + $0x28] sm:$0xff] %v1629
      %1662 = vst [vmem:[#allocation2 + $0x30] sm:$0xff] %v1630
      %1663 = vst [vmem:[#allocation2 + $0x38] sm:$0xff] %v1631
      %1664 = vst [vmem:[#allocation2 + $0x40] sm:$0xff] %v1632
      %1665 = vst [vmem:[#allocation2 + $0x48] sm:$0xff] %v1633
      %1666 = vst [vmem:[#allocation2 + $0x50] sm:$0xff] %v1634
      %1667 = vst [vmem:[#allocation2 + $0x58] sm:$0xff] %v1635
      %1668 = vst [vmem:[#allocation2 + $0x60] sm:$0xff] %v1636
      %1669 = vst [vmem:[#allocation2 + $0x68] sm:$0xff] %v1637
      %1670 = vst [vmem:[#allocation2 + $0x70] sm:$0xff] %v1638
      %1671 = vst [vmem:[#allocation2 + $0x78] sm:$0xff] %v1639
      %1672 = vst [vmem:[#allocation2 + $0x80] sm:$0xff] %v1640
      %1673 = vst [vmem:[#allocation2 + $0x88] sm:$0xff] %v1641
      %1674 = vst [vmem:[#allocation2 + $0x90] sm:$0xff] %v1642
      %1675 = vst [vmem:[#allocation2 + $0x98] sm:$0xff] %v1643
      %1676 = vst [vmem:[#allocation2 + $0xa0] sm:$0xff] %v1644
      %1677 = vst [vmem:[#allocation2 + $0xa8] sm:$0xff] %v1645
      %1678 = vst [vmem:[#allocation2 + $0xb0] sm:$0xff] %v1646
      %1679 = vst [vmem:[#allocation2 + $0xb8] sm:$0xff] %v1647
      %1680 = vst [vmem:[#allocation2 + $0xc0] sm:$0xff] %v1648
      %1681 = vst [vmem:[#allocation2 + $0xc8] sm:$0xff] %v1649
      %1682 = vst [vmem:[#allocation2 + $0xd0] sm:$0xff] %v1650
      %1683 = vst [vmem:[#allocation2 + $0xd8] sm:$0xff] %v1651
      %1684 = vst [vmem:[#allocation2 + $0xe0] sm:$0xff] %v1652
      %1685 = vst [vmem:[#allocation2 + $0xe8] sm:$0xff] %v1653
      %1686 = vst [vmem:[#allocation2 + $0xf0] sm:$0xff] %v1654
      %1687 = vst [vmem:[#allocation2 + $0xf8] sm:$0xff] %v1655
      %v1688 = vld [vmem:[#allocation3] sm:$0xff]
      %v1689 = vld [vmem:[#allocation3 + $0x8] sm:$0xff]
      %v1690 = vld [vmem:[#allocation3 + $0x10] sm:$0xff]
      %v1691 = vld [vmem:[#allocation3 + $0x18] sm:$0xff]
      %v1692 = vld [vmem:[#allocation3 + $0x20] sm:$0xff]
      %v1693 = vld [vmem:[#allocation3 + $0x28] sm:$0xff]
      %v1694 = vld [vmem:[#allocation3 + $0x30] sm:$0xff]
      %v1695 = vld [vmem:[#allocation3 + $0x38] sm:$0xff]
      %v1696 = vld [vmem:[#allocation3 + $0x40] sm:$0xff]
      %v1697 = vld [vmem:[#allocation3 + $0x48] sm:$0xff]
      %v1698 = vld [vmem:[#allocation3 + $0x50] sm:$0xff]
      %v1699 = vld [vmem:[#allocation3 + $0x58] sm:$0xff]
      %v1700 = vld [vmem:[#allocation3 + $0x60] sm:$0xff]
      %v1701 = vld [vmem:[#allocation3 + $0x68] sm:$0xff]
      %v1702 = vld [vmem:[#allocation3 + $0x70] sm:$0xff]
      %v1703 = vld [vmem:[#allocation3 + $0x78] sm:$0xff]
      %v1704 = vld [vmem:[#allocation3 + $0x80] sm:$0xff]
      %v1705 = vld [vmem:[#allocation3 + $0x88] sm:$0xff]
      %v1706 = vld [vmem:[#allocation3 + $0x90] sm:$0xff]
      %v1707 = vld [vmem:[#allocation3 + $0x98] sm:$0xff]
      %v1708 = vld [vmem:[#allocation3 + $0xa0] sm:$0xff]
      %v1709 = vld [vmem:[#allocation3 + $0xa8] sm:$0xff]
      %v1710 = vld [vmem:[#allocation3 + $0xb0] sm:$0xff]
      %v1711 = vld [vmem:[#allocation3 + $0xb8] sm:$0xff]
      %v1712 = vld [vmem:[#allocation3 + $0xc0] sm:$0xff]
      %v1713 = vld [vmem:[#allocation3 + $0xc8] sm:$0xff]
      %v1714 = vld [vmem:[#allocation3 + $0xd0] sm:$0xff]
      %v1715 = vld [vmem:[#allocation3 + $0xd8] sm:$0xff]
      %v1716 = vld [vmem:[#allocation3 + $0xe0] sm:$0xff]
      %v1717 = vld [vmem:[#allocation3 + $0xe8] sm:$0xff]
      %v1718 = vld [vmem:[#allocation3 + $0xf0] sm:$0xff]
      %v1719 = vld [vmem:[#allocation3 + $0xf8] sm:$0xff]
      %1720 = vmatprep.subr.bf16.mxu0 0
      %1721 = vmatpush1.bf16.msra.mxu0 %v1431
      %1722 = vmatprep.subr.bf16.mxu0 0
      %1723 = vmatpush1.bf16.msra.mxu0 %v1432
      %1724 = vmatprep.subr.bf16.mxu0 0
      %1725 = vmatpush1.bf16.msra.mxu0 %v1433
      %1726 = vmatprep.subr.bf16.mxu0 0
      %1727 = vmatpush1.bf16.msra.mxu0 %v1434
      %1728 = vmatprep.subr.bf16.mxu0 0
      %1729 = vmatpush1.bf16.msra.mxu0 %v1435
      %1730 = vmatprep.subr.bf16.mxu0 0
      %1731 = vmatpush1.bf16.msra.mxu0 %v1436
      %1732 = vmatprep.subr.bf16.mxu0 0
      %1733 = vmatpush1.bf16.msra.mxu0 %v1437
      %1734 = vmatprep.subr.bf16.mxu0 0
      %1735 = vmatpush1.bf16.msra.mxu0 %v1438
      %1736 = vmatprep.subr.bf16.mxu0 0
      %1737 = vmatpush1.bf16.msra.mxu0 %v1439
      %1738 = vmatprep.subr.bf16.mxu0 0
      %1739 = vmatpush1.bf16.msra.mxu0 %v1440
      %1740 = vmatprep.subr.bf16.mxu0 0
      %1741 = vmatpush1.bf16.msra.mxu0 %v1441
      %1742 = vmatprep.subr.bf16.mxu0 0
      %1743 = vmatpush1.bf16.msra.mxu0 %v1442
      %1744 = vmatprep.subr.bf16.mxu0 0
      %1745 = vmatpush1.bf16.msra.mxu0 %v1443
      %1746 = vmatprep.subr.bf16.mxu0 0
      %1747 = vmatpush1.bf16.msra.mxu0 %v1444
      %1748 = vmatprep.subr.bf16.mxu0 0
      %1749 = vmatpush1.bf16.msra.mxu0 %v1445
      %1750 = vmatprep.subr.bf16.mxu0 0
      %1751 = vmatpush1.bf16.msra.mxu0 %v1446
      %1752 = vmatprep.mubr.bf16.mxu0 %v1304
      %1753 = vmatmul.mubr.bf16.gmra.mrb[0].mxu0 %v1303
      %v1754 = vpop.f32.mrb[0].mxu0
      %v1755 = vadd.f32 0.0, %v1754
      %v1756 = vpop.f32.mrb[0].mxu0
      %v1757 = vpop.f32.mrb[0].mxu0
      %v1758 = vadd.f32 0.0, %v1757
      %v1759 = vpop.f32.mrb[0].mxu0
      %1760 = vmatprep.mubr.bf16.mxu0 %v1306
      %1761 = vmatmul.mubr.bf16.gmra.mrb[0].mxu0 %v1305
      %v1762 = vpop.f32.mrb[0].mxu0
      %v1763 = vadd.f32 0.0, %v1762
      %v1764 = vpop.f32.mrb[0].mxu0
      %v1765 = vpop.f32.mrb[0].mxu0
      %v1766 = vadd.f32 0.0, %v1765
      %v1767 = vpop.f32.mrb[0].mxu0
      %1768 = vmatprep.mubr.bf16.mxu0 %v1308
      %1769 = vmatmul.mubr.bf16.gmra.mrb[0].mxu0 %v1307
      %v1770 = vpop.f32.mrb[0].mxu0
      %v1771 = vadd.f32 0.0, %v1770
      %v1772 = vpop.f32.mrb[0].mxu0
      %v1773 = vpop.f32.mrb[0].mxu0
      %v1774 = vadd.f32 0.0, %v1773
      %v1775 = vpop.f32.mrb[0].mxu0
      %1776 = vmatprep.mubr.bf16.mxu0 %v1310
      %1777 = vmatmul.mubr.bf16.gmra.mrb[0].mxu0 %v1309
      %v1778 = vpop.f32.mrb[0].mxu0
      %v1779 = vadd.f32 0.0, %v1778
      %v1780 = vpop.f32.mrb[0].mxu0
      %v1781 = vpop.f32.mrb[0].mxu0
      %v1782 = vadd.f32 0.0, %v1781
      %v1783 = vpop.f32.mrb[0].mxu0
      %1784 = vmatprep.mubr.bf16.mxu0 %v1312
      %1785 = vmatmul.mubr.bf16.gmra.mrb[0].mxu0 %v1311
      %v1786 = vpop.f32.mrb[0].mxu0
      %v1787 = vadd.f32 0.0, %v1786
      %v1788 = vpop.f32.mrb[0].mxu0
      %v1789 = vpop.f32.mrb[0].mxu0
      %v1790 = vadd.f32 0.0, %v1789
      %v1791 = vpop.f32.mrb[0].mxu0
      %1792 = vmatprep.mubr.bf16.mxu0 %v1314
      %1793 = vmatmul.mubr.bf16.gmra.mrb[0].mxu0 %v1313
      %v1794 = vpop.f32.mrb[0].mxu0
      %v1795 = vadd.f32 0.0, %v1794
      %v1796 = vpop.f32.mrb[0].mxu0
      %v1797 = vpop.f32.mrb[0].mxu0
      %v1798 = vadd.f32 0.0, %v1797
      %v1799 = vpop.f32.mrb[0].mxu0
      %1800 = vmatprep.mubr.bf16.mxu0 %v1316
      %1801 = vmatmul.mubr.bf16.gmra.mrb[0].mxu0 %v1315
      %v1802 = vpop.f32.mrb[0].mxu0
      %v1803 = vadd.f32 0.0, %v1802
      %v1804 = vpop.f32.mrb[0].mxu0
      %v1805 = vpop.f32.mrb[0].mxu0
      %v1806 = vadd.f32 0.0, %v1805
      %v1807 = vpop.f32.mrb[0].mxu0
      %1808 = vmatprep.mubr.bf16.mxu0 %v1318
      %1809 = vmatmul.mubr.bf16.gmra.mrb[0].mxu0 %v1317
      %v1810 = vpop.f32.mrb[0].mxu0
      %v1811 = vadd.f32 0.0, %v1810
      %v1812 = vpop.f32.mrb[0].mxu0
      %v1813 = vpop.f32.mrb[0].mxu0
      %v1814 = vadd.f32 0.0, %v1813
      %v1815 = vpop.f32.mrb[0].mxu0
      %1816 = vmatprep.mubr.bf16.mxu0 %v1320
      %1817 = vmatmul.mubr.bf16.gmra.mrb[0].mxu0 %v1319
      %v1818 = vpop.f32.mrb[0].mxu0
      %v1819 = vadd.f32 0.0, %v1818
      %v1820 = vpop.f32.mrb[0].mxu0
      %v1821 = vpop.f32.mrb[0].mxu0
      %v1822 = vadd.f32 0.0, %v1821
      %v1823 = vpop.f32.mrb[0].mxu0
      %1824 = vmatprep.mubr.bf16.mxu0 %v1322
      %1825 = vmatmul.mubr.bf16.gmra.mrb[0].mxu0 %v1321
      %v1826 = vpop.f32.mrb[0].mxu0
      %v1827 = vadd.f32 0.0, %v1826
      %v1828 = vpop.f32.mrb[0].mxu0
      %v1829 = vpop.f32.mrb[0].mxu0
      %v1830 = vadd.f32 0.0, %v1829
      %v1831 = vpop.f32.mrb[0].mxu0
      %1832 = vmatprep.mubr.bf16.mxu0 %v1324
      %1833 = vmatmul.mubr.bf16.gmra.mrb[0].mxu0 %v1323
      %v1834 = vpop.f32.mrb[0].mxu0
      %v1835 = vadd.f32 0.0, %v1834
      %v1836 = vpop.f32.mrb[0].mxu0
      %v1837 = vpop.f32.mrb[0].mxu0
      %v1838 = vadd.f32 0.0, %v1837
      %v1839 = vpop.f32.mrb[0].mxu0
      %1840 = vmatprep.mubr.bf16.mxu0 %v1326
      %1841 = vmatmul.mubr.bf16.gmra.mrb[0].mxu0 %v1325
      %v1842 = vpop.f32.mrb[0].mxu0
      %v1843 = vadd.f32 0.0, %v1842
      %v1844 = vpop.f32.mrb[0].mxu0
      %v1845 = vpop.f32.mrb[0].mxu0
      %v1846 = vadd.f32 0.0, %v1845
      %v1847 = vpop.f32.mrb[0].mxu0
      %1848 = vmatprep.mubr.bf16.mxu0 %v1328
      %1849 = vmatmul.mubr.bf16.gmra.mrb[0].mxu0 %v1327
      %v1850 = vpop.f32.mrb[0].mxu0
      %v1851 = vadd.f32 0.0, %v1850
      %v1852 = vpop.f32.mrb[0].mxu0
      %v1853 = vpop.f32.mrb[0].mxu0
      %v1854 = vadd.f32 0.0, %v1853
      %v1855 = vpop.f32.mrb[0].mxu0
      %1856 = vmatprep.mubr.bf16.mxu0 %v1330
      %1857 = vmatmul.mubr.bf16.gmra.mrb[0].mxu0 %v1329
      %v1858 = vpop.f32.mrb[0].mxu0
      %v1859 = vadd.f32 0.0, %v1858
      %v1860 = vpop.f32.mrb[0].mxu0
      %v1861 = vpop.f32.mrb[0].mxu0
      %v1862 = vadd.f32 0.0, %v1861
      %v1863 = vpop.f32.mrb[0].mxu0
      %1864 = vmatprep.mubr.bf16.mxu0 %v1332
      %1865 = vmatmul.mubr.bf16.gmra.mrb[0].mxu0 %v1331
      %v1866 = vpop.f32.mrb[0].mxu0
      %v1867 = vadd.f32 0.0, %v1866
      %v1868 = vpop.f32.mrb[0].mxu0
      %v1869 = vpop.f32.mrb[0].mxu0
      %v1870 = vadd.f32 0.0, %v1869
      %v1871 = vpop.f32.mrb[0].mxu0
      %1872 = vmatprep.mubr.bf16.mxu0 %v1334
      %1873 = vmatmul.mubr.bf16.gmra.mrb[0].mxu0 %v1333
      %v1874 = vpop.f32.mrb[0].mxu0
      %v1875 = vadd.f32 0.0, %v1874
      %v1876 = vpop.f32.mrb[0].mxu0
      %v1877 = vpop.f32.mrb[0].mxu0
      %v1878 = vadd.f32 0.0, %v1877
      %v1879 = vpop.f32.mrb[0].mxu0
      %1880 = vdwg.mxu0
      %v1881 = vadd.f32 %v1688, %v1755
      %v1882 = vadd.f32 %v1689, %v1758
      %v1883 = vadd.f32 %v1690, %v1763
      %v1884 = vadd.f32 %v1691, %v1766
      %v1885 = vadd.f32 %v1692, %v1771
      %v1886 = vadd.f32 %v1693, %v1774
      %v1887 = vadd.f32 %v1694, %v1779
      %v1888 = vadd.f32 %v1695, %v1782
      %v1889 = vadd.f32 %v1696, %v1787
      %v1890 = vadd.f32 %v1697, %v1790
      %v1891 = vadd.f32 %v1698, %v1795
      %v1892 = vadd.f32 %v1699, %v1798
      %v1893 = vadd.f32 %v1700, %v1803
      %v1894 = vadd.f32 %v1701, %v1806
      %v1895 = vadd.f32 %v1702, %v1811
      %v1896 = vadd.f32 %v1703, %v1814
      %v1897 = vadd.f32 %v1704, %v1819
      %v1898 = vadd.f32 %v1705, %v1822
      %v1899 = vadd.f32 %v1706, %v1827
      %v1900 = vadd.f32 %v1707, %v1830
      %v1901 = vadd.f32 %v1708, %v1835
      %v1902 = vadd.f32 %v1709, %v1838
      %v1903 = vadd.f32 %v1710, %v1843
      %v1904 = vadd.f32 %v1711, %v1846
      %v1905 = vadd.f32 %v1712, %v1851
      %v1906 = vadd.f32 %v1713, %v1854
      %v1907 = vadd.f32 %v1714, %v1859
      %v1908 = vadd.f32 %v1715, %v1862
      %v1909 = vadd.f32 %v1716, %v1867
      %v1910 = vadd.f32 %v1717, %v1870
      %v1911 = vadd.f32 %v1718, %v1875
      %v1912 = vadd.f32 %v1719, %v1878
      %1913 = vst [vmem:[#allocation3] sm:$0xff] %v1881
      %1914 = vst [vmem:[#allocation3 + $0x8] sm:$0xff] %v1882
      %1915 = vst [vmem:[#allocation3 + $0x10] sm:$0xff] %v1883
      %1916 = vst [vmem:[#allocation3 + $0x18] sm:$0xff] %v1884
      %1917 = vst [vmem:[#allocation3 + $0x20] sm:$0xff] %v1885
      %1918 = vst [vmem:[#allocation3 + $0x28] sm:$0xff] %v1886
      %1919 = vst [vmem:[#allocation3 + $0x30] sm:$0xff] %v1887
      %1920 = vst [vmem:[#allocation3 + $0x38] sm:$0xff] %v1888
      %1921 = vst [vmem:[#allocation3 + $0x40] sm:$0xff] %v1889
      %1922 = vst [vmem:[#allocation3 + $0x48] sm:$0xff] %v1890
      %1923 = vst [vmem:[#allocation3 + $0x50] sm:$0xff] %v1891
      %1924 = vst [vmem:[#allocation3 + $0x58] sm:$0xff] %v1892
      %1925 = vst [vmem:[#allocation3 + $0x60] sm:$0xff] %v1893
      %1926 = vst [vmem:[#allocation3 + $0x68] sm:$0xff] %v1894
      %1927 = vst [vmem:[#allocation3 + $0x70] sm:$0xff] %v1895
      %1928 = vst [vmem:[#allocation3 + $0x78] sm:$0xff] %v1896
      %1929 = vst [vmem:[#allocation3 + $0x80] sm:$0xff] %v1897
      %1930 = vst [vmem:[#allocation3 + $0x88] sm:$0xff] %v1898
      %1931 = vst [vmem:[#allocation3 + $0x90] sm:$0xff] %v1899
      %1932 = vst [vmem:[#allocation3 + $0x98] sm:$0xff] %v1900
      %1933 = vst [vmem:[#allocation3 + $0xa0] sm:$0xff] %v1901
      %1934 = vst [vmem:[#allocation3 + $0xa8] sm:$0xff] %v1902
      %1935 = vst [vmem:[#allocation3 + $0xb0] sm:$0xff] %v1903
      %1936 = vst [vmem:[#allocation3 + $0xb8] sm:$0xff] %v1904
      %1937 = vst [vmem:[#allocation3 + $0xc0] sm:$0xff] %v1905
      %1938 = vst [vmem:[#allocation3 + $0xc8] sm:$0xff] %v1906
      %1939 = vst [vmem:[#allocation3 + $0xd0] sm:$0xff] %v1907
      %1940 = vst [vmem:[#allocation3 + $0xd8] sm:$0xff] %v1908
      %1941 = vst [vmem:[#allocation3 + $0xe0] sm:$0xff] %v1909
      %1942 = vst [vmem:[#allocation3 + $0xe8] sm:$0xff] %v1910
      %1943 = vst [vmem:[#allocation3 + $0xf0] sm:$0xff] %v1911
      %1944 = vst [vmem:[#allocation3 + $0xf8] sm:$0xff] %v1912
      %v1945 = vld [vmem:[#allocation4] sm:$0xff]
      %v1946 = vld [vmem:[#allocation4 + $0x8] sm:$0xff]
      %v1947 = vld [vmem:[#allocation4 + $0x10] sm:$0xff]
      %v1948 = vld [vmem:[#allocation4 + $0x18] sm:$0xff]
      %v1949 = vld [vmem:[#allocation4 + $0x20] sm:$0xff]
      %v1950 = vld [vmem:[#allocation4 + $0x28] sm:$0xff]
      %v1951 = vld [vmem:[#allocation4 + $0x30] sm:$0xff]
      %v1952 = vld [vmem:[#allocation4 + $0x38] sm:$0xff]
      %v1953 = vld [vmem:[#allocation4 + $0x40] sm:$0xff]
      %v1954 = vld [vmem:[#allocation4 + $0x48] sm:$0xff]
      %v1955 = vld [vmem:[#allocation4 + $0x50] sm:$0xff]
      %v1956 = vld [vmem:[#allocation4 + $0x58] sm:$0xff]
      %v1957 = vld [vmem:[#allocation4 + $0x60] sm:$0xff]
      %v1958 = vld [vmem:[#allocation4 + $0x68] sm:$0xff]
      %v1959 = vld [vmem:[#allocation4 + $0x70] sm:$0xff]
      %v1960 = vld [vmem:[#allocation4 + $0x78] sm:$0xff]
      %v1961 = vld [vmem:[#allocation4 + $0x80] sm:$0xff]
      %v1962 = vld [vmem:[#allocation4 + $0x88] sm:$0xff]
      %v1963 = vld [vmem:[#allocation4 + $0x90] sm:$0xff]
      %v1964 = vld [vmem:[#allocation4 + $0x98] sm:$0xff]
      %v1965 = vld [vmem:[#allocation4 + $0xa0] sm:$0xff]
      %v1966 = vld [vmem:[#allocation4 + $0xa8] sm:$0xff]
      %v1967 = vld [vmem:[#allocation4 + $0xb0] sm:$0xff]
      %v1968 = vld [vmem:[#allocation4 + $0xb8] sm:$0xff]
      %v1969 = vld [vmem:[#allocation4 + $0xc0] sm:$0xff]
      %v1970 = vld [vmem:[#allocation4 + $0xc8] sm:$0xff]
      %v1971 = vld [vmem:[#allocation4 + $0xd0] sm:$0xff]
      %v1972 = vld [vmem:[#allocation4 + $0xd8] sm:$0xff]
      %v1973 = vld [vmem:[#allocation4 + $0xe0] sm:$0xff]
      %v1974 = vld [vmem:[#allocation4 + $0xe8] sm:$0xff]
      %v1975 = vld [vmem:[#allocation4 + $0xf0] sm:$0xff]
      %v1976 = vld [vmem:[#allocation4 + $0xf8] sm:$0xff]
      %v1977 = vld [vmem:[#allocation4 + $0x100] sm:$0xff]
      %v1978 = vld [vmem:[#allocation4 + $0x108] sm:$0xff]
      %v1979 = vld [vmem:[#allocation4 + $0x110] sm:$0xff]
      %v1980 = vld [vmem:[#allocation4 + $0x118] sm:$0xff]
      %v1981 = vld [vmem:[#allocation4 + $0x120] sm:$0xff]
      %v1982 = vld [vmem:[#allocation4 + $0x128] sm:$0xff]
      %v1983 = vld [vmem:[#allocation4 + $0x130] sm:$0xff]
      %v1984 = vld [vmem:[#allocation4 + $0x138] sm:$0xff]
      %v1985 = vld [vmem:[#allocation4 + $0x140] sm:$0xff]
      %v1986 = vld [vmem:[#allocation4 + $0x148] sm:$0xff]
      %v1987 = vld [vmem:[#allocation4 + $0x150] sm:$0xff]
      %v1988 = vld [vmem:[#allocation4 + $0x158] sm:$0xff]
      %v1989 = vld [vmem:[#allocation4 + $0x160] sm:$0xff]
      %v1990 = vld [vmem:[#allocation4 + $0x168] sm:$0xff]
      %v1991 = vld [vmem:[#allocation4 + $0x170] sm:$0xff]
      %v1992 = vld [vmem:[#allocation4 + $0x178] sm:$0xff]
      %v1993 = vld [vmem:[#allocation4 + $0x180] sm:$0xff]
      %v1994 = vld [vmem:[#allocation4 + $0x188] sm:$0xff]
      %v1995 = vld [vmem:[#allocation4 + $0x190] sm:$0xff]
      %v1996 = vld [vmem:[#allocation4 + $0x198] sm:$0xff]
      %v1997 = vld [vmem:[#allocation4 + $0x1a0] sm:$0xff]
      %v1998 = vld [vmem:[#allocation4 + $0x1a8] sm:$0xff]
      %v1999 = vld [vmem:[#allocation4 + $0x1b0] sm:$0xff]
      %v2000 = vld [vmem:[#allocation4 + $0x1b8] sm:$0xff]
      %v2001 = vld [vmem:[#allocation4 + $0x1c0] sm:$0xff]
      %v2002 = vld [vmem:[#allocation4 + $0x1c8] sm:$0xff]
      %v2003 = vld [vmem:[#allocation4 + $0x1d0] sm:$0xff]
      %v2004 = vld [vmem:[#allocation4 + $0x1d8] sm:$0xff]
      %v2005 = vld [vmem:[#allocation4 + $0x1e0] sm:$0xff]
      %v2006 = vld [vmem:[#allocation4 + $0x1e8] sm:$0xff]
      %v2007 = vld [vmem:[#allocation4 + $0x1f0] sm:$0xff]
      %v2008 = vld [vmem:[#allocation4 + $0x1f8] sm:$0xff]
      %2009 = vmatprep.subr.bf16.mxu0 %v1304
      %2010 = vmatpush1.bf16.xpose.msra.mxu0 %v1303
      %2011 = vmatprep.subr.bf16.mxu0 %v1306
      %2012 = vmatpush1.bf16.xpose.msra.mxu0 %v1305
      %2013 = vmatprep.subr.bf16.mxu0 %v1308
      %2014 = vmatpush1.bf16.xpose.msra.mxu0 %v1307
      %2015 = vmatprep.subr.bf16.mxu0 %v1310
      %2016 = vmatpush1.bf16.xpose.msra.mxu0 %v1309
      %2017 = vmatprep.subr.bf16.mxu0 %v1312
      %2018 = vmatpush1.bf16.xpose.msra.mxu0 %v1311
      %2019 = vmatprep.subr.bf16.mxu0 %v1314
      %2020 = vmatpush1.bf16.xpose.msra.mxu0 %v1313
      %2021 = vmatprep.subr.bf16.mxu0 %v1316
      %2022 = vmatpush1.bf16.xpose.msra.mxu0 %v1315
      %2023 = vmatprep.subr.bf16.mxu0 %v1318
      %2024 = vmatpush1.bf16.xpose.msra.mxu0 %v1317
      %2025 = vmatprep.subr.bf16.mxu0 %v1320
      %2026 = vmatpush1.bf16.xpose.msra.mxu0 %v1319
      %2027 = vmatprep.subr.bf16.mxu0 %v1322
      %2028 = vmatpush1.bf16.xpose.msra.mxu0 %v1321
      %2029 = vmatprep.subr.bf16.mxu0 %v1324
      %2030 = vmatpush1.bf16.xpose.msra.mxu0 %v1323
      %2031 = vmatprep.subr.bf16.mxu0 %v1326
      %2032 = vmatpush1.bf16.xpose.msra.mxu0 %v1325
      %2033 = vmatprep.subr.bf16.mxu0 %v1328
      %2034 = vmatpush1.bf16.xpose.msra.mxu0 %v1327
      %2035 = vmatprep.subr.bf16.mxu0 %v1330
      %2036 = vmatpush1.bf16.xpose.msra.mxu0 %v1329
      %2037 = vmatprep.subr.bf16.mxu0 %v1332
      %2038 = vmatpush1.bf16.xpose.msra.mxu0 %v1331
      %2039 = vmatprep.subr.bf16.mxu0 %v1334
      %2040 = vmatpush1.bf16.xpose.msra.mxu0 %v1333
      %2041 = vmatprep.mubr.bf16.mxu0 %v939
      %2042 = vmatmul.mubr.bf16.gmra.mrb[0].mxu0 %v938
      %v2043 = vpop.f32.mrb[0].mxu0
      %v2044 = vadd.f32 0.0, %v2043
      %v2045 = vpop.f32.mrb[0].mxu0
      %v2046 = vadd.f32 0.0, %v2045
      %v2047 = vpop.f32.mrb[0].mxu0
      %v2048 = vadd.f32 0.0, %v2047
      %v2049 = vpop.f32.mrb[0].mxu0
      %v2050 = vadd.f32 0.0, %v2049
      %2051 = vmatprep.mubr.bf16.mxu0 %v941
      %2052 = vmatmul.mubr.bf16.gmra.mrb[0].mxu0 %v940
      %v2053 = vpop.f32.mrb[0].mxu0
      %v2054 = vadd.f32 0.0, %v2053
      %v2055 = vpop.f32.mrb[0].mxu0
      %v2056 = vadd.f32 0.0, %v2055
      %v2057 = vpop.f32.mrb[0].mxu0
      %v2058 = vadd.f32 0.0, %v2057
      %v2059 = vpop.f32.mrb[0].mxu0
      %v2060 = vadd.f32 0.0, %v2059
      %2061 = vmatprep.mubr.bf16.mxu0 %v943
      %2062 = vmatmul.mubr.bf16.gmra.mrb[0].mxu0 %v942
      %v2063 = vpop.f32.mrb[0].mxu0
      %v2064 = vadd.f32 0.0, %v2063
      %v2065 = vpop.f32.mrb[0].mxu0
      %v2066 = vadd.f32 0.0, %v2065
      %v2067 = vpop.f32.mrb[0].mxu0
      %v2068 = vadd.f32 0.0, %v2067
      %v2069 = vpop.f32.mrb[0].mxu0
      %v2070 = vadd.f32 0.0, %v2069
      %2071 = vmatprep.mubr.bf16.mxu0 %v945
      %2072 = vmatmul.mubr.bf16.gmra.mrb[0].mxu0 %v944
      %v2073 = vpop.f32.mrb[0].mxu0
      %v2074 = vadd.f32 0.0, %v2073
      %v2075 = vpop.f32.mrb[0].mxu0
      %v2076 = vadd.f32 0.0, %v2075
      %v2077 = vpop.f32.mrb[0].mxu0
      %v2078 = vadd.f32 0.0, %v2077
      %v2079 = vpop.f32.mrb[0].mxu0
      %v2080 = vadd.f32 0.0, %v2079
      %2081 = vmatprep.mubr.bf16.mxu0 %v947
      %2082 = vmatmul.mubr.bf16.gmra.mrb[0].mxu0 %v946
      %v2083 = vpop.f32.mrb[0].mxu0
      %v2084 = vadd.f32 0.0, %v2083
      %v2085 = vpop.f32.mrb[0].mxu0
      %v2086 = vadd.f32 0.0, %v2085
      %v2087 = vpop.f32.mrb[0].mxu0
      %v2088 = vadd.f32 0.0, %v2087
      %v2089 = vpop.f32.mrb[0].mxu0
      %v2090 = vadd.f32 0.0, %v2089
      %2091 = vmatprep.mubr.bf16.mxu0 %v949
      %2092 = vmatmul.mubr.bf16.gmra.mrb[0].mxu0 %v948
      %v2093 = vpop.f32.mrb[0].mxu0
      %v2094 = vadd.f32 0.0, %v2093
      %v2095 = vpop.f32.mrb[0].mxu0
      %v2096 = vadd.f32 0.0, %v2095
      %v2097 = vpop.f32.mrb[0].mxu0
      %v2098 = vadd.f32 0.0, %v2097
      %v2099 = vpop.f32.mrb[0].mxu0
      %v2100 = vadd.f32 0.0, %v2099
      %2101 = vmatprep.mubr.bf16.mxu0 %v951
      %2102 = vmatmul.mubr.bf16.gmra.mrb[0].mxu0 %v950
      %v2103 = vpop.f32.mrb[0].mxu0
      %v2104 = vadd.f32 0.0, %v2103
      %v2105 = vpop.f32.mrb[0].mxu0
      %v2106 = vadd.f32 0.0, %v2105
      %v2107 = vpop.f32.mrb[0].mxu0
      %v2108 = vadd.f32 0.0, %v2107
      %v2109 = vpop.f32.mrb[0].mxu0
      %v2110 = vadd.f32 0.0, %v2109
      %2111 = vmatprep.mubr.bf16.mxu0 %v953
      %2112 = vmatmul.mubr.bf16.gmra.mrb[0].mxu0 %v952
      %v2113 = vpop.f32.mrb[0].mxu0
      %v2114 = vadd.f32 0.0, %v2113
      %v2115 = vpop.f32.mrb[0].mxu0
      %v2116 = vadd.f32 0.0, %v2115
      %v2117 = vpop.f32.mrb[0].mxu0
      %v2118 = vadd.f32 0.0, %v2117
      %v2119 = vpop.f32.mrb[0].mxu0
      %v2120 = vadd.f32 0.0, %v2119
      %2121 = vmatprep.mubr.bf16.mxu0 %v955
      %2122 = vmatmul.mubr.bf16.gmra.mrb[0].mxu0 %v954
      %v2123 = vpop.f32.mrb[0].mxu0
      %v2124 = vadd.f32 0.0, %v2123
      %v2125 = vpop.f32.mrb[0].mxu0
      %v2126 = vadd.f32 0.0, %v2125
      %v2127 = vpop.f32.mrb[0].mxu0
      %v2128 = vadd.f32 0.0, %v2127
      %v2129 = vpop.f32.mrb[0].mxu0
      %v2130 = vadd.f32 0.0, %v2129
      %2131 = vmatprep.mubr.bf16.mxu0 %v957
      %2132 = vmatmul.mubr.bf16.gmra.mrb[0].mxu0 %v956
      %v2133 = vpop.f32.mrb[0].mxu0
      %v2134 = vadd.f32 0.0, %v2133
      %v2135 = vpop.f32.mrb[0].mxu0
      %v2136 = vadd.f32 0.0, %v2135
      %v2137 = vpop.f32.mrb[0].mxu0
      %v2138 = vadd.f32 0.0, %v2137
      %v2139 = vpop.f32.mrb[0].mxu0
      %v2140 = vadd.f32 0.0, %v2139
      %2141 = vmatprep.mubr.bf16.mxu0 %v959
      %2142 = vmatmul.mubr.bf16.gmra.mrb[0].mxu0 %v958
      %v2143 = vpop.f32.mrb[0].mxu0
      %v2144 = vadd.f32 0.0, %v2143
      %v2145 = vpop.f32.mrb[0].mxu0
      %v2146 = vadd.f32 0.0, %v2145
      %v2147 = vpop.f32.mrb[0].mxu0
      %v2148 = vadd.f32 0.0, %v2147
      %v2149 = vpop.f32.mrb[0].mxu0
      %v2150 = vadd.f32 0.0, %v2149
      %2151 = vmatprep.mubr.bf16.mxu0 %v961
      %2152 = vmatmul.mubr.bf16.gmra.mrb[0].mxu0 %v960
      %v2153 = vpop.f32.mrb[0].mxu0
      %v2154 = vadd.f32 0.0, %v2153
      %v2155 = vpop.f32.mrb[0].mxu0
      %v2156 = vadd.f32 0.0, %v2155
      %v2157 = vpop.f32.mrb[0].mxu0
      %v2158 = vadd.f32 0.0, %v2157
      %v2159 = vpop.f32.mrb[0].mxu0
      %v2160 = vadd.f32 0.0, %v2159
      %2161 = vmatprep.mubr.bf16.mxu0 %v963
      %2162 = vmatmul.mubr.bf16.gmra.mrb[0].mxu0 %v962
      %v2163 = vpop.f32.mrb[0].mxu0
      %v2164 = vadd.f32 0.0, %v2163
      %v2165 = vpop.f32.mrb[0].mxu0
      %v2166 = vadd.f32 0.0, %v2165
      %v2167 = vpop.f32.mrb[0].mxu0
      %v2168 = vadd.f32 0.0, %v2167
      %v2169 = vpop.f32.mrb[0].mxu0
      %v2170 = vadd.f32 0.0, %v2169
      %2171 = vmatprep.mubr.bf16.mxu0 %v965
      %2172 = vmatmul.mubr.bf16.gmra.mrb[0].mxu0 %v964
      %v2173 = vpop.f32.mrb[0].mxu0
      %v2174 = vadd.f32 0.0, %v2173
      %v2175 = vpop.f32.mrb[0].mxu0
      %v2176 = vadd.f32 0.0, %v2175
      %v2177 = vpop.f32.mrb[0].mxu0
      %v2178 = vadd.f32 0.0, %v2177
      %v2179 = vpop.f32.mrb[0].mxu0
      %v2180 = vadd.f32 0.0, %v2179
      %2181 = vmatprep.mubr.bf16.mxu0 %v967
      %2182 = vmatmul.mubr.bf16.gmra.mrb[0].mxu0 %v966
      %v2183 = vpop.f32.mrb[0].mxu0
      %v2184 = vadd.f32 0.0, %v2183
      %v2185 = vpop.f32.mrb[0].mxu0
      %v2186 = vadd.f32 0.0, %v2185
      %v2187 = vpop.f32.mrb[0].mxu0
      %v2188 = vadd.f32 0.0, %v2187
      %v2189 = vpop.f32.mrb[0].mxu0
      %v2190 = vadd.f32 0.0, %v2189
      %2191 = vmatprep.mubr.bf16.mxu0 %v969
      %2192 = vmatmul.mubr.bf16.gmra.mrb[0].mxu0 %v968
      %v2193 = vpop.f32.mrb[0].mxu0
      %v2194 = vadd.f32 0.0, %v2193
      %v2195 = vpop.f32.mrb[0].mxu0
      %v2196 = vadd.f32 0.0, %v2195
      %v2197 = vpop.f32.mrb[0].mxu0
      %v2198 = vadd.f32 0.0, %v2197
      %v2199 = vpop.f32.mrb[0].mxu0
      %v2200 = vadd.f32 0.0, %v2199
      %2201 = vdwg.mxu0
      %v2202 = vadd.f32 %v1945, %v2044
      %v2203 = vadd.f32 %v1946, %v2046
      %v2204 = vadd.f32 %v1947, %v2048
      %v2205 = vadd.f32 %v1948, %v2050
      %v2206 = vadd.f32 %v1949, %v2054
      %v2207 = vadd.f32 %v1950, %v2056
      %v2208 = vadd.f32 %v1951, %v2058
      %v2209 = vadd.f32 %v1952, %v2060
      %v2210 = vadd.f32 %v1953, %v2064
      %v2211 = vadd.f32 %v1954, %v2066
      %v2212 = vadd.f32 %v1955, %v2068
      %v2213 = vadd.f32 %v1956, %v2070
      %v2214 = vadd.f32 %v1957, %v2074
      %v2215 = vadd.f32 %v1958, %v2076
      %v2216 = vadd.f32 %v1959, %v2078
      %v2217 = vadd.f32 %v1960, %v2080
      %v2218 = vadd.f32 %v1961, %v2084
      %v2219 = vadd.f32 %v1962, %v2086
      %v2220 = vadd.f32 %v1963, %v2088
      %v2221 = vadd.f32 %v1964, %v2090
      %v2222 = vadd.f32 %v1965, %v2094
      %v2223 = vadd.f32 %v1966, %v2096
      %v2224 = vadd.f32 %v1967, %v2098
      %v2225 = vadd.f32 %v1968, %v2100
      %v2226 = vadd.f32 %v1969, %v2104
      %v2227 = vadd.f32 %v1970, %v2106
      %v2228 = vadd.f32 %v1971, %v2108
      %v2229 = vadd.f32 %v1972, %v2110
      %v2230 = vadd.f32 %v1973, %v2114
      %v2231 = vadd.f32 %v1974, %v2116
      %v2232 = vadd.f32 %v1975, %v2118
      %v2233 = vadd.f32 %v1976, %v2120
      %v2234 = vadd.f32 %v1977, %v2124
      %v2235 = vadd.f32 %v1978, %v2126
      %v2236 = vadd.f32 %v1979, %v2128
      %v2237 = vadd.f32 %v1980, %v2130
      %v2238 = vadd.f32 %v1981, %v2134
      %v2239 = vadd.f32 %v1982, %v2136
      %v2240 = vadd.f32 %v1983, %v2138
      %v2241 = vadd.f32 %v1984, %v2140
      %v2242 = vadd.f32 %v1985, %v2144
      %v2243 = vadd.f32 %v1986, %v2146
      %v2244 = vadd.f32 %v1987, %v2148
      %v2245 = vadd.f32 %v1988, %v2150
      %v2246 = vadd.f32 %v1989, %v2154
      %v2247 = vadd.f32 %v1990, %v2156
      %v2248 = vadd.f32 %v1991, %v2158
      %v2249 = vadd.f32 %v1992, %v2160
      %v2250 = vadd.f32 %v1993, %v2164
      %v2251 = vadd.f32 %v1994, %v2166
      %v2252 = vadd.f32 %v1995, %v2168
      %v2253 = vadd.f32 %v1996, %v2170
      %v2254 = vadd.f32 %v1997, %v2174
      %v2255 = vadd.f32 %v1998, %v2176
      %v2256 = vadd.f32 %v1999, %v2178
      %v2257 = vadd.f32 %v2000, %v2180
      %v2258 = vadd.f32 %v2001, %v2184
      %v2259 = vadd.f32 %v2002, %v2186
      %v2260 = vadd.f32 %v2003, %v2188
      %v2261 = vadd.f32 %v2004, %v2190
      %v2262 = vadd.f32 %v2005, %v2194
      %v2263 = vadd.f32 %v2006, %v2196
      %v2264 = vadd.f32 %v2007, %v2198
      %v2265 = vadd.f32 %v2008, %v2200
      %2266 = vst [vmem:[#allocation4] sm:$0xff] %v2202
      %2267 = vst [vmem:[#allocation4 + $0x8] sm:$0xff] %v2203
      %2268 = vst [vmem:[#allocation4 + $0x10] sm:$0xff] %v2204
      %2269 = vst [vmem:[#allocation4 + $0x18] sm:$0xff] %v2205
      %2270 = vst [vmem:[#allocation4 + $0x20] sm:$0xff] %v2206
      %2271 = vst [vmem:[#allocation4 + $0x28] sm:$0xff] %v2207
      %2272 = vst [vmem:[#allocation4 + $0x30] sm:$0xff] %v2208
      %2273 = vst [vmem:[#allocation4 + $0x38] sm:$0xff] %v2209
      %2274 = vst [vmem:[#allocation4 + $0x40] sm:$0xff] %v2210
      %2275 = vst [vmem:[#allocation4 + $0x48] sm:$0xff] %v2211
      %2276 = vst [vmem:[#allocation4 + $0x50] sm:$0xff] %v2212
      %2277 = vst [vmem:[#allocation4 + $0x58] sm:$0xff] %v2213
      %2278 = vst [vmem:[#allocation4 + $0x60] sm:$0xff] %v2214
      %2279 = vst [vmem:[#allocation4 + $0x68] sm:$0xff] %v2215
      %2280 = vst [vmem:[#allocation4 + $0x70] sm:$0xff] %v2216
      %2281 = vst [vmem:[#allocation4 + $0x78] sm:$0xff] %v2217
      %2282 = vst [vmem:[#allocation4 + $0x80] sm:$0xff] %v2218
      %2283 = vst [vmem:[#allocation4 + $0x88] sm:$0xff] %v2219
      %2284 = vst [vmem:[#allocation4 + $0x90] sm:$0xff] %v2220
      %2285 = vst [vmem:[#allocation4 + $0x98] sm:$0xff] %v2221
      %2286 = vst [vmem:[#allocation4 + $0xa0] sm:$0xff] %v2222
      %2287 = vst [vmem:[#allocation4 + $0xa8] sm:$0xff] %v2223
      %2288 = vst [vmem:[#allocation4 + $0xb0] sm:$0xff] %v2224
      %2289 = vst [vmem:[#allocation4 + $0xb8] sm:$0xff] %v2225
      %2290 = vst [vmem:[#allocation4 + $0xc0] sm:$0xff] %v2226
      %2291 = vst [vmem:[#allocation4 + $0xc8] sm:$0xff] %v2227
      %2292 = vst [vmem:[#allocation4 + $0xd0] sm:$0xff] %v2228
      %2293 = vst [vmem:[#allocation4 + $0xd8] sm:$0xff] %v2229
      %2294 = vst [vmem:[#allocation4 + $0xe0] sm:$0xff] %v2230
      %2295 = vst [vmem:[#allocation4 + $0xe8] sm:$0xff] %v2231
      %2296 = vst [vmem:[#allocation4 + $0xf0] sm:$0xff] %v2232
      %2297 = vst [vmem:[#allocation4 + $0xf8] sm:$0xff] %v2233
      %2298 = vst [vmem:[#allocation4 + $0x100] sm:$0xff] %v2234
      %2299 = vst [vmem:[#allocation4 + $0x108] sm:$0xff] %v2235
      %2300 = vst [vmem:[#allocation4 + $0x110] sm:$0xff] %v2236
      %2301 = vst [vmem:[#allocation4 + $0x118] sm:$0xff] %v2237
      %2302 = vst [vmem:[#allocation4 + $0x120] sm:$0xff] %v2238
      %2303 = vst [vmem:[#allocation4 + $0x128] sm:$0xff] %v2239
      %2304 = vst [vmem:[#allocation4 + $0x130] sm:$0xff] %v2240
      %2305 = vst [vmem:[#allocation4 + $0x138] sm:$0xff] %v2241
      %2306 = vst [vmem:[#allocation4 + $0x140] sm:$0xff] %v2242
      %2307 = vst [vmem:[#allocation4 + $0x148] sm:$0xff] %v2243
      %2308 = vst [vmem:[#allocation4 + $0x150] sm:$0xff] %v2244
      %2309 = vst [vmem:[#allocation4 + $0x158] sm:$0xff] %v2245
      %2310 = vst [vmem:[#allocation4 + $0x160] sm:$0xff] %v2246
      %2311 = vst [vmem:[#allocation4 + $0x168] sm:$0xff] %v2247
      %2312 = vst [vmem:[#allocation4 + $0x170] sm:$0xff] %v2248
      %2313 = vst [vmem:[#allocation4 + $0x178] sm:$0xff] %v2249
      %2314 = vst [vmem:[#allocation4 + $0x180] sm:$0xff] %v2250
      %2315 = vst [vmem:[#allocation4 + $0x188] sm:$0xff] %v2251
      %2316 = vst [vmem:[#allocation4 + $0x190] sm:$0xff] %v2252
      %2317 = vst [vmem:[#allocation4 + $0x198] sm:$0xff] %v2253
      %2318 = vst [vmem:[#allocation4 + $0x1a0] sm:$0xff] %v2254
      %2319 = vst [vmem:[#allocation4 + $0x1a8] sm:$0xff] %v2255
      %2320 = vst [vmem:[#allocation4 + $0x1b0] sm:$0xff] %v2256
      %2321 = vst [vmem:[#allocation4 + $0x1b8] sm:$0xff] %v2257
      %2322 = vst [vmem:[#allocation4 + $0x1c0] sm:$0xff] %v2258
      %2323 = vst [vmem:[#allocation4 + $0x1c8] sm:$0xff] %v2259
      %2324 = vst [vmem:[#allocation4 + $0x1d0] sm:$0xff] %v2260
      %2325 = vst [vmem:[#allocation4 + $0x1d8] sm:$0xff] %v2261
      %2326 = vst [vmem:[#allocation4 + $0x1e0] sm:$0xff] %v2262
      %2327 = vst [vmem:[#allocation4 + $0x1e8] sm:$0xff] %v2263
      %2328 = vst [vmem:[#allocation4 + $0x1f0] sm:$0xff] %v2264
      %2329 = vst [vmem:[#allocation4 + $0x1f8] sm:$0xff] %v2265
      // Predicated region
      $region41: #{tpu_custom_call.1} parent=35 // pred_check
        %p2330 = pneg %p249
      $region42: #{tpu_custom_call.1} parent=35 // pred_check_branch
        %2332 = sbr.rel (%p2330) target = $region44
      $region43: #{tpu_custom_call.1} parent=35 // pred_region
        %v2333 = vld [vmem:[#allocation2] sm:$0xff]
        %v2334 = vld [vmem:[#allocation2 + $0x8] sm:$0xff]
        %v2335 = vld [vmem:[#allocation2 + $0x10] sm:$0xff]
        %v2336 = vld [vmem:[#allocation2 + $0x18] sm:$0xff]
        %v2337 = vld [vmem:[#allocation2 + $0x20] sm:$0xff]
        %v2338 = vld [vmem:[#allocation2 + $0x28] sm:$0xff]
        %v2339 = vld [vmem:[#allocation2 + $0x30] sm:$0xff]
        %v2340 = vld [vmem:[#allocation2 + $0x38] sm:$0xff]
        %v2341 = vld [vmem:[#allocation2 + $0x40] sm:$0xff]
        %v2342 = vld [vmem:[#allocation2 + $0x48] sm:$0xff]
        %v2343 = vld [vmem:[#allocation2 + $0x50] sm:$0xff]
        %v2344 = vld [vmem:[#allocation2 + $0x58] sm:$0xff]
        %v2345 = vld [vmem:[#allocation2 + $0x60] sm:$0xff]
        %v2346 = vld [vmem:[#allocation2 + $0x68] sm:$0xff]
        %v2347 = vld [vmem:[#allocation2 + $0x70] sm:$0xff]
        %v2348 = vld [vmem:[#allocation2 + $0x78] sm:$0xff]
        %v2349 = vld [vmem:[#allocation2 + $0x80] sm:$0xff]
        %v2350 = vld [vmem:[#allocation2 + $0x88] sm:$0xff]
        %v2351 = vld [vmem:[#allocation2 + $0x90] sm:$0xff]
        %v2352 = vld [vmem:[#allocation2 + $0x98] sm:$0xff]
        %v2353 = vld [vmem:[#allocation2 + $0xa0] sm:$0xff]
        %v2354 = vld [vmem:[#allocation2 + $0xa8] sm:$0xff]
        %v2355 = vld [vmem:[#allocation2 + $0xb0] sm:$0xff]
        %v2356 = vld [vmem:[#allocation2 + $0xb8] sm:$0xff]
        %v2357 = vld [vmem:[#allocation2 + $0xc0] sm:$0xff]
        %v2358 = vld [vmem:[#allocation2 + $0xc8] sm:$0xff]
        %v2359 = vld [vmem:[#allocation2 + $0xd0] sm:$0xff]
        %v2360 = vld [vmem:[#allocation2 + $0xd8] sm:$0xff]
        %v2361 = vld [vmem:[#allocation2 + $0xe0] sm:$0xff]
        %v2362 = vld [vmem:[#allocation2 + $0xe8] sm:$0xff]
        %v2363 = vld [vmem:[#allocation2 + $0xf0] sm:$0xff]
        %v2364 = vld [vmem:[#allocation2 + $0xf8] sm:$0xff]
        %v2365 = vmul.f32 %v2333, 0.00390625
        %v2366 = vmul.f32 %v2334, 0.00390625
        %v2367 = vmul.f32 %v2335, 0.00390625
        %v2368 = vmul.f32 %v2336, 0.00390625
        %v2369 = vmul.f32 %v2337, 0.00390625
        %v2370 = vmul.f32 %v2338, 0.00390625
        %v2371 = vmul.f32 %v2339, 0.00390625
        %v2372 = vmul.f32 %v2340, 0.00390625
        %v2373 = vmul.f32 %v2341, 0.00390625
        %v2374 = vmul.f32 %v2342, 0.00390625
        %v2375 = vmul.f32 %v2343, 0.00390625
        %v2376 = vmul.f32 %v2344, 0.00390625
        %v2377 = vmul.f32 %v2345, 0.00390625
        %v2378 = vmul.f32 %v2346, 0.00390625
        %v2379 = vmul.f32 %v2347, 0.00390625
        %v2380 = vmul.f32 %v2348, 0.00390625
        %v2381 = vmul.f32 %v2349, 0.00390625
        %v2382 = vmul.f32 %v2350, 0.00390625
        %v2383 = vmul.f32 %v2351, 0.00390625
        %v2384 = vmul.f32 %v2352, 0.00390625
        %v2385 = vmul.f32 %v2353, 0.00390625
        %v2386 = vmul.f32 %v2354, 0.00390625
        %v2387 = vmul.f32 %v2355, 0.00390625
        %v2388 = vmul.f32 %v2356, 0.00390625
        %v2389 = vmul.f32 %v2357, 0.00390625
        %v2390 = vmul.f32 %v2358, 0.00390625
        %v2391 = vmul.f32 %v2359, 0.00390625
        %v2392 = vmul.f32 %v2360, 0.00390625
        %v2393 = vmul.f32 %v2361, 0.00390625
        %v2394 = vmul.f32 %v2362, 0.00390625
        %v2395 = vmul.f32 %v2363, 0.00390625
        %v2396 = vmul.f32 %v2364, 0.00390625
        %vm2397 = vcmask 7168
        %v2398 = vsel %vm2397, %v2365, 0.0
        %v2399 = vsel %vm2397, %v2366, 0.0
        %v2400 = vadd.f32 %v2398, %v2399
        %v2401 = vsel %vm2397, %v2367, 0.0
        %v2402 = vadd.f32 %v2400, %v2401
        %v2403 = vsel %vm2397, %v2368, 0.0
        %v2404 = vadd.f32 %v2402, %v2403
        %v2405 = vsel %vm2397, %v2369, 0.0
        %v2406 = vadd.f32 %v2404, %v2405
        %v2407 = vsel %vm2397, %v2370, 0.0
        %v2408 = vadd.f32 %v2406, %v2407
        %v2409 = vsel %vm2397, %v2371, 0.0
        %v2410 = vadd.f32 %v2408, %v2409
        %v2411 = vsel %vm2397, %v2372, 0.0
        %v2412 = vadd.f32 %v2410, %v2411
        %v2413 = vsel %vm2397, %v2373, 0.0
        %v2414 = vadd.f32 %v2412, %v2413
        %v2415 = vsel %vm2397, %v2374, 0.0
        %v2416 = vadd.f32 %v2414, %v2415
        %v2417 = vsel %vm2397, %v2375, 0.0
        %v2418 = vadd.f32 %v2416, %v2417
        %v2419 = vsel %vm2397, %v2376, 0.0
        %v2420 = vadd.f32 %v2418, %v2419
        %v2421 = vsel %vm2397, %v2377, 0.0
        %v2422 = vadd.f32 %v2420, %v2421
        %v2423 = vsel %vm2397, %v2378, 0.0
        %v2424 = vadd.f32 %v2422, %v2423
        %v2425 = vsel %vm2397, %v2379, 0.0
        %v2426 = vadd.f32 %v2424, %v2425
        %v2427 = vsel %vm2397, %v2380, 0.0
        %v2428 = vadd.f32 %v2426, %v2427
        %v2429 = vsel %vm2397, %v2381, 0.0
        %v2430 = vadd.f32 %v2428, %v2429
        %v2431 = vsel %vm2397, %v2382, 0.0
        %v2432 = vadd.f32 %v2430, %v2431
        %v2433 = vsel %vm2397, %v2383, 0.0
        %v2434 = vadd.f32 %v2432, %v2433
        %v2435 = vsel %vm2397, %v2384, 0.0
        %v2436 = vadd.f32 %v2434, %v2435
        %v2437 = vsel %vm2397, %v2385, 0.0
        %v2438 = vadd.f32 %v2436, %v2437
        %v2439 = vsel %vm2397, %v2386, 0.0
        %v2440 = vadd.f32 %v2438, %v2439
        %v2441 = vsel %vm2397, %v2387, 0.0
        %v2442 = vadd.f32 %v2440, %v2441
        %v2443 = vsel %vm2397, %v2388, 0.0
        %v2444 = vadd.f32 %v2442, %v2443
        %v2445 = vsel %vm2397, %v2389, 0.0
        %v2446 = vadd.f32 %v2444, %v2445
        %v2447 = vsel %vm2397, %v2390, 0.0
        %v2448 = vadd.f32 %v2446, %v2447
        %v2449 = vsel %vm2397, %v2391, 0.0
        %v2450 = vadd.f32 %v2448, %v2449
        %v2451 = vsel %vm2397, %v2392, 0.0
        %v2452 = vadd.f32 %v2450, %v2451
        %v2453 = vsel %vm2397, %v2393, 0.0
        %v2454 = vadd.f32 %v2452, %v2453
        %v2455 = vsel %vm2397, %v2394, 0.0
        %v2456 = vadd.f32 %v2454, %v2455
        %v2457 = vsel %vm2397, %v2395, 0.0
        %v2458 = vadd.f32 %v2456, %v2457
        %v2459 = vsel %vm2397, %v2396, 0.0
        %v2460 = vadd.f32 %v2458, %v2459
        %2461 = vadd.xlane.f32.xlu0 %v2460
        %v2462 = vpop.xlane.xlu0 %2461
        %v2463 = vrot.slane %v2462, 4
        %v2464 = vadd.f32 %v2462, %v2463
        %v2465 = vrot.slane %v2464, 2
        %v2466 = vadd.f32 %v2464, %v2465
        %v2467 = vrot.slane %v2466, 1
        %v2468 = vadd.f32 %v2466, %v2467
        %s2469 = vtos %v2468
        %s2470 = sadd.f32 %s2469, 1e-10
        %v2471 = vstv %s2470
        %v2472 = vrcp.pop %v2471
        %s2473 = vtos %v2472
        %v2474 = vstv %s2473
        %v2475 = vmul.f32 %v2365, %v2474
        %v2476 = vmul.f32 %v2366, %v2474
        %v2477 = vmul.f32 %v2367, %v2474
        %v2478 = vmul.f32 %v2368, %v2474
        %v2479 = vmul.f32 %v2369, %v2474
        %v2480 = vmul.f32 %v2370, %v2474
        %v2481 = vmul.f32 %v2371, %v2474
        %v2482 = vmul.f32 %v2372, %v2474
        %v2483 = vmul.f32 %v2373, %v2474
        %v2484 = vmul.f32 %v2374, %v2474
        %v2485 = vmul.f32 %v2375, %v2474
        %v2486 = vmul.f32 %v2376, %v2474
        %v2487 = vmul.f32 %v2377, %v2474
        %v2488 = vmul.f32 %v2378, %v2474
        %v2489 = vmul.f32 %v2379, %v2474
        %v2490 = vmul.f32 %v2380, %v2474
        %v2491 = vmul.f32 %v2381, %v2474
        %v2492 = vmul.f32 %v2382, %v2474
        %v2493 = vmul.f32 %v2383, %v2474
        %v2494 = vmul.f32 %v2384, %v2474
        %v2495 = vmul.f32 %v2385, %v2474
        %v2496 = vmul.f32 %v2386, %v2474
        %v2497 = vmul.f32 %v2387, %v2474
        %v2498 = vmul.f32 %v2388, %v2474
        %v2499 = vmul.f32 %v2389, %v2474
        %v2500 = vmul.f32 %v2390, %v2474
        %v2501 = vmul.f32 %v2391, %v2474
        %v2502 = vmul.f32 %v2392, %v2474
        %v2503 = vmul.f32 %v2393, %v2474
        %v2504 = vmul.f32 %v2394, %v2474
        %v2505 = vmul.f32 %v2395, %v2474
        %v2506 = vmul.f32 %v2396, %v2474
        %v2507 = vld [vmem:[#allocation3] sm:$0xff]
        %v2508 = vld [vmem:[#allocation3 + $0x8] sm:$0xff]
        %v2509 = vld [vmem:[#allocation3 + $0x10] sm:$0xff]
        %v2510 = vld [vmem:[#allocation3 + $0x18] sm:$0xff]
        %v2511 = vld [vmem:[#allocation3 + $0x20] sm:$0xff]
        %v2512 = vld [vmem:[#allocation3 + $0x28] sm:$0xff]
        %v2513 = vld [vmem:[#allocation3 + $0x30] sm:$0xff]
        %v2514 = vld [vmem:[#allocation3 + $0x38] sm:$0xff]
        %v2515 = vld [vmem:[#allocation3 + $0x40] sm:$0xff]
        %v2516 = vld [vmem:[#allocation3 + $0x48] sm:$0xff]
        %v2517 = vld [vmem:[#allocation3 + $0x50] sm:$0xff]
        %v2518 = vld [vmem:[#allocation3 + $0x58] sm:$0xff]
        %v2519 = vld [vmem:[#allocation3 + $0x60] sm:$0xff]
        %v2520 = vld [vmem:[#allocation3 + $0x68] sm:$0xff]
        %v2521 = vld [vmem:[#allocation3 + $0x70] sm:$0xff]
        %v2522 = vld [vmem:[#allocation3 + $0x78] sm:$0xff]
        %v2523 = vld [vmem:[#allocation3 + $0x80] sm:$0xff]
        %v2524 = vld [vmem:[#allocation3 + $0x88] sm:$0xff]
        %v2525 = vld [vmem:[#allocation3 + $0x90] sm:$0xff]
        %v2526 = vld [vmem:[#allocation3 + $0x98] sm:$0xff]
        %v2527 = vld [vmem:[#allocation3 + $0xa0] sm:$0xff]
        %v2528 = vld [vmem:[#allocation3 + $0xa8] sm:$0xff]
        %v2529 = vld [vmem:[#allocation3 + $0xb0] sm:$0xff]
        %v2530 = vld [vmem:[#allocation3 + $0xb8] sm:$0xff]
        %v2531 = vld [vmem:[#allocation3 + $0xc0] sm:$0xff]
        %v2532 = vld [vmem:[#allocation3 + $0xc8] sm:$0xff]
        %v2533 = vld [vmem:[#allocation3 + $0xd0] sm:$0xff]
        %v2534 = vld [vmem:[#allocation3 + $0xd8] sm:$0xff]
        %v2535 = vld [vmem:[#allocation3 + $0xe0] sm:$0xff]
        %v2536 = vld [vmem:[#allocation3 + $0xe8] sm:$0xff]
        %v2537 = vld [vmem:[#allocation3 + $0xf0] sm:$0xff]
        %v2538 = vld [vmem:[#allocation3 + $0xf8] sm:$0xff]
        %v2539 = vmul.f32 %v2507, 0.00390625
        %v2540 = vmul.f32 %v2508, 0.00390625
        %v2541 = vmul.f32 %v2509, 0.00390625
        %v2542 = vmul.f32 %v2510, 0.00390625
        %v2543 = vmul.f32 %v2511, 0.00390625
        %v2544 = vmul.f32 %v2512, 0.00390625
        %v2545 = vmul.f32 %v2513, 0.00390625
        %v2546 = vmul.f32 %v2514, 0.00390625
        %v2547 = vmul.f32 %v2515, 0.00390625
        %v2548 = vmul.f32 %v2516, 0.00390625
        %v2549 = vmul.f32 %v2517, 0.00390625
        %v2550 = vmul.f32 %v2518, 0.00390625
        %v2551 = vmul.f32 %v2519, 0.00390625
        %v2552 = vmul.f32 %v2520, 0.00390625
        %v2553 = vmul.f32 %v2521, 0.00390625
        %v2554 = vmul.f32 %v2522, 0.00390625
        %v2555 = vmul.f32 %v2523, 0.00390625
        %v2556 = vmul.f32 %v2524, 0.00390625
        %v2557 = vmul.f32 %v2525, 0.00390625
        %v2558 = vmul.f32 %v2526, 0.00390625
        %v2559 = vmul.f32 %v2527, 0.00390625
        %v2560 = vmul.f32 %v2528, 0.00390625
        %v2561 = vmul.f32 %v2529, 0.00390625
        %v2562 = vmul.f32 %v2530, 0.00390625
        %v2563 = vmul.f32 %v2531, 0.00390625
        %v2564 = vmul.f32 %v2532, 0.00390625
        %v2565 = vmul.f32 %v2533, 0.00390625
        %v2566 = vmul.f32 %v2534, 0.00390625
        %v2567 = vmul.f32 %v2535, 0.00390625
        %v2568 = vmul.f32 %v2536, 0.00390625
        %v2569 = vmul.f32 %v2537, 0.00390625
        %v2570 = vmul.f32 %v2538, 0.00390625
        %v2571 = vsel %vm2397, %v2539, 0.0
        %v2572 = vsel %vm2397, %v2540, 0.0
        %v2573 = vadd.f32 %v2571, %v2572
        %v2574 = vsel %vm2397, %v2541, 0.0
        %v2575 = vadd.f32 %v2573, %v2574
        %v2576 = vsel %vm2397, %v2542, 0.0
        %v2577 = vadd.f32 %v2575, %v2576
        %v2578 = vsel %vm2397, %v2543, 0.0
        %v2579 = vadd.f32 %v2577, %v2578
        %v2580 = vsel %vm2397, %v2544, 0.0
        %v2581 = vadd.f32 %v2579, %v2580
        %v2582 = vsel %vm2397, %v2545, 0.0
        %v2583 = vadd.f32 %v2581, %v2582
        %v2584 = vsel %vm2397, %v2546, 0.0
        %v2585 = vadd.f32 %v2583, %v2584
        %v2586 = vsel %vm2397, %v2547, 0.0
        %v2587 = vadd.f32 %v2585, %v2586
        %v2588 = vsel %vm2397, %v2548, 0.0
        %v2589 = vadd.f32 %v2587, %v2588
        %v2590 = vsel %vm2397, %v2549, 0.0
        %v2591 = vadd.f32 %v2589, %v2590
        %v2592 = vsel %vm2397, %v2550, 0.0
        %v2593 = vadd.f32 %v2591, %v2592
        %v2594 = vsel %vm2397, %v2551, 0.0
        %v2595 = vadd.f32 %v2593, %v2594
        %v2596 = vsel %vm2397, %v2552, 0.0
        %v2597 = vadd.f32 %v2595, %v2596
        %v2598 = vsel %vm2397, %v2553, 0.0
        %v2599 = vadd.f32 %v2597, %v2598
        %v2600 = vsel %vm2397, %v2554, 0.0
        %v2601 = vadd.f32 %v2599, %v2600
        %v2602 = vsel %vm2397, %v2555, 0.0
        %v2603 = vadd.f32 %v2601, %v2602
        %v2604 = vsel %vm2397, %v2556, 0.0
        %v2605 = vadd.f32 %v2603, %v2604
        %v2606 = vsel %vm2397, %v2557, 0.0
        %v2607 = vadd.f32 %v2605, %v2606
        %v2608 = vsel %vm2397, %v2558, 0.0
        %v2609 = vadd.f32 %v2607, %v2608
        %v2610 = vsel %vm2397, %v2559, 0.0
        %v2611 = vadd.f32 %v2609, %v2610
        %v2612 = vsel %vm2397, %v2560, 0.0
        %v2613 = vadd.f32 %v2611, %v2612
        %v2614 = vsel %vm2397, %v2561, 0.0
        %v2615 = vadd.f32 %v2613, %v2614
        %v2616 = vsel %vm2397, %v2562, 0.0
        %v2617 = vadd.f32 %v2615, %v2616
        %v2618 = vsel %vm2397, %v2563, 0.0
        %v2619 = vadd.f32 %v2617, %v2618
        %v2620 = vsel %vm2397, %v2564, 0.0
        %v2621 = vadd.f32 %v2619, %v2620
        %v2622 = vsel %vm2397, %v2565, 0.0
        %v2623 = vadd.f32 %v2621, %v2622
        %v2624 = vsel %vm2397, %v2566, 0.0
        %v2625 = vadd.f32 %v2623, %v2624
        %v2626 = vsel %vm2397, %v2567, 0.0
        %v2627 = vadd.f32 %v2625, %v2626
        %v2628 = vsel %vm2397, %v2568, 0.0
        %v2629 = vadd.f32 %v2627, %v2628
        %v2630 = vsel %vm2397, %v2569, 0.0
        %v2631 = vadd.f32 %v2629, %v2630
        %v2632 = vsel %vm2397, %v2570, 0.0
        %v2633 = vadd.f32 %v2631, %v2632
        %2634 = vadd.xlane.f32.xlu0 %v2633
        %v2635 = vpop.xlane.xlu0 %2634
        %v2636 = vrot.slane %v2635, 4
        %v2637 = vadd.f32 %v2635, %v2636
        %v2638 = vrot.slane %v2637, 2
        %v2639 = vadd.f32 %v2637, %v2638
        %v2640 = vrot.slane %v2639, 1
        %v2641 = vadd.f32 %v2639, %v2640
        %s2642 = vtos %v2641
        %s2643 = sadd.f32 %s2642, 1e-10
        %v2644 = vstv %s2643
        %v2645 = vrcp.pop %v2644
        %s2646 = vtos %v2645
        %v2647 = vstv %s2646
        %v2648 = vmul.f32 %v2539, %v2647
        %v2649 = vmul.f32 %v2540, %v2647
        %v2650 = vmul.f32 %v2541, %v2647
        %v2651 = vmul.f32 %v2542, %v2647
        %v2652 = vmul.f32 %v2543, %v2647
        %v2653 = vmul.f32 %v2544, %v2647
        %v2654 = vmul.f32 %v2545, %v2647
        %v2655 = vmul.f32 %v2546, %v2647
        %v2656 = vmul.f32 %v2547, %v2647
        %v2657 = vmul.f32 %v2548, %v2647
        %v2658 = vmul.f32 %v2549, %v2647
        %v2659 = vmul.f32 %v2550, %v2647
        %v2660 = vmul.f32 %v2551, %v2647
        %v2661 = vmul.f32 %v2552, %v2647
        %v2662 = vmul.f32 %v2553, %v2647
        %v2663 = vmul.f32 %v2554, %v2647
        %v2664 = vmul.f32 %v2555, %v2647
        %v2665 = vmul.f32 %v2556, %v2647
        %v2666 = vmul.f32 %v2557, %v2647
        %v2667 = vmul.f32 %v2558, %v2647
        %v2668 = vmul.f32 %v2559, %v2647
        %v2669 = vmul.f32 %v2560, %v2647
        %v2670 = vmul.f32 %v2561, %v2647
        %v2671 = vmul.f32 %v2562, %v2647
        %v2672 = vmul.f32 %v2563, %v2647
        %v2673 = vmul.f32 %v2564, %v2647
        %v2674 = vmul.f32 %v2565, %v2647
        %v2675 = vmul.f32 %v2566, %v2647
        %v2676 = vmul.f32 %v2567, %v2647
        %v2677 = vmul.f32 %v2568, %v2647
        %v2678 = vmul.f32 %v2569, %v2647
        %v2679 = vmul.f32 %v2570, %v2647
        %v2680 = vld [vmem:[#allocation4] sm:$0xff]
        %v2681 = vld [vmem:[#allocation4 + $0x8] sm:$0xff]
        %v2682 = vld [vmem:[#allocation4 + $0x10] sm:$0xff]
        %v2683 = vld [vmem:[#allocation4 + $0x18] sm:$0xff]
        %v2684 = vld [vmem:[#allocation4 + $0x20] sm:$0xff]
        %v2685 = vld [vmem:[#allocation4 + $0x28] sm:$0xff]
        %v2686 = vld [vmem:[#allocation4 + $0x30] sm:$0xff]
        %v2687 = vld [vmem:[#allocation4 + $0x38] sm:$0xff]
        %v2688 = vld [vmem:[#allocation4 + $0x40] sm:$0xff]
        %v2689 = vld [vmem:[#allocation4 + $0x48] sm:$0xff]
        %v2690 = vld [vmem:[#allocation4 + $0x50] sm:$0xff]
        %v2691 = vld [vmem:[#allocation4 + $0x58] sm:$0xff]
        %v2692 = vld [vmem:[#allocation4 + $0x60] sm:$0xff]
        %v2693 = vld [vmem:[#allocation4 + $0x68] sm:$0xff]
        %v2694 = vld [vmem:[#allocation4 + $0x70] sm:$0xff]
        %v2695 = vld [vmem:[#allocation4 + $0x78] sm:$0xff]
        %v2696 = vld [vmem:[#allocation4 + $0x80] sm:$0xff]
        %v2697 = vld [vmem:[#allocation4 + $0x88] sm:$0xff]
        %v2698 = vld [vmem:[#allocation4 + $0x90] sm:$0xff]
        %v2699 = vld [vmem:[#allocation4 + $0x98] sm:$0xff]
        %v2700 = vld [vmem:[#allocation4 + $0xa0] sm:$0xff]
        %v2701 = vld [vmem:[#allocation4 + $0xa8] sm:$0xff]
        %v2702 = vld [vmem:[#allocation4 + $0xb0] sm:$0xff]
        %v2703 = vld [vmem:[#allocation4 + $0xb8] sm:$0xff]
        %v2704 = vld [vmem:[#allocation4 + $0xc0] sm:$0xff]
        %v2705 = vld [vmem:[#allocation4 + $0xc8] sm:$0xff]
        %v2706 = vld [vmem:[#allocation4 + $0xd0] sm:$0xff]
        %v2707 = vld [vmem:[#allocation4 + $0xd8] sm:$0xff]
        %v2708 = vld [vmem:[#allocation4 + $0xe0] sm:$0xff]
        %v2709 = vld [vmem:[#allocation4 + $0xe8] sm:$0xff]
        %v2710 = vld [vmem:[#allocation4 + $0xf0] sm:$0xff]
        %v2711 = vld [vmem:[#allocation4 + $0xf8] sm:$0xff]
        %v2712 = vld [vmem:[#allocation4 + $0x100] sm:$0xff]
        %v2713 = vld [vmem:[#allocation4 + $0x108] sm:$0xff]
        %v2714 = vld [vmem:[#allocation4 + $0x110] sm:$0xff]
        %v2715 = vld [vmem:[#allocation4 + $0x118] sm:$0xff]
        %v2716 = vld [vmem:[#allocation4 + $0x120] sm:$0xff]
        %v2717 = vld [vmem:[#allocation4 + $0x128] sm:$0xff]
        %v2718 = vld [vmem:[#allocation4 + $0x130] sm:$0xff]
        %v2719 = vld [vmem:[#allocation4 + $0x138] sm:$0xff]
        %v2720 = vld [vmem:[#allocation4 + $0x140] sm:$0xff]
        %v2721 = vld [vmem:[#allocation4 + $0x148] sm:$0xff]
        %v2722 = vld [vmem:[#allocation4 + $0x150] sm:$0xff]
        %v2723 = vld [vmem:[#allocation4 + $0x158] sm:$0xff]
        %v2724 = vld [vmem:[#allocation4 + $0x160] sm:$0xff]
        %v2725 = vld [vmem:[#allocation4 + $0x168] sm:$0xff]
        %v2726 = vld [vmem:[#allocation4 + $0x170] sm:$0xff]
        %v2727 = vld [vmem:[#allocation4 + $0x178] sm:$0xff]
        %v2728 = vld [vmem:[#allocation4 + $0x180] sm:$0xff]
        %v2729 = vld [vmem:[#allocation4 + $0x188] sm:$0xff]
        %v2730 = vld [vmem:[#allocation4 + $0x190] sm:$0xff]
        %v2731 = vld [vmem:[#allocation4 + $0x198] sm:$0xff]
        %v2732 = vld [vmem:[#allocation4 + $0x1a0] sm:$0xff]
        %v2733 = vld [vmem:[#allocation4 + $0x1a8] sm:$0xff]
        %v2734 = vld [vmem:[#allocation4 + $0x1b0] sm:$0xff]
        %v2735 = vld [vmem:[#allocation4 + $0x1b8] sm:$0xff]
        %v2736 = vld [vmem:[#allocation4 + $0x1c0] sm:$0xff]
        %v2737 = vld [vmem:[#allocation4 + $0x1c8] sm:$0xff]
        %v2738 = vld [vmem:[#allocation4 + $0x1d0] sm:$0xff]
        %v2739 = vld [vmem:[#allocation4 + $0x1d8] sm:$0xff]
        %v2740 = vld [vmem:[#allocation4 + $0x1e0] sm:$0xff]
        %v2741 = vld [vmem:[#allocation4 + $0x1e8] sm:$0xff]
        %v2742 = vld [vmem:[#allocation4 + $0x1f0] sm:$0xff]
        %v2743 = vld [vmem:[#allocation4 + $0x1f8] sm:$0xff]
        %v2744 = vadd.f32 %v2680, %v2681
        %v2745 = vadd.f32 %v2744, %v2682
        %v2746 = vadd.f32 %v2745, %v2683
        %v2747 = vadd.f32 %v2746, %v2684
        %v2748 = vadd.f32 %v2747, %v2685
        %v2749 = vadd.f32 %v2748, %v2686
        %v2750 = vadd.f32 %v2749, %v2687
        %v2751 = vadd.f32 %v2750, %v2688
        %v2752 = vadd.f32 %v2751, %v2689
        %v2753 = vadd.f32 %v2752, %v2690
        %v2754 = vadd.f32 %v2753, %v2691
        %v2755 = vadd.f32 %v2754, %v2692
        %v2756 = vadd.f32 %v2755, %v2693
        %v2757 = vadd.f32 %v2756, %v2694
        %v2758 = vadd.f32 %v2757, %v2695
        %v2759 = vadd.f32 %v2758, %v2696
        %v2760 = vadd.f32 %v2759, %v2697
        %v2761 = vadd.f32 %v2760, %v2698
        %v2762 = vadd.f32 %v2761, %v2699
        %v2763 = vadd.f32 %v2762, %v2700
        %v2764 = vadd.f32 %v2763, %v2701
        %v2765 = vadd.f32 %v2764, %v2702
        %v2766 = vadd.f32 %v2765, %v2703
        %v2767 = vadd.f32 %v2766, %v2704
        %v2768 = vadd.f32 %v2767, %v2705
        %v2769 = vadd.f32 %v2768, %v2706
        %v2770 = vadd.f32 %v2769, %v2707
        %v2771 = vadd.f32 %v2770, %v2708
        %v2772 = vadd.f32 %v2771, %v2709
        %v2773 = vadd.f32 %v2772, %v2710
        %v2774 = vadd.f32 %v2773, %v2711
        %v2775 = vadd.f32 %v2774, %v2712
        %v2776 = vadd.f32 %v2775, %v2713
        %v2777 = vadd.f32 %v2776, %v2714
        %v2778 = vadd.f32 %v2777, %v2715
        %v2779 = vadd.f32 %v2778, %v2716
        %v2780 = vadd.f32 %v2779, %v2717
        %v2781 = vadd.f32 %v2780, %v2718
        %v2782 = vadd.f32 %v2781, %v2719
        %v2783 = vadd.f32 %v2782, %v2720
        %v2784 = vadd.f32 %v2783, %v2721
        %v2785 = vadd.f32 %v2784, %v2722
        %v2786 = vadd.f32 %v2785, %v2723
        %v2787 = vadd.f32 %v2786, %v2724
        %v2788 = vadd.f32 %v2787, %v2725
        %v2789 = vadd.f32 %v2788, %v2726
        %v2790 = vadd.f32 %v2789, %v2727
        %v2791 = vadd.f32 %v2790, %v2728
        %v2792 = vadd.f32 %v2791, %v2729
        %v2793 = vadd.f32 %v2792, %v2730
        %v2794 = vadd.f32 %v2793, %v2731
        %v2795 = vadd.f32 %v2794, %v2732
        %v2796 = vadd.f32 %v2795, %v2733
        %v2797 = vadd.f32 %v2796, %v2734
        %v2798 = vadd.f32 %v2797, %v2735
        %v2799 = vadd.f32 %v2798, %v2736
        %v2800 = vadd.f32 %v2799, %v2737
        %v2801 = vadd.f32 %v2800, %v2738
        %v2802 = vadd.f32 %v2801, %v2739
        %v2803 = vadd.f32 %v2802, %v2740
        %v2804 = vadd.f32 %v2803, %v2741
        %v2805 = vadd.f32 %v2804, %v2742
        %v2806 = vadd.f32 %v2805, %v2743
        %2807 = vadd.xlane.f32.xlu0 %v2806
        %v2808 = vpop.xlane.xlu0 %2807
        %v2809 = vrot.slane %v2808, 4
        %v2810 = vadd.f32 %v2808, %v2809
        %v2811 = vrot.slane %v2810, 2
        %v2812 = vadd.f32 %v2810, %v2811
        %v2813 = vrot.slane %v2812, 1
        %v2814 = vadd.f32 %v2812, %v2813
        %s2815 = vtos %v2814
        %s2816 = sadd.f32 %s2815, 1e-10
        %v2817 = vstv %s2816
        %v2818 = vrcp.pop %v2817
        %s2819 = vtos %v2818
        %v2820 = vstv %s2819
        %v2821 = vmul.f32 %v2680, %v2820
        %v2822 = vmul.f32 %v2681, %v2820
        %v2823 = vmul.f32 %v2682, %v2820
        %v2824 = vmul.f32 %v2683, %v2820
        %v2825 = vmul.f32 %v2684, %v2820
        %v2826 = vmul.f32 %v2685, %v2820
        %v2827 = vmul.f32 %v2686, %v2820
        %v2828 = vmul.f32 %v2687, %v2820
        %v2829 = vmul.f32 %v2688, %v2820
        %v2830 = vmul.f32 %v2689, %v2820
        %v2831 = vmul.f32 %v2690, %v2820
        %v2832 = vmul.f32 %v2691, %v2820
        %v2833 = vmul.f32 %v2692, %v2820
        %v2834 = vmul.f32 %v2693, %v2820
        %v2835 = vmul.f32 %v2694, %v2820
        %v2836 = vmul.f32 %v2695, %v2820
        %v2837 = vmul.f32 %v2696, %v2820
        %v2838 = vmul.f32 %v2697, %v2820
        %v2839 = vmul.f32 %v2698, %v2820
        %v2840 = vmul.f32 %v2699, %v2820
        %v2841 = vmul.f32 %v2700, %v2820
        %v2842 = vmul.f32 %v2701, %v2820
        %v2843 = vmul.f32 %v2702, %v2820
        %v2844 = vmul.f32 %v2703, %v2820
        %v2845 = vmul.f32 %v2704, %v2820
        %v2846 = vmul.f32 %v2705, %v2820
        %v2847 = vmul.f32 %v2706, %v2820
        %v2848 = vmul.f32 %v2707, %v2820
        %v2849 = vmul.f32 %v2708, %v2820
        %v2850 = vmul.f32 %v2709, %v2820
        %v2851 = vmul.f32 %v2710, %v2820
        %v2852 = vmul.f32 %v2711, %v2820
        %v2853 = vmul.f32 %v2712, %v2820
        %v2854 = vmul.f32 %v2713, %v2820
        %v2855 = vmul.f32 %v2714, %v2820
        %v2856 = vmul.f32 %v2715, %v2820
        %v2857 = vmul.f32 %v2716, %v2820
        %v2858 = vmul.f32 %v2717, %v2820
        %v2859 = vmul.f32 %v2718, %v2820
        %v2860 = vmul.f32 %v2719, %v2820
        %v2861 = vmul.f32 %v2720, %v2820
        %v2862 = vmul.f32 %v2721, %v2820
        %v2863 = vmul.f32 %v2722, %v2820
        %v2864 = vmul.f32 %v2723, %v2820
        %v2865 = vmul.f32 %v2724, %v2820
        %v2866 = vmul.f32 %v2725, %v2820
        %v2867 = vmul.f32 %v2726, %v2820
        %v2868 = vmul.f32 %v2727, %v2820
        %v2869 = vmul.f32 %v2728, %v2820
        %v2870 = vmul.f32 %v2729, %v2820
        %v2871 = vmul.f32 %v2730, %v2820
        %v2872 = vmul.f32 %v2731, %v2820
        %v2873 = vmul.f32 %v2732, %v2820
        %v2874 = vmul.f32 %v2733, %v2820
        %v2875 = vmul.f32 %v2734, %v2820
        %v2876 = vmul.f32 %v2735, %v2820
        %v2877 = vmul.f32 %v2736, %v2820
        %v2878 = vmul.f32 %v2737, %v2820
        %v2879 = vmul.f32 %v2738, %v2820
        %v2880 = vmul.f32 %v2739, %v2820
        %v2881 = vmul.f32 %v2740, %v2820
        %v2882 = vmul.f32 %v2741, %v2820
        %v2883 = vmul.f32 %v2742, %v2820
        %v2884 = vmul.f32 %v2743, %v2820
        %v2885 = vadd.f32 %v2475, 1e-10
        %v2886 = vadd.f32 %v2476, 1e-10
        %v2887 = vadd.f32 %v2477, 1e-10
        %v2888 = vadd.f32 %v2478, 1e-10
        %v2889 = vadd.f32 %v2479, 1e-10
        %v2890 = vadd.f32 %v2480, 1e-10
        %v2891 = vadd.f32 %v2481, 1e-10
        %v2892 = vadd.f32 %v2482, 1e-10
        %v2893 = vadd.f32 %v2483, 1e-10
        %v2894 = vadd.f32 %v2484, 1e-10
        %v2895 = vadd.f32 %v2485, 1e-10
        %v2896 = vadd.f32 %v2486, 1e-10
        %v2897 = vadd.f32 %v2487, 1e-10
        %v2898 = vadd.f32 %v2488, 1e-10
        %v2899 = vadd.f32 %v2489, 1e-10
        %v2900 = vadd.f32 %v2490, 1e-10
        %v2901 = vadd.f32 %v2491, 1e-10
        %v2902 = vadd.f32 %v2492, 1e-10
        %v2903 = vadd.f32 %v2493, 1e-10
        %v2904 = vadd.f32 %v2494, 1e-10
        %v2905 = vadd.f32 %v2495, 1e-10
        %v2906 = vadd.f32 %v2496, 1e-10
        %v2907 = vadd.f32 %v2497, 1e-10
        %v2908 = vadd.f32 %v2498, 1e-10
        %v2909 = vadd.f32 %v2499, 1e-10
        %v2910 = vadd.f32 %v2500, 1e-10
        %v2911 = vadd.f32 %v2501, 1e-10
        %v2912 = vadd.f32 %v2502, 1e-10
        %v2913 = vadd.f32 %v2503, 1e-10
        %v2914 = vadd.f32 %v2504, 1e-10
        %v2915 = vadd.f32 %v2505, 1e-10
        %v2916 = vadd.f32 %v2506, 1e-10
        %v2917 = vlog2.pop %v2885
        %v2918 = vmul.f32 %v2917, 0.6931472
        %v2919 = vlog2.pop %v2886
        %v2920 = vmul.f32 %v2919, 0.6931472
        %v2921 = vlog2.pop %v2887
        %v2922 = vmul.f32 %v2921, 0.6931472
        %v2923 = vlog2.pop %v2888
        %v2924 = vmul.f32 %v2923, 0.6931472
        %v2925 = vlog2.pop %v2889
        %v2926 = vmul.f32 %v2925, 0.6931472
        %v2927 = vlog2.pop %v2890
        %v2928 = vmul.f32 %v2927, 0.6931472
        %v2929 = vlog2.pop %v2891
        %v2930 = vmul.f32 %v2929, 0.6931472
        %v2931 = vlog2.pop %v2892
        %v2932 = vmul.f32 %v2931, 0.6931472
        %v2933 = vlog2.pop %v2893
        %v2934 = vmul.f32 %v2933, 0.6931472
        %v2935 = vlog2.pop %v2894
        %v2936 = vmul.f32 %v2935, 0.6931472
        %v2937 = vlog2.pop %v2895
        %v2938 = vmul.f32 %v2937, 0.6931472
        %v2939 = vlog2.pop %v2896
        %v2940 = vmul.f32 %v2939, 0.6931472
        %v2941 = vlog2.pop %v2897
        %v2942 = vmul.f32 %v2941, 0.6931472
        %v2943 = vlog2.pop %v2898
        %v2944 = vmul.f32 %v2943, 0.6931472
        %v2945 = vlog2.pop %v2899
        %v2946 = vmul.f32 %v2945, 0.6931472
        %v2947 = vlog2.pop %v2900
        %v2948 = vmul.f32 %v2947, 0.6931472
        %v2949 = vlog2.pop %v2901
        %v2950 = vmul.f32 %v2949, 0.6931472
        %v2951 = vlog2.pop %v2902
        %v2952 = vmul.f32 %v2951, 0.6931472
        %v2953 = vlog2.pop %v2903
        %v2954 = vmul.f32 %v2953, 0.6931472
        %v2955 = vlog2.pop %v2904
        %v2956 = vmul.f32 %v2955, 0.6931472
        %v2957 = vlog2.pop %v2905
        %v2958 = vmul.f32 %v2957, 0.6931472
        %v2959 = vlog2.pop %v2906
        %v2960 = vmul.f32 %v2959, 0.6931472
        %v2961 = vlog2.pop %v2907
        %v2962 = vmul.f32 %v2961, 0.6931472
        %v2963 = vlog2.pop %v2908
        %v2964 = vmul.f32 %v2963, 0.6931472
        %v2965 = vlog2.pop %v2909
        %v2966 = vmul.f32 %v2965, 0.6931472
        %v2967 = vlog2.pop %v2910
        %v2968 = vmul.f32 %v2967, 0.6931472
        %v2969 = vlog2.pop %v2911
        %v2970 = vmul.f32 %v2969, 0.6931472
        %v2971 = vlog2.pop %v2912
        %v2972 = vmul.f32 %v2971, 0.6931472
        %v2973 = vlog2.pop %v2913
        %v2974 = vmul.f32 %v2973, 0.6931472
        %v2975 = vlog2.pop %v2914
        %v2976 = vmul.f32 %v2975, 0.6931472
        %v2977 = vlog2.pop %v2915
        %v2978 = vmul.f32 %v2977, 0.6931472
        %v2979 = vlog2.pop %v2916
        %v2980 = vmul.f32 %v2979, 0.6931472
        %v2981 = vrcp.pop 0.6931472
        %v2982 = vmul.f32 %v2918, %v2981
        %v2983 = vmul.f32 %v2920, %v2981
        %v2984 = vmul.f32 %v2922, %v2981
        %v2985 = vmul.f32 %v2924, %v2981
        %v2986 = vmul.f32 %v2926, %v2981
        %v2987 = vmul.f32 %v2928, %v2981
        %v2988 = vmul.f32 %v2930, %v2981
        %v2989 = vmul.f32 %v2932, %v2981
        %v2990 = vmul.f32 %v2934, %v2981
        %v2991 = vmul.f32 %v2936, %v2981
        %v2992 = vmul.f32 %v2938, %v2981
        %v2993 = vmul.f32 %v2940, %v2981
        %v2994 = vmul.f32 %v2942, %v2981
        %v2995 = vmul.f32 %v2944, %v2981
        %v2996 = vmul.f32 %v2946, %v2981
        %v2997 = vmul.f32 %v2948, %v2981
        %v2998 = vmul.f32 %v2950, %v2981
        %v2999 = vmul.f32 %v2952, %v2981
        %v3000 = vmul.f32 %v2954, %v2981
        %v3001 = vmul.f32 %v2956, %v2981
        %v3002 = vmul.f32 %v2958, %v2981
        %v3003 = vmul.f32 %v2960, %v2981
        %v3004 = vmul.f32 %v2962, %v2981
        %v3005 = vmul.f32 %v2964, %v2981
        %v3006 = vmul.f32 %v2966, %v2981
        %v3007 = vmul.f32 %v2968, %v2981
        %v3008 = vmul.f32 %v2970, %v2981
        %v3009 = vmul.f32 %v2972, %v2981
        %v3010 = vmul.f32 %v2974, %v2981
        %v3011 = vmul.f32 %v2976, %v2981
        %v3012 = vmul.f32 %v2978, %v2981
        %v3013 = vmul.f32 %v2980, %v2981
        %v3014 = vmul.f32 %v2475, %v2982
        %v3015 = vmul.f32 %v2476, %v2983
        %v3016 = vmul.f32 %v2477, %v2984
        %v3017 = vmul.f32 %v2478, %v2985
        %v3018 = vmul.f32 %v2479, %v2986
        %v3019 = vmul.f32 %v2480, %v2987
        %v3020 = vmul.f32 %v2481, %v2988
        %v3021 = vmul.f32 %v2482, %v2989
        %v3022 = vmul.f32 %v2483, %v2990
        %v3023 = vmul.f32 %v2484, %v2991
        %v3024 = vmul.f32 %v2485, %v2992
        %v3025 = vmul.f32 %v2486, %v2993
        %v3026 = vmul.f32 %v2487, %v2994
        %v3027 = vmul.f32 %v2488, %v2995
        %v3028 = vmul.f32 %v2489, %v2996
        %v3029 = vmul.f32 %v2490, %v2997
        %v3030 = vmul.f32 %v2491, %v2998
        %v3031 = vmul.f32 %v2492, %v2999
        %v3032 = vmul.f32 %v2493, %v3000
        %v3033 = vmul.f32 %v2494, %v3001
        %v3034 = vmul.f32 %v2495, %v3002
        %v3035 = vmul.f32 %v2496, %v3003
        %v3036 = vmul.f32 %v2497, %v3004
        %v3037 = vmul.f32 %v2498, %v3005
        %v3038 = vmul.f32 %v2499, %v3006
        %v3039 = vmul.f32 %v2500, %v3007
        %v3040 = vmul.f32 %v2501, %v3008
        %v3041 = vmul.f32 %v2502, %v3009
        %v3042 = vmul.f32 %v2503, %v3010
        %v3043 = vmul.f32 %v2504, %v3011
        %v3044 = vmul.f32 %v2505, %v3012
        %v3045 = vmul.f32 %v2506, %v3013
        %v3046 = vsel %vm2397, %v3014, 0.0
        %v3047 = vsel %vm2397, %v3015, 0.0
        %v3048 = vadd.f32 %v3046, %v3047
        %v3049 = vsel %vm2397, %v3016, 0.0
        %v3050 = vadd.f32 %v3048, %v3049
        %v3051 = vsel %vm2397, %v3017, 0.0
        %v3052 = vadd.f32 %v3050, %v3051
        %v3053 = vsel %vm2397, %v3018, 0.0
        %v3054 = vadd.f32 %v3052, %v3053
        %v3055 = vsel %vm2397, %v3019, 0.0
        %v3056 = vadd.f32 %v3054, %v3055
        %v3057 = vsel %vm2397, %v3020, 0.0
        %v3058 = vadd.f32 %v3056, %v3057
        %v3059 = vsel %vm2397, %v3021, 0.0
        %v3060 = vadd.f32 %v3058, %v3059
        %v3061 = vsel %vm2397, %v3022, 0.0
        %v3062 = vadd.f32 %v3060, %v3061
        %v3063 = vsel %vm2397, %v3023, 0.0
        %v3064 = vadd.f32 %v3062, %v3063
        %v3065 = vsel %vm2397, %v3024, 0.0
        %v3066 = vadd.f32 %v3064, %v3065
        %v3067 = vsel %vm2397, %v3025, 0.0
        %v3068 = vadd.f32 %v3066, %v3067
        %v3069 = vsel %vm2397, %v3026, 0.0
        %v3070 = vadd.f32 %v3068, %v3069
        %v3071 = vsel %vm2397, %v3027, 0.0
        %v3072 = vadd.f32 %v3070, %v3071
        %v3073 = vsel %vm2397, %v3028, 0.0
        %v3074 = vadd.f32 %v3072, %v3073
        %v3075 = vsel %vm2397, %v3029, 0.0
        %v3076 = vadd.f32 %v3074, %v3075
        %v3077 = vsel %vm2397, %v3030, 0.0
        %v3078 = vadd.f32 %v3076, %v3077
        %v3079 = vsel %vm2397, %v3031, 0.0
        %v3080 = vadd.f32 %v3078, %v3079
        %v3081 = vsel %vm2397, %v3032, 0.0
        %v3082 = vadd.f32 %v3080, %v3081
        %v3083 = vsel %vm2397, %v3033, 0.0
        %v3084 = vadd.f32 %v3082, %v3083
        %v3085 = vsel %vm2397, %v3034, 0.0
        %v3086 = vadd.f32 %v3084, %v3085
        %v3087 = vsel %vm2397, %v3035, 0.0
        %v3088 = vadd.f32 %v3086, %v3087
        %v3089 = vsel %vm2397, %v3036, 0.0
        %v3090 = vadd.f32 %v3088, %v3089
        %v3091 = vsel %vm2397, %v3037, 0.0
        %v3092 = vadd.f32 %v3090, %v3091
        %v3093 = vsel %vm2397, %v3038, 0.0
        %v3094 = vadd.f32 %v3092, %v3093
        %v3095 = vsel %vm2397, %v3039, 0.0
        %v3096 = vadd.f32 %v3094, %v3095
        %v3097 = vsel %vm2397, %v3040, 0.0
        %v3098 = vadd.f32 %v3096, %v3097
        %v3099 = vsel %vm2397, %v3041, 0.0
        %v3100 = vadd.f32 %v3098, %v3099
        %v3101 = vsel %vm2397, %v3042, 0.0
        %v3102 = vadd.f32 %v3100, %v3101
        %v3103 = vsel %vm2397, %v3043, 0.0
        %v3104 = vadd.f32 %v3102, %v3103
        %v3105 = vsel %vm2397, %v3044, 0.0
        %v3106 = vadd.f32 %v3104, %v3105
        %v3107 = vsel %vm2397, %v3045, 0.0
        %v3108 = vadd.f32 %v3106, %v3107
        %3109 = vadd.xlane.f32.xlu0 %v3108
        %v3110 = vpop.xlane.xlu0 %3109
        %v3111 = vrot.slane %v3110, 4
        %v3112 = vadd.f32 %v3110, %v3111
        %v3113 = vrot.slane %v3112, 2
        %v3114 = vadd.f32 %v3112, %v3113
        %v3115 = vrot.slane %v3114, 1
        %v3116 = vadd.f32 %v3114, %v3115
        %s3117 = vtos %v3116
        %s3118 = ssub.f32 0.0, %s3117
        %v3119 = vadd.f32 %v2648, 1e-10
        %v3120 = vadd.f32 %v2649, 1e-10
        %v3121 = vadd.f32 %v2650, 1e-10
        %v3122 = vadd.f32 %v2651, 1e-10
        %v3123 = vadd.f32 %v2652, 1e-10
        %v3124 = vadd.f32 %v2653, 1e-10
        %v3125 = vadd.f32 %v2654, 1e-10
        %v3126 = vadd.f32 %v2655, 1e-10
        %v3127 = vadd.f32 %v2656, 1e-10
        %v3128 = vadd.f32 %v2657, 1e-10
        %v3129 = vadd.f32 %v2658, 1e-10
        %v3130 = vadd.f32 %v2659, 1e-10
        %v3131 = vadd.f32 %v2660, 1e-10
        %v3132 = vadd.f32 %v2661, 1e-10
        %v3133 = vadd.f32 %v2662, 1e-10
        %v3134 = vadd.f32 %v2663, 1e-10
        %v3135 = vadd.f32 %v2664, 1e-10
        %v3136 = vadd.f32 %v2665, 1e-10
        %v3137 = vadd.f32 %v2666, 1e-10
        %v3138 = vadd.f32 %v2667, 1e-10
        %v3139 = vadd.f32 %v2668, 1e-10
        %v3140 = vadd.f32 %v2669, 1e-10
        %v3141 = vadd.f32 %v2670, 1e-10
        %v3142 = vadd.f32 %v2671, 1e-10
        %v3143 = vadd.f32 %v2672, 1e-10
        %v3144 = vadd.f32 %v2673, 1e-10
        %v3145 = vadd.f32 %v2674, 1e-10
        %v3146 = vadd.f32 %v2675, 1e-10
        %v3147 = vadd.f32 %v2676, 1e-10
        %v3148 = vadd.f32 %v2677, 1e-10
        %v3149 = vadd.f32 %v2678, 1e-10
        %v3150 = vadd.f32 %v2679, 1e-10
        %v3151 = vlog2.pop %v3119
        %v3152 = vmul.f32 %v3151, 0.6931472
        %v3153 = vlog2.pop %v3120
        %v3154 = vmul.f32 %v3153, 0.6931472
        %v3155 = vlog2.pop %v3121
        %v3156 = vmul.f32 %v3155, 0.6931472
        %v3157 = vlog2.pop %v3122
        %v3158 = vmul.f32 %v3157, 0.6931472
        %v3159 = vlog2.pop %v3123
        %v3160 = vmul.f32 %v3159, 0.6931472
        %v3161 = vlog2.pop %v3124
        %v3162 = vmul.f32 %v3161, 0.6931472
        %v3163 = vlog2.pop %v3125
        %v3164 = vmul.f32 %v3163, 0.6931472
        %v3165 = vlog2.pop %v3126
        %v3166 = vmul.f32 %v3165, 0.6931472
        %v3167 = vlog2.pop %v3127
        %v3168 = vmul.f32 %v3167, 0.6931472
        %v3169 = vlog2.pop %v3128
        %v3170 = vmul.f32 %v3169, 0.6931472
        %v3171 = vlog2.pop %v3129
        %v3172 = vmul.f32 %v3171, 0.6931472
        %v3173 = vlog2.pop %v3130
        %v3174 = vmul.f32 %v3173, 0.6931472
        %v3175 = vlog2.pop %v3131
        %v3176 = vmul.f32 %v3175, 0.6931472
        %v3177 = vlog2.pop %v3132
        %v3178 = vmul.f32 %v3177, 0.6931472
        %v3179 = vlog2.pop %v3133
        %v3180 = vmul.f32 %v3179, 0.6931472
        %v3181 = vlog2.pop %v3134
        %v3182 = vmul.f32 %v3181, 0.6931472
        %v3183 = vlog2.pop %v3135
        %v3184 = vmul.f32 %v3183, 0.6931472
        %v3185 = vlog2.pop %v3136
        %v3186 = vmul.f32 %v3185, 0.6931472
        %v3187 = vlog2.pop %v3137
        %v3188 = vmul.f32 %v3187, 0.6931472
        %v3189 = vlog2.pop %v3138
        %v3190 = vmul.f32 %v3189, 0.6931472
        %v3191 = vlog2.pop %v3139
        %v3192 = vmul.f32 %v3191, 0.6931472
        %v3193 = vlog2.pop %v3140
        %v3194 = vmul.f32 %v3193, 0.6931472
        %v3195 = vlog2.pop %v3141
        %v3196 = vmul.f32 %v3195, 0.6931472
        %v3197 = vlog2.pop %v3142
        %v3198 = vmul.f32 %v3197, 0.6931472
        %v3199 = vlog2.pop %v3143
        %v3200 = vmul.f32 %v3199, 0.6931472
        %v3201 = vlog2.pop %v3144
        %v3202 = vmul.f32 %v3201, 0.6931472
        %v3203 = vlog2.pop %v3145
        %v3204 = vmul.f32 %v3203, 0.6931472
        %v3205 = vlog2.pop %v3146
        %v3206 = vmul.f32 %v3205, 0.6931472
        %v3207 = vlog2.pop %v3147
        %v3208 = vmul.f32 %v3207, 0.6931472
        %v3209 = vlog2.pop %v3148
        %v3210 = vmul.f32 %v3209, 0.6931472
        %v3211 = vlog2.pop %v3149
        %v3212 = vmul.f32 %v3211, 0.6931472
        %v3213 = vlog2.pop %v3150
        %v3214 = vmul.f32 %v3213, 0.6931472
        %v3215 = vmul.f32 %v3152, %v2981
        %v3216 = vmul.f32 %v3154, %v2981
        %v3217 = vmul.f32 %v3156, %v2981
        %v3218 = vmul.f32 %v3158, %v2981
        %v3219 = vmul.f32 %v3160, %v2981
        %v3220 = vmul.f32 %v3162, %v2981
        %v3221 = vmul.f32 %v3164, %v2981
        %v3222 = vmul.f32 %v3166, %v2981
        %v3223 = vmul.f32 %v3168, %v2981
        %v3224 = vmul.f32 %v3170, %v2981
        %v3225 = vmul.f32 %v3172, %v2981
        %v3226 = vmul.f32 %v3174, %v2981
        %v3227 = vmul.f32 %v3176, %v2981
        %v3228 = vmul.f32 %v3178, %v2981
        %v3229 = vmul.f32 %v3180, %v2981
        %v3230 = vmul.f32 %v3182, %v2981
        %v3231 = vmul.f32 %v3184, %v2981
        %v3232 = vmul.f32 %v3186, %v2981
        %v3233 = vmul.f32 %v3188, %v2981
        %v3234 = vmul.f32 %v3190, %v2981
        %v3235 = vmul.f32 %v3192, %v2981
        %v3236 = vmul.f32 %v3194, %v2981
        %v3237 = vmul.f32 %v3196, %v2981
        %v3238 = vmul.f32 %v3198, %v2981
        %v3239 = vmul.f32 %v3200, %v2981
        %v3240 = vmul.f32 %v3202, %v2981
        %v3241 = vmul.f32 %v3204, %v2981
        %v3242 = vmul.f32 %v3206, %v2981
        %v3243 = vmul.f32 %v3208, %v2981
        %v3244 = vmul.f32 %v3210, %v2981
        %v3245 = vmul.f32 %v3212, %v2981
        %v3246 = vmul.f32 %v3214, %v2981
        %v3247 = vmul.f32 %v2648, %v3215
        %v3248 = vmul.f32 %v2649, %v3216
        %v3249 = vmul.f32 %v2650, %v3217
        %v3250 = vmul.f32 %v2651, %v3218
        %v3251 = vmul.f32 %v2652, %v3219
        %v3252 = vmul.f32 %v2653, %v3220
        %v3253 = vmul.f32 %v2654, %v3221
        %v3254 = vmul.f32 %v2655, %v3222
        %v3255 = vmul.f32 %v2656, %v3223
        %v3256 = vmul.f32 %v2657, %v3224
        %v3257 = vmul.f32 %v2658, %v3225
        %v3258 = vmul.f32 %v2659, %v3226
        %v3259 = vmul.f32 %v2660, %v3227
        %v3260 = vmul.f32 %v2661, %v3228
        %v3261 = vmul.f32 %v2662, %v3229
        %v3262 = vmul.f32 %v2663, %v3230
        %v3263 = vmul.f32 %v2664, %v3231
        %v3264 = vmul.f32 %v2665, %v3232
        %v3265 = vmul.f32 %v2666, %v3233
        %v3266 = vmul.f32 %v2667, %v3234
        %v3267 = vmul.f32 %v2668, %v3235
        %v3268 = vmul.f32 %v2669, %v3236
        %v3269 = vmul.f32 %v2670, %v3237
        %v3270 = vmul.f32 %v2671, %v3238
        %v3271 = vmul.f32 %v2672, %v3239
        %v3272 = vmul.f32 %v2673, %v3240
        %v3273 = vmul.f32 %v2674, %v3241
        %v3274 = vmul.f32 %v2675, %v3242
        %v3275 = vmul.f32 %v2676, %v3243
        %v3276 = vmul.f32 %v2677, %v3244
        %v3277 = vmul.f32 %v2678, %v3245
        %v3278 = vmul.f32 %v2679, %v3246
        %v3279 = vsel %vm2397, %v3247, 0.0
        %v3280 = vsel %vm2397, %v3248, 0.0
        %v3281 = vadd.f32 %v3279, %v3280
        %v3282 = vsel %vm2397, %v3249, 0.0
        %v3283 = vadd.f32 %v3281, %v3282
        %v3284 = vsel %vm2397, %v3250, 0.0
        %v3285 = vadd.f32 %v3283, %v3284
        %v3286 = vsel %vm2397, %v3251, 0.0
        %v3287 = vadd.f32 %v3285, %v3286
        %v3288 = vsel %vm2397, %v3252, 0.0
        %v3289 = vadd.f32 %v3287, %v3288
        %v3290 = vsel %vm2397, %v3253, 0.0
        %v3291 = vadd.f32 %v3289, %v3290
        %v3292 = vsel %vm2397, %v3254, 0.0
        %v3293 = vadd.f32 %v3291, %v3292
        %v3294 = vsel %vm2397, %v3255, 0.0
        %v3295 = vadd.f32 %v3293, %v3294
        %v3296 = vsel %vm2397, %v3256, 0.0
        %v3297 = vadd.f32 %v3295, %v3296
        %v3298 = vsel %vm2397, %v3257, 0.0
        %v3299 = vadd.f32 %v3297, %v3298
        %v3300 = vsel %vm2397, %v3258, 0.0
        %v3301 = vadd.f32 %v3299, %v3300
        %v3302 = vsel %vm2397, %v3259, 0.0
        %v3303 = vadd.f32 %v3301, %v3302
        %v3304 = vsel %vm2397, %v3260, 0.0
        %v3305 = vadd.f32 %v3303, %v3304
        %v3306 = vsel %vm2397, %v3261, 0.0
        %v3307 = vadd.f32 %v3305, %v3306
        %v3308 = vsel %vm2397, %v3262, 0.0
        %v3309 = vadd.f32 %v3307, %v3308
        %v3310 = vsel %vm2397, %v3263, 0.0
        %v3311 = vadd.f32 %v3309, %v3310
        %v3312 = vsel %vm2397, %v3264, 0.0
        %v3313 = vadd.f32 %v3311, %v3312
        %v3314 = vsel %vm2397, %v3265, 0.0
        %v3315 = vadd.f32 %v3313, %v3314
        %v3316 = vsel %vm2397, %v3266, 0.0
        %v3317 = vadd.f32 %v3315, %v3316
        %v3318 = vsel %vm2397, %v3267, 0.0
        %v3319 = vadd.f32 %v3317, %v3318
        %v3320 = vsel %vm2397, %v3268, 0.0
        %v3321 = vadd.f32 %v3319, %v3320
        %v3322 = vsel %vm2397, %v3269, 0.0
        %v3323 = vadd.f32 %v3321, %v3322
        %v3324 = vsel %vm2397, %v3270, 0.0
        %v3325 = vadd.f32 %v3323, %v3324
        %v3326 = vsel %vm2397, %v3271, 0.0
        %v3327 = vadd.f32 %v3325, %v3326
        %v3328 = vsel %vm2397, %v3272, 0.0
        %v3329 = vadd.f32 %v3327, %v3328
        %v3330 = vsel %vm2397, %v3273, 0.0
        %v3331 = vadd.f32 %v3329, %v3330
        %v3332 = vsel %vm2397, %v3274, 0.0
        %v3333 = vadd.f32 %v3331, %v3332
        %v3334 = vsel %vm2397, %v3275, 0.0
        %v3335 = vadd.f32 %v3333, %v3334
        %v3336 = vsel %vm2397, %v3276, 0.0
        %v3337 = vadd.f32 %v3335, %v3336
        %v3338 = vsel %vm2397, %v3277, 0.0
        %v3339 = vadd.f32 %v3337, %v3338
        %v3340 = vsel %vm2397, %v3278, 0.0
        %v3341 = vadd.f32 %v3339, %v3340
        %3342 = vadd.xlane.f32.xlu0 %v3341
        %v3343 = vpop.xlane.xlu0 %3342
        %v3344 = vrot.slane %v3343, 4
        %v3345 = vadd.f32 %v3343, %v3344
        %v3346 = vrot.slane %v3345, 2
        %v3347 = vadd.f32 %v3345, %v3346
        %v3348 = vrot.slane %v3347, 1
        %v3349 = vadd.f32 %v3347, %v3348
        %s3350 = vtos %v3349
        %s3351 = ssub.f32 0.0, %s3350
        %v3352 = vadd.f32 %v2821, 1e-10
        %v3353 = vadd.f32 %v2822, 1e-10
        %v3354 = vadd.f32 %v2823, 1e-10
        %v3355 = vadd.f32 %v2824, 1e-10
        %v3356 = vadd.f32 %v2825, 1e-10
        %v3357 = vadd.f32 %v2826, 1e-10
        %v3358 = vadd.f32 %v2827, 1e-10
        %v3359 = vadd.f32 %v2828, 1e-10
        %v3360 = vadd.f32 %v2829, 1e-10
        %v3361 = vadd.f32 %v2830, 1e-10
        %v3362 = vadd.f32 %v2831, 1e-10
        %v3363 = vadd.f32 %v2832, 1e-10
        %v3364 = vadd.f32 %v2833, 1e-10
        %v3365 = vadd.f32 %v2834, 1e-10
        %v3366 = vadd.f32 %v2835, 1e-10
        %v3367 = vadd.f32 %v2836, 1e-10
        %v3368 = vadd.f32 %v2837, 1e-10
        %v3369 = vadd.f32 %v2838, 1e-10
        %v3370 = vadd.f32 %v2839, 1e-10
        %v3371 = vadd.f32 %v2840, 1e-10
        %v3372 = vadd.f32 %v2841, 1e-10
        %v3373 = vadd.f32 %v2842, 1e-10
        %v3374 = vadd.f32 %v2843, 1e-10
        %v3375 = vadd.f32 %v2844, 1e-10
        %v3376 = vadd.f32 %v2845, 1e-10
        %v3377 = vadd.f32 %v2846, 1e-10
        %v3378 = vadd.f32 %v2847, 1e-10
        %v3379 = vadd.f32 %v2848, 1e-10
        %v3380 = vadd.f32 %v2849, 1e-10
        %v3381 = vadd.f32 %v2850, 1e-10
        %v3382 = vadd.f32 %v2851, 1e-10
        %v3383 = vadd.f32 %v2852, 1e-10
        %v3384 = vadd.f32 %v2853, 1e-10
        %v3385 = vadd.f32 %v2854, 1e-10
        %v3386 = vadd.f32 %v2855, 1e-10
        %v3387 = vadd.f32 %v2856, 1e-10
        %v3388 = vadd.f32 %v2857, 1e-10
        %v3389 = vadd.f32 %v2858, 1e-10
        %v3390 = vadd.f32 %v2859, 1e-10
        %v3391 = vadd.f32 %v2860, 1e-10
        %v3392 = vadd.f32 %v2861, 1e-10
        %v3393 = vadd.f32 %v2862, 1e-10
        %v3394 = vadd.f32 %v2863, 1e-10
        %v3395 = vadd.f32 %v2864, 1e-10
        %v3396 = vadd.f32 %v2865, 1e-10
        %v3397 = vadd.f32 %v2866, 1e-10
        %v3398 = vadd.f32 %v2867, 1e-10
        %v3399 = vadd.f32 %v2868, 1e-10
        %v3400 = vadd.f32 %v2869, 1e-10
        %v3401 = vadd.f32 %v2870, 1e-10
        %v3402 = vadd.f32 %v2871, 1e-10
        %v3403 = vadd.f32 %v2872, 1e-10
        %v3404 = vadd.f32 %v2873, 1e-10
        %v3405 = vadd.f32 %v2874, 1e-10
        %v3406 = vadd.f32 %v2875, 1e-10
        %v3407 = vadd.f32 %v2876, 1e-10
        %v3408 = vadd.f32 %v2877, 1e-10
        %v3409 = vadd.f32 %v2878, 1e-10
        %v3410 = vadd.f32 %v2879, 1e-10
        %v3411 = vadd.f32 %v2880, 1e-10
        %v3412 = vadd.f32 %v2881, 1e-10
        %v3413 = vadd.f32 %v2882, 1e-10
        %v3414 = vadd.f32 %v2883, 1e-10
        %v3415 = vadd.f32 %v2884, 1e-10
        %v3416 = vlog2.pop %v3352
        %v3417 = vmul.f32 %v3416, 0.6931472
        %v3418 = vlog2.pop %v3353
        %v3419 = vmul.f32 %v3418, 0.6931472
        %v3420 = vlog2.pop %v3354
        %v3421 = vmul.f32 %v3420, 0.6931472
        %v3422 = vlog2.pop %v3355
        %v3423 = vmul.f32 %v3422, 0.6931472
        %v3424 = vlog2.pop %v3356
        %v3425 = vmul.f32 %v3424, 0.6931472
        %v3426 = vlog2.pop %v3357
        %v3427 = vmul.f32 %v3426, 0.6931472
        %v3428 = vlog2.pop %v3358
        %v3429 = vmul.f32 %v3428, 0.6931472
        %v3430 = vlog2.pop %v3359
        %v3431 = vmul.f32 %v3430, 0.6931472
        %v3432 = vlog2.pop %v3360
        %v3433 = vmul.f32 %v3432, 0.6931472
        %v3434 = vlog2.pop %v3361
        %v3435 = vmul.f32 %v3434, 0.6931472
        %v3436 = vlog2.pop %v3362
        %v3437 = vmul.f32 %v3436, 0.6931472
        %v3438 = vlog2.pop %v3363
        %v3439 = vmul.f32 %v3438, 0.6931472
        %v3440 = vlog2.pop %v3364
        %v3441 = vmul.f32 %v3440, 0.6931472
        %v3442 = vlog2.pop %v3365
        %v3443 = vmul.f32 %v3442, 0.6931472
        %v3444 = vlog2.pop %v3366
        %v3445 = vmul.f32 %v3444, 0.6931472
        %v3446 = vlog2.pop %v3367
        %v3447 = vmul.f32 %v3446, 0.6931472
        %v3448 = vlog2.pop %v3368
        %v3449 = vmul.f32 %v3448, 0.6931472
        %v3450 = vlog2.pop %v3369
        %v3451 = vmul.f32 %v3450, 0.6931472
        %v3452 = vlog2.pop %v3370
        %v3453 = vmul.f32 %v3452, 0.6931472
        %v3454 = vlog2.pop %v3371
        %v3455 = vmul.f32 %v3454, 0.6931472
        %v3456 = vlog2.pop %v3372
        %v3457 = vmul.f32 %v3456, 0.6931472
        %v3458 = vlog2.pop %v3373
        %v3459 = vmul.f32 %v3458, 0.6931472
        %v3460 = vlog2.pop %v3374
        %v3461 = vmul.f32 %v3460, 0.6931472
        %v3462 = vlog2.pop %v3375
        %v3463 = vmul.f32 %v3462, 0.6931472
        %v3464 = vlog2.pop %v3376
        %v3465 = vmul.f32 %v3464, 0.6931472
        %v3466 = vlog2.pop %v3377
        %v3467 = vmul.f32 %v3466, 0.6931472
        %v3468 = vlog2.pop %v3378
        %v3469 = vmul.f32 %v3468, 0.6931472
        %v3470 = vlog2.pop %v3379
        %v3471 = vmul.f32 %v3470, 0.6931472
        %v3472 = vlog2.pop %v3380
        %v3473 = vmul.f32 %v3472, 0.6931472
        %v3474 = vlog2.pop %v3381
        %v3475 = vmul.f32 %v3474, 0.6931472
        %v3476 = vlog2.pop %v3382
        %v3477 = vmul.f32 %v3476, 0.6931472
        %v3478 = vlog2.pop %v3383
        %v3479 = vmul.f32 %v3478, 0.6931472
        %v3480 = vlog2.pop %v3384
        %v3481 = vmul.f32 %v3480, 0.6931472
        %v3482 = vlog2.pop %v3385
        %v3483 = vmul.f32 %v3482, 0.6931472
        %v3484 = vlog2.pop %v3386
        %v3485 = vmul.f32 %v3484, 0.6931472
        %v3486 = vlog2.pop %v3387
        %v3487 = vmul.f32 %v3486, 0.6931472
        %v3488 = vlog2.pop %v3388
        %v3489 = vmul.f32 %v3488, 0.6931472
        %v3490 = vlog2.pop %v3389
        %v3491 = vmul.f32 %v3490, 0.6931472
        %v3492 = vlog2.pop %v3390
        %v3493 = vmul.f32 %v3492, 0.6931472
        %v3494 = vlog2.pop %v3391
        %v3495 = vmul.f32 %v3494, 0.6931472
        %v3496 = vlog2.pop %v3392
        %v3497 = vmul.f32 %v3496, 0.6931472
        %v3498 = vlog2.pop %v3393
        %v3499 = vmul.f32 %v3498, 0.6931472
        %v3500 = vlog2.pop %v3394
        %v3501 = vmul.f32 %v3500, 0.6931472
        %v3502 = vlog2.pop %v3395
        %v3503 = vmul.f32 %v3502, 0.6931472
        %v3504 = vlog2.pop %v3396
        %v3505 = vmul.f32 %v3504, 0.6931472
        %v3506 = vlog2.pop %v3397
        %v3507 = vmul.f32 %v3506, 0.6931472
        %v3508 = vlog2.pop %v3398
        %v3509 = vmul.f32 %v3508, 0.6931472
        %v3510 = vlog2.pop %v3399
        %v3511 = vmul.f32 %v3510, 0.6931472
        %v3512 = vlog2.pop %v3400
        %v3513 = vmul.f32 %v3512, 0.6931472
        %v3514 = vlog2.pop %v3401
        %v3515 = vmul.f32 %v3514, 0.6931472
        %v3516 = vlog2.pop %v3402
        %v3517 = vmul.f32 %v3516, 0.6931472
        %v3518 = vlog2.pop %v3403
        %v3519 = vmul.f32 %v3518, 0.6931472
        %v3520 = vlog2.pop %v3404
        %v3521 = vmul.f32 %v3520, 0.6931472
        %v3522 = vlog2.pop %v3405
        %v3523 = vmul.f32 %v3522, 0.6931472
        %v3524 = vlog2.pop %v3406
        %v3525 = vmul.f32 %v3524, 0.6931472
        %v3526 = vlog2.pop %v3407
        %v3527 = vmul.f32 %v3526, 0.6931472
        %v3528 = vlog2.pop %v3408
        %v3529 = vmul.f32 %v3528, 0.6931472
        %v3530 = vlog2.pop %v3409
        %v3531 = vmul.f32 %v3530, 0.6931472
        %v3532 = vlog2.pop %v3410
        %v3533 = vmul.f32 %v3532, 0.6931472
        %v3534 = vlog2.pop %v3411
        %v3535 = vmul.f32 %v3534, 0.6931472
        %v3536 = vlog2.pop %v3412
        %v3537 = vmul.f32 %v3536, 0.6931472
        %v3538 = vlog2.pop %v3413
        %v3539 = vmul.f32 %v3538, 0.6931472
        %v3540 = vlog2.pop %v3414
        %v3541 = vmul.f32 %v3540, 0.6931472
        %v3542 = vlog2.pop %v3415
        %v3543 = vmul.f32 %v3542, 0.6931472
        %v3544 = vmul.f32 %v3417, %v2981
        %v3545 = vmul.f32 %v3419, %v2981
        %v3546 = vmul.f32 %v3421, %v2981
        %v3547 = vmul.f32 %v3423, %v2981
        %v3548 = vmul.f32 %v3425, %v2981
        %v3549 = vmul.f32 %v3427, %v2981
        %v3550 = vmul.f32 %v3429, %v2981
        %v3551 = vmul.f32 %v3431, %v2981
        %v3552 = vmul.f32 %v3433, %v2981
        %v3553 = vmul.f32 %v3435, %v2981
        %v3554 = vmul.f32 %v3437, %v2981
        %v3555 = vmul.f32 %v3439, %v2981
        %v3556 = vmul.f32 %v3441, %v2981
        %v3557 = vmul.f32 %v3443, %v2981
        %v3558 = vmul.f32 %v3445, %v2981
        %v3559 = vmul.f32 %v3447, %v2981
        %v3560 = vmul.f32 %v3449, %v2981
        %v3561 = vmul.f32 %v3451, %v2981
        %v3562 = vmul.f32 %v3453, %v2981
        %v3563 = vmul.f32 %v3455, %v2981
        %v3564 = vmul.f32 %v3457, %v2981
        %v3565 = vmul.f32 %v3459, %v2981
        %v3566 = vmul.f32 %v3461, %v2981
        %v3567 = vmul.f32 %v3463, %v2981
        %v3568 = vmul.f32 %v3465, %v2981
        %v3569 = vmul.f32 %v3467, %v2981
        %v3570 = vmul.f32 %v3469, %v2981
        %v3571 = vmul.f32 %v3471, %v2981
        %v3572 = vmul.f32 %v3473, %v2981
        %v3573 = vmul.f32 %v3475, %v2981
        %v3574 = vmul.f32 %v3477, %v2981
        %v3575 = vmul.f32 %v3479, %v2981
        %v3576 = vmul.f32 %v3481, %v2981
        %v3577 = vmul.f32 %v3483, %v2981
        %v3578 = vmul.f32 %v3485, %v2981
        %v3579 = vmul.f32 %v3487, %v2981
        %v3580 = vmul.f32 %v3489, %v2981
        %v3581 = vmul.f32 %v3491, %v2981
        %v3582 = vmul.f32 %v3493, %v2981
        %v3583 = vmul.f32 %v3495, %v2981
        %v3584 = vmul.f32 %v3497, %v2981
        %v3585 = vmul.f32 %v3499, %v2981
        %v3586 = vmul.f32 %v3501, %v2981
        %v3587 = vmul.f32 %v3503, %v2981
        %v3588 = vmul.f32 %v3505, %v2981
        %v3589 = vmul.f32 %v3507, %v2981
        %v3590 = vmul.f32 %v3509, %v2981
        %v3591 = vmul.f32 %v3511, %v2981
        %v3592 = vmul.f32 %v3513, %v2981
        %v3593 = vmul.f32 %v3515, %v2981
        %v3594 = vmul.f32 %v3517, %v2981
        %v3595 = vmul.f32 %v3519, %v2981
        %v3596 = vmul.f32 %v3521, %v2981
        %v3597 = vmul.f32 %v3523, %v2981
        %v3598 = vmul.f32 %v3525, %v2981
        %v3599 = vmul.f32 %v3527, %v2981
        %v3600 = vmul.f32 %v3529, %v2981
        %v3601 = vmul.f32 %v3531, %v2981
        %v3602 = vmul.f32 %v3533, %v2981
        %v3603 = vmul.f32 %v3535, %v2981
        %v3604 = vmul.f32 %v3537, %v2981
        %v3605 = vmul.f32 %v3539, %v2981
        %v3606 = vmul.f32 %v3541, %v2981
        %v3607 = vmul.f32 %v3543, %v2981
        %v3608 = vmul.f32 %v2821, %v3544
        %v3609 = vmul.f32 %v2822, %v3545
        %v3610 = vmul.f32 %v2823, %v3546
        %v3611 = vmul.f32 %v2824, %v3547
        %v3612 = vmul.f32 %v2825, %v3548
        %v3613 = vmul.f32 %v2826, %v3549
        %v3614 = vmul.f32 %v2827, %v3550
        %v3615 = vmul.f32 %v2828, %v3551
        %v3616 = vmul.f32 %v2829, %v3552
        %v3617 = vmul.f32 %v2830, %v3553
        %v3618 = vmul.f32 %v2831, %v3554
        %v3619 = vmul.f32 %v2832, %v3555
        %v3620 = vmul.f32 %v2833, %v3556
        %v3621 = vmul.f32 %v2834, %v3557
        %v3622 = vmul.f32 %v2835, %v3558
        %v3623 = vmul.f32 %v2836, %v3559
        %v3624 = vmul.f32 %v2837, %v3560
        %v3625 = vmul.f32 %v2838, %v3561
        %v3626 = vmul.f32 %v2839, %v3562
        %v3627 = vmul.f32 %v2840, %v3563
        %v3628 = vmul.f32 %v2841, %v3564
        %v3629 = vmul.f32 %v2842, %v3565
        %v3630 = vmul.f32 %v2843, %v3566
        %v3631 = vmul.f32 %v2844, %v3567
        %v3632 = vmul.f32 %v2845, %v3568
        %v3633 = vmul.f32 %v2846, %v3569
        %v3634 = vmul.f32 %v2847, %v3570
        %v3635 = vmul.f32 %v2848, %v3571
        %v3636 = vmul.f32 %v2849, %v3572
        %v3637 = vmul.f32 %v2850, %v3573
        %v3638 = vmul.f32 %v2851, %v3574
        %v3639 = vmul.f32 %v2852, %v3575
        %v3640 = vmul.f32 %v2853, %v3576
        %v3641 = vmul.f32 %v2854, %v3577
        %v3642 = vmul.f32 %v2855, %v3578
        %v3643 = vmul.f32 %v2856, %v3579
        %v3644 = vmul.f32 %v2857, %v3580
        %v3645 = vmul.f32 %v2858, %v3581
        %v3646 = vmul.f32 %v2859, %v3582
        %v3647 = vmul.f32 %v2860, %v3583
        %v3648 = vmul.f32 %v2861, %v3584
        %v3649 = vmul.f32 %v2862, %v3585
        %v3650 = vmul.f32 %v2863, %v3586
        %v3651 = vmul.f32 %v2864, %v3587
        %v3652 = vmul.f32 %v2865, %v3588
        %v3653 = vmul.f32 %v2866, %v3589
        %v3654 = vmul.f32 %v2867, %v3590
        %v3655 = vmul.f32 %v2868, %v3591
        %v3656 = vmul.f32 %v2869, %v3592
        %v3657 = vmul.f32 %v2870, %v3593
        %v3658 = vmul.f32 %v2871, %v3594
        %v3659 = vmul.f32 %v2872, %v3595
        %v3660 = vmul.f32 %v2873, %v3596
        %v3661 = vmul.f32 %v2874, %v3597
        %v3662 = vmul.f32 %v2875, %v3598
        %v3663 = vmul.f32 %v2876, %v3599
        %v3664 = vmul.f32 %v2877, %v3600
        %v3665 = vmul.f32 %v2878, %v3601
        %v3666 = vmul.f32 %v2879, %v3602
        %v3667 = vmul.f32 %v2880, %v3603
        %v3668 = vmul.f32 %v2881, %v3604
        %v3669 = vmul.f32 %v2882, %v3605
        %v3670 = vmul.f32 %v2883, %v3606
        %v3671 = vmul.f32 %v2884, %v3607
        %v3672 = vadd.f32 %v3608, %v3609
        %v3673 = vadd.f32 %v3672, %v3610
        %v3674 = vadd.f32 %v3673, %v3611
        %v3675 = vadd.f32 %v3674, %v3612
        %v3676 = vadd.f32 %v3675, %v3613
        %v3677 = vadd.f32 %v3676, %v3614
        %v3678 = vadd.f32 %v3677, %v3615
        %v3679 = vadd.f32 %v3678, %v3616
        %v3680 = vadd.f32 %v3679, %v3617
        %v3681 = vadd.f32 %v3680, %v3618
        %v3682 = vadd.f32 %v3681, %v3619
        %v3683 = vadd.f32 %v3682, %v3620
        %v3684 = vadd.f32 %v3683, %v3621
        %v3685 = vadd.f32 %v3684, %v3622
        %v3686 = vadd.f32 %v3685, %v3623
        %v3687 = vadd.f32 %v3686, %v3624
        %v3688 = vadd.f32 %v3687, %v3625
        %v3689 = vadd.f32 %v3688, %v3626
        %v3690 = vadd.f32 %v3689, %v3627
        %v3691 = vadd.f32 %v3690, %v3628
        %v3692 = vadd.f32 %v3691, %v3629
        %v3693 = vadd.f32 %v3692, %v3630
        %v3694 = vadd.f32 %v3693, %v3631
        %v3695 = vadd.f32 %v3694, %v3632
        %v3696 = vadd.f32 %v3695, %v3633
        %v3697 = vadd.f32 %v3696, %v3634
        %v3698 = vadd.f32 %v3697, %v3635
        %v3699 = vadd.f32 %v3698, %v3636
        %v3700 = vadd.f32 %v3699, %v3637
        %v3701 = vadd.f32 %v3700, %v3638
        %v3702 = vadd.f32 %v3701, %v3639
        %v3703 = vadd.f32 %v3702, %v3640
        %v3704 = vadd.f32 %v3703, %v3641
        %v3705 = vadd.f32 %v3704, %v3642
        %v3706 = vadd.f32 %v3705, %v3643
        %v3707 = vadd.f32 %v3706, %v3644
        %v3708 = vadd.f32 %v3707, %v3645
        %v3709 = vadd.f32 %v3708, %v3646
        %v3710 = vadd.f32 %v3709, %v3647
        %v3711 = vadd.f32 %v3710, %v3648
        %v3712 = vadd.f32 %v3711, %v3649
        %v3713 = vadd.f32 %v3712, %v3650
        %v3714 = vadd.f32 %v3713, %v3651
        %v3715 = vadd.f32 %v3714, %v3652
        %v3716 = vadd.f32 %v3715, %v3653
        %v3717 = vadd.f32 %v3716, %v3654
        %v3718 = vadd.f32 %v3717, %v3655
        %v3719 = vadd.f32 %v3718, %v3656
        %v3720 = vadd.f32 %v3719, %v3657
        %v3721 = vadd.f32 %v3720, %v3658
        %v3722 = vadd.f32 %v3721, %v3659
        %v3723 = vadd.f32 %v3722, %v3660
        %v3724 = vadd.f32 %v3723, %v3661
        %v3725 = vadd.f32 %v3724, %v3662
        %v3726 = vadd.f32 %v3725, %v3663
        %v3727 = vadd.f32 %v3726, %v3664
        %v3728 = vadd.f32 %v3727, %v3665
        %v3729 = vadd.f32 %v3728, %v3666
        %v3730 = vadd.f32 %v3729, %v3667
        %v3731 = vadd.f32 %v3730, %v3668
        %v3732 = vadd.f32 %v3731, %v3669
        %v3733 = vadd.f32 %v3732, %v3670
        %v3734 = vadd.f32 %v3733, %v3671
        %3735 = vadd.xlane.f32.xlu0 %v3734
        %v3736 = vpop.xlane.xlu0 %3735
        %v3737 = vrot.slane %v3736, 4
        %v3738 = vadd.f32 %v3736, %v3737
        %v3739 = vrot.slane %v3738, 2
        %v3740 = vadd.f32 %v3738, %v3739
        %v3741 = vrot.slane %v3740, 1
        %v3742 = vadd.f32 %v3740, %v3741
        %s3743 = vtos %v3742
        %s3744 = ssub.f32 0.0, %s3743
        %s3745 = sadd.f32 %s3118, %s3351
        %s3746 = ssub.f32 %s3745, %s3744
        %s3747 = smul.f32 %s3746, 2.0
        %v3748 = vstv %s3745
        %v3749 = vrcp.pop %v3748
        %s3750 = vtos %v3749
        %s3751 = smul.f32 %s3747, %s3750
        %v3752 = vstv %s3751
        %vm3753 = vcmask 0
        %3754 = vst.msk [vmem:[%s247] sm:$0x1] %vm3753, %v3752
      $region44: #{tpu_custom_call.1} parent=35 // pred_fallthru
        _
      %p3755 = scmp.lt.s32.totalorder %s19, 1
      %s3756 = scalar_select %p3755, %s19, 1
      %s3757 = scalar_lea.vmem %s4, %s3756
      // Predicated region
      $region45: #{tpu_custom_call.1} parent=35 // pred_check
        %p3758 = pneg %p143
      $region46: #{tpu_custom_call.1} parent=35 // pred_check_branch
        %3760 = sbr.rel (%p3758) target = $region48
      $region47: #{tpu_custom_call.1} parent=35 // pred_region
        _
      $region48: #{tpu_custom_call.1} parent=35 // pred_fallthru
        _
    $region36: #{tpu_custom_call.1} parent=5 // pred_fallthru
      _
    %p3761 = scmp.le.s32.totalorder 2, %s10
    // Predicated region
    $region49: #{tpu_custom_call.1} parent=5 // pred_check
      %p3762 = pneg %p3761
    $region50: #{tpu_custom_call.1} parent=5 // pred_check_branch
      %3764 = sbr.rel (%p3762) target = $region52
    $region51: #{tpu_custom_call.1} parent=5 // pred_region
      %s3765 = ssub.s32 %s10, 2
      // Predicated region
      $region53: #{tpu_custom_call.1} parent=51 // pred_check
        %p3766 = pneg %p149
      $region54: #{tpu_custom_call.1} parent=51 // pred_check_branch
        %3768 = sbr.rel (%p3766) target = $region56
      $region55: #{tpu_custom_call.1} parent=51 // pred_region
        %p3769 = scmp.lt.s32.totalorder %s21, 1
        %s3770 = scalar_select %p3769, %s21, 1
        %s3771 = scalar_lea.vmem %s4, %s3770
      $region56: #{tpu_custom_call.1} parent=51 // pred_fallthru
        _
    $region52: #{tpu_custom_call.1} parent=5 // pred_fallthru
      _
  $region6: #{tpu_custom_call.1} parent=0 // loop_footer
    %s14 = sadd.s32 1, %s10
  $region7: #{tpu_custom_call.1} parent=0 // loop_footer_branch
    %9 = sbr.rel target = $region3
  $region8: #{tpu_custom_call.1} parent=0 // loop_exit
    _

</llo_original>
